<compile_context>
chip_gen: v5e
topology: v5e:2x2
jax: 0.10.0
libtpu: 0.0.40
codegen_flags: <defaults>
</compile_context>

<pallas_src>
import functools

import jax
import jax.numpy as jnp
from jax.experimental import pallas as pl
from jax.experimental.pallas import tpu as pltpu


CP0 = 16        # conv0 out-channels padded 6 -> 16  (24 * 16 = 384 = 3 lane tiles)
C1 = 16         # conv1 out-channels (already 16; 8 * 16 = 128 = 1 lane tile)
EPS = 1e-5


# ----------------------------- fused Pallas kernel ---------------------------

def lenet_kernel(x_ref, b0w_ref, b0b_ref, pr0_ref, pc0_ref,
                 c1w_ref, c1b_ref, pr1_ref, pc1_ref,
                 w2_ref, b2_ref, w3_ref, b3_ref, w4_ref, b4_ref,
                 out0_ref, out1_ref, out2_ref, out3_ref, out4_ref,
                 p0_ref, p1_ref):
    f32 = jnp.float32

    # conv0 (5x5, 1->6, BN+bias folded) + ReLU: 5 banded matmuls over kh.
    #   acc0[oh, ow*CP0 + co] = sum_kh  x[oh+kh, :] @ B0[kh]
    acc0 = jnp.dot(x_ref[0:24, :], b0w_ref[0], preferred_element_type=f32)
    for kh in range(1, 5):
        acc0 = acc0 + jnp.dot(x_ref[kh:kh + 24, :], b0w_ref[kh],
                              preferred_element_type=f32)
    a0 = jnp.maximum(acc0 + b0b_ref[...], 0.0)                     # [24, 384]
    out0_ref[...] = a0                                             # lane-dense store

    # fused 2x2 avg-pool (row-pool and channel-interleaved column-pool matmuls).
    p0_ref[...] = jnp.dot(
        jnp.dot(pr0_ref[...], a0, preferred_element_type=f32),
        pc0_ref[...], preferred_element_type=f32)                  # [12, 192]

    # conv1 (5x5, 6->16, BN+bias folded) + ReLU.
    acc1 = jnp.dot(p0_ref[0:8, :], c1w_ref[0], preferred_element_type=f32)
    for kh in range(1, 5):
        acc1 = acc1 + jnp.dot(p0_ref[kh:kh + 8, :], c1w_ref[kh],
                              preferred_element_type=f32)
    a1 = jnp.maximum(acc1 + c1b_ref[...], 0.0)                     # [8, 128]
    out1_ref[...] = a1

    # fused 2x2 avg-pool -> [4, 64], element layout (h ; w*16 + c).
    p1_ref[...] = jnp.dot(
        jnp.dot(pr1_ref[...], a1, preferred_element_type=f32),
        pc1_ref[...], preferred_element_type=f32)

    # FC2 (256 -> 120, padded to 128 lanes) + folded BN + ReLU.
    acc2 = jnp.dot(p1_ref[0:1, :], w2_ref[0], preferred_element_type=f32)
    for h in range(1, 4):
        acc2 = acc2 + jnp.dot(p1_ref[h:h + 1, :], w2_ref[h],
                              preferred_element_type=f32)
    a2 = jnp.maximum(acc2 + b2_ref[...], 0.0)                      # [1, 128]
    out2_ref[...] = a2

    # FC3 (120 -> 84, padded) + folded BN + ReLU.
    a3 = jnp.maximum(
        jnp.dot(a2, w3_ref[...], preferred_element_type=f32) + b3_ref[...], 0.0)
    out3_ref[...] = a3

    # FC4 (84 -> num_classes, padded) classifier head.
    out4_ref[...] = (jnp.dot(a3, w4_ref[...], preferred_element_type=f32)
                     + b4_ref[...])


# ----------------------------- parameter packing -----------------------------

def _bn_fold(gamma, beta, mean, var):
    scale = gamma / jnp.sqrt(var + EPS)
    shift = beta - mean * scale
    return scale, shift


def _shift_matrix(in_len, out_len, k):
    # S[kw, w_in, ow] = 1.0 where w_in == ow + kw
    kw = jnp.arange(k)[:, None, None]
    w_in = jnp.arange(in_len)[None, :, None]
    ow = jnp.arange(out_len)[None, None, :]
    return (w_in == ow + kw).astype(jnp.float32)


def _pool_matrix(in_len):
    # P[i, j] = 0.5 where i // 2 == j   (shape [in_len, in_len // 2])
    i = jnp.arange(in_len)[:, None]
    j = jnp.arange(in_len // 2)[None, :]
    return 0.5 * (i // 2 == j).astype(jnp.float32)


def pack_params(raw, num_classes=10):
    """Fold bias + BN into the weights and pack them into banded / lane-padded
    matrices so the fused kernel body is only matmul + add + relu."""
    hi = jax.lax.Precision.HIGHEST
    p = {}

    # conv0: B0[kh, w_in, ow*CP0 + co] = w0[co, 0, kh, w_in - ow] * bn_scale0[co]
    s0, t0 = _bn_fold(raw["bn0_g"], raw["bn0_b"], raw["bn0_m"], raw["bn0_v"])
    w0f = jnp.transpose(raw["conv0_w"][:, 0], (1, 2, 0)) * s0          # [5,5,6] (kh,kw,co)
    b0 = jnp.einsum("qio,hqc->hioc", _shift_matrix(28, 24, 5), w0f, precision=hi)
    b0 = jnp.pad(b0, ((0, 0), (0, 0), (0, 0), (0, CP0 - 6)))           # [5,28,24,16]
    p["conv0_w"] = b0.reshape(5, 28, 24 * CP0)
    p["conv0_b"] = jnp.tile(jnp.pad(raw["conv0_b"] * s0 + t0, (0, CP0 - 6)),
                            24).reshape(1, 24 * CP0)

    # 2x2 avg-pool 24x24xCP0 -> 12x12xCP0 (channel-interleaved lane layout)
    p["pool0_row"] = _pool_matrix(24).T                                # [12, 24]
    p["pool0_col"] = jnp.kron(_pool_matrix(24), jnp.eye(CP0, dtype=jnp.float32))

    # conv1: M1[kh, w_in*CP0 + ci, ow*16 + co] = w1[co, ci, kh, w_in - ow] * bn_scale1[co]
    s1, t1 = _bn_fold(raw["bn1_g"], raw["bn1_b"], raw["bn1_m"], raw["bn1_v"])
    w1f = jnp.transpose(raw["conv1_w"], (2, 3, 1, 0)) * s1             # [5,5,6,16]
    m1 = jnp.einsum("qio,hqcd->hicod", _shift_matrix(12, 8, 5), w1f, precision=hi)
    m1 = jnp.pad(m1, ((0, 0), (0, 0), (0, CP0 - 6), (0, 0), (0, 0)))   # [5,12,16,8,16]
    p["conv1_w"] = m1.reshape(5, 12 * CP0, 8 * C1)
    p["conv1_b"] = jnp.tile(raw["conv1_b"] * s1 + t1, 8).reshape(1, 8 * C1)

    # 2x2 avg-pool 8x8x16 -> 4x4x16
    p["pool1_row"] = _pool_matrix(8).T                                 # [4, 8]
    p["pool1_col"] = jnp.kron(_pool_matrix(8), jnp.eye(C1, dtype=jnp.float32))

    # FC2: W2r[h, w*16 + c, co] = fc2_w[co, c*16 + h*4 + w] * bn_scale2[co]
    s2, t2 = _bn_fold(raw["bn2_g"], raw["bn2_b"], raw["bn2_m"], raw["bn2_v"])
    w2 = raw["fc2_w"].reshape(120, 16, 4, 4)                           # (co, c, h, w)
    w2 = jnp.transpose(w2, (2, 3, 1, 0)) * s2                          # (h, w, c, co)
    p["fc2_w"] = jnp.pad(w2, ((0, 0), (0, 0), (0, 0), (0, 8))).reshape(4, 64, 128)
    p["fc2_b"] = jnp.pad(raw["fc2_b"] * s2 + t2, (0, 8)).reshape(1, 128)

    # FC3 (120 -> 84)
    s3, t3 = _bn_fold(raw["bn3_g"], raw["bn3_b"], raw["bn3_m"], raw["bn3_v"])
    p["fc3_w"] = jnp.pad((raw["fc3_w"] * s3[:, None]).T, ((0, 8), (0, 44)))
    p["fc3_b"] = jnp.pad(raw["fc3_b"] * s3 + t3, (0, 44)).reshape(1, 128)

    # FC4 (84 -> num_classes, no BN)
    p["fc4_w"] = jnp.pad(raw["fc4_w"].T, ((0, 44), (0, 128 - num_classes)))
    p["fc4_b"] = jnp.pad(raw["fc4_b"], (0, 128 - num_classes)).reshape(1, 128)
    return p


def init_params(key, num_classes=10):
    """Deterministic PyTorch-layout parameters (conv OIHW, linear [out, in])."""
    ks = iter(jax.random.split(key, 32))
    f32 = jnp.float32

    def normal(shape, scale):
        return scale * jax.random.normal(next(ks), shape, f32)

    raw = {
        "conv0_w": normal((6, 1, 5, 5), 0.1), "conv0_b": normal((6,), 0.05),
        "conv1_w": normal((16, 6, 5, 5), 0.1), "conv1_b": normal((16,), 0.05),
        "fc2_w": normal((120, 256), 0.05), "fc2_b": normal((120,), 0.05),
        "fc3_w": normal((84, 120), 0.05), "fc3_b": normal((84,), 0.05),
        "fc4_w": normal((num_classes, 84), 0.05),
        "fc4_b": normal((num_classes,), 0.05),
    }
    for i, c in zip((0, 1, 2, 3), (6, 16, 120, 84)):
        raw[f"bn{i}_g"] = 1.0 + 0.1 * jax.random.normal(next(ks), (c,), f32)
        raw[f"bn{i}_b"] = 0.05 * jax.random.normal(next(ks), (c,), f32)
        raw[f"bn{i}_m"] = 0.02 * jax.random.normal(next(ks), (c,), f32)
        raw[f"bn{i}_v"] = 1.0 + 0.1 * jax.random.uniform(next(ks), (c,), f32)
    return raw


# ----------------------------- forward pass ----------------------------------

def lenet_forward(x_nchw, packed, num_classes=10):
    n = x_nchw.shape[0]
    assert x_nchw.shape[1:] == (1, 28, 28), x_nchw.shape
    x = x_nchw.reshape(n, 28, 28)            # Cin == 1: drop the channel dim (free)

    weight_names = ["conv0_w", "conv0_b", "pool0_row", "pool0_col",
                    "conv1_w", "conv1_b", "pool1_row", "pool1_col",
                    "fc2_w", "fc2_b", "fc3_w", "fc3_b", "fc4_w", "fc4_b"]
    weights = [packed[k] for k in weight_names]

    def const_spec(a):
        nd = a.ndim

        def idx(i):
            return (0,) * nd

        return pl.BlockSpec(a.shape, idx)

    out0_p, out1_p, out2_p, out3_p, out4_p = pl.pallas_call(
        lenet_kernel,
        out_shape=(
            jax.ShapeDtypeStruct((n, 24, 24 * CP0), jnp.float32),
            jax.ShapeDtypeStruct((n, 8, 8 * C1), jnp.float32),
            jax.ShapeDtypeStruct((n, 1, 128), jnp.float32),
            jax.ShapeDtypeStruct((n, 1, 128), jnp.float32),
            jax.ShapeDtypeStruct((n, 1, 128), jnp.float32),
        ),
        grid_spec=pltpu.PrefetchScalarGridSpec(
            num_scalar_prefetch=0,
            grid=(n,),
            in_specs=[pl.BlockSpec((None, 28, 28), lambda i: (i, 0, 0))]
                    + [const_spec(w) for w in weights],
            out_specs=(
                pl.BlockSpec((None, 24, 24 * CP0), lambda i: (i, 0, 0)),
                pl.BlockSpec((None, 8, 8 * C1), lambda i: (i, 0, 0)),
                pl.BlockSpec((None, 1, 128), lambda i: (i, 0, 0)),
                pl.BlockSpec((None, 1, 128), lambda i: (i, 0, 0)),
                pl.BlockSpec((None, 1, 128), lambda i: (i, 0, 0)),
            ),
            scratch_shapes=[
                pltpu.VMEM((12, 12 * CP0), jnp.float32),   # pooled conv0 activation
                pltpu.VMEM((4, 4 * C1), jnp.float32),      # pooled conv1 activation
            ],
        ),
        compiler_params=pltpu.CompilerParams(
            dimension_semantics=("parallel",)),
    )(x, *weights)

    # XLA glue: slice off the lane padding and restore PyTorch's NCHW layouts.
    out0 = jnp.transpose(out0_p.reshape(n, 24, 24, CP0)[..., :6], (0, 3, 1, 2))
    out1 = jnp.transpose(out1_p.reshape(n, 8, 8, C1), (0, 3, 1, 2))
    out2 = out2_p[:, 0, :120]
    out3 = out3_p[:, 0, :84]
    out4 = out4_p[:, 0, :num_classes]
    return [out0, out1, out2, out3, out4]


# ----------------------------- pure-JAX reference ----------------------------

def lenet_reference(x_nchw, raw, num_classes=10):
    """Plain XLA reference of the PyTorch forward (inference-mode BN)."""
    hi = jax.lax.Precision.HIGHEST
    n = x_nchw.shape[0]

    def conv(x, w, b):
        co, ci, kh, kw = w.shape
        oh, ow = x.shape[2] - kh + 1, x.shape[3] - kw + 1
        pats = jnp.stack([x[:, :, i:i + oh, j:j + ow]
                          for i in range(kh) for j in range(kw)], axis=2)
        y = jnp.einsum("nckhw,ock->nohw", pats, w.reshape(co, ci, kh * kw),
                       precision=hi)
        return y + b[None, :, None, None]

    def pool(y):
        nn, c, h, w = y.shape
        return y.reshape(nn, c, h // 2, 2, w // 2, 2).mean(axis=(3, 5))

    def bn2d(y, i):
        s, t = _bn_fold(raw[f"bn{i}_g"], raw[f"bn{i}_b"],
                        raw[f"bn{i}_m"], raw[f"bn{i}_v"])
        return y * s[None, :, None, None] + t[None, :, None, None]

    def bn1d(y, i):
        s, t = _bn_fold(raw[f"bn{i}_g"], raw[f"bn{i}_b"],
                        raw[f"bn{i}_m"], raw[f"bn{i}_v"])
        return y * s[None, :] + t[None, :]

    out = []
    x = jnp.maximum(bn2d(conv(x_nchw, raw["conv0_w"], raw["conv0_b"]), 0), 0.0)
    out.append(x)
    x = pool(x)
    x = jnp.maximum(bn2d(conv(x, raw["conv1_w"], raw["conv1_b"]), 1), 0.0)
    out.append(x)
    x = pool(x).reshape(n, 256)
    x = jnp.maximum(
        bn1d(jnp.dot(x, raw["fc2_w"].T, precision=hi) + raw["fc2_b"], 2), 0.0)
    out.append(x)
    x = jnp.maximum(
        bn1d(jnp.dot(x, raw["fc3_w"].T, precision=hi) + raw["fc3_b"], 3), 0.0)
    out.append(x)
    out.append(jnp.dot(x, raw["fc4_w"].T, precision=hi) + raw["fc4_b"])
    return out


# ----------------------------- main -------------------------------------------

if __name__ == "__main__":
    key = jax.random.PRNGKey(0)
    pkey, xkey = jax.random.split(key)
    raw = init_params(pkey, num_classes=10)
    packed = pack_params(raw, num_classes=10)

    # MNIST-style input implied by linearL2_(in_features=256): [N, 1, 28, 28]
    x = jax.random.normal(xkey, (2, 1, 28, 28), dtype=jnp.float32)

    fwd = jax.jit(functools.partial(lenet_forward, packed=packed, num_classes=10))
    outs = jax.block_until_ready(fwd(x))

    expected = [(2, 6, 24, 24), (2, 16, 8, 8), (2, 120), (2, 84), (2, 10)]
    assert [tuple(o.shape) for o in outs] == expected, [o.shape for o in outs]
    assert all(bool(jnp.all(jnp.isfinite(o))) for o in outs)

    # Validate the fused kernel against a pure-JAX/XLA reference of the module.
    refs = lenet_reference(x, raw, num_classes=10)
    for got, want in zip(outs, refs):
        err = float(jnp.max(jnp.abs(got - want)))
        assert err < 5e-2, ("mismatch vs reference", got.shape, err)

    print("KERNEL_OK")
</pallas_src>

<mosaic_0001>
module attributes {stable_mosaic.version = 11 : i64} {
  func.func @lenet_kernel(%arg0: i32, %arg1: memref<1x28x28xf32, #tpu.memory_space<vmem>>, %arg2: memref<5x28x384xf32, #tpu.memory_space<vmem>>, %arg3: memref<1x384xf32, #tpu.memory_space<vmem>>, %arg4: memref<12x24xf32, #tpu.memory_space<vmem>>, %arg5: memref<384x192xf32, #tpu.memory_space<vmem>>, %arg6: memref<5x192x128xf32, #tpu.memory_space<vmem>>, %arg7: memref<1x128xf32, #tpu.memory_space<vmem>>, %arg8: memref<4x8xf32, #tpu.memory_space<vmem>>, %arg9: memref<128x64xf32, #tpu.memory_space<vmem>>, %arg10: memref<4x64x128xf32, #tpu.memory_space<vmem>>, %arg11: memref<1x128xf32, #tpu.memory_space<vmem>>, %arg12: memref<128x128xf32, #tpu.memory_space<vmem>>, %arg13: memref<1x128xf32, #tpu.memory_space<vmem>>, %arg14: memref<128x128xf32, #tpu.memory_space<vmem>>, %arg15: memref<1x128xf32, #tpu.memory_space<vmem>>, %arg16: memref<1x24x384xf32, #tpu.memory_space<vmem>>, %arg17: memref<1x8x128xf32, #tpu.memory_space<vmem>>, %arg18: memref<1x1x128xf32, #tpu.memory_space<vmem>>, %arg19: memref<1x1x128xf32, #tpu.memory_space<vmem>>, %arg20: memref<1x1x128xf32, #tpu.memory_space<vmem>>, %arg21: memref<12x192xf32, #tpu.memory_space<vmem>>, %arg22: memref<4x64xf32, #tpu.memory_space<vmem>>) attributes {dimension_semantics = [#tpu.dimension_semantics<parallel>], iteration_bounds = array<i64: 2>, scalar_prefetch = 0 : i64, scratch_operands = 2 : i64, tpu.core_type = #tpu.core_type<tc>, window_params = [{transform_indices = @transform_0, window_bounds = array<i64: 1, 28, 28>}, {pipeline_mode = #tpu.pipeline_mode<synchronous>, transform_indices = @transform_1, window_bounds = array<i64: 5, 28, 384>}, {pipeline_mode = #tpu.pipeline_mode<synchronous>, transform_indices = @transform_2, window_bounds = array<i64: 1, 384>}, {pipeline_mode = #tpu.pipeline_mode<synchronous>, transform_indices = @transform_3, window_bounds = array<i64: 12, 24>}, {pipeline_mode = #tpu.pipeline_mode<synchronous>, transform_indices = @transform_4, window_bounds = array<i64: 384, 192>}, {pipeline_mode = #tpu.pipeline_mode<synchronous>, transform_indices = @transform_5, window_bounds = array<i64: 5, 192, 128>}, {pipeline_mode = #tpu.pipeline_mode<synchronous>, transform_indices = @transform_6, window_bounds = array<i64: 1, 128>}, {pipeline_mode = #tpu.pipeline_mode<synchronous>, transform_indices = @transform_7, window_bounds = array<i64: 4, 8>}, {pipeline_mode = #tpu.pipeline_mode<synchronous>, transform_indices = @transform_8, window_bounds = array<i64: 128, 64>}, {pipeline_mode = #tpu.pipeline_mode<synchronous>, transform_indices = @transform_9, window_bounds = array<i64: 4, 64, 128>}, {pipeline_mode = #tpu.pipeline_mode<synchronous>, transform_indices = @transform_10, window_bounds = array<i64: 1, 128>}, {pipeline_mode = #tpu.pipeline_mode<synchronous>, transform_indices = @transform_11, window_bounds = array<i64: 128, 128>}, {pipeline_mode = #tpu.pipeline_mode<synchronous>, transform_indices = @transform_12, window_bounds = array<i64: 1, 128>}, {pipeline_mode = #tpu.pipeline_mode<synchronous>, transform_indices = @transform_13, window_bounds = array<i64: 128, 128>}, {pipeline_mode = #tpu.pipeline_mode<synchronous>, transform_indices = @transform_14, window_bounds = array<i64: 1, 128>}, {transform_indices = @transform_15, window_bounds = array<i64: 1, 24, 384>}, {transform_indices = @transform_16, window_bounds = array<i64: 1, 8, 128>}, {transform_indices = @transform_17, window_bounds = array<i64: 1, 1, 128>}, {transform_indices = @transform_18, window_bounds = array<i64: 1, 1, 128>}, {transform_indices = @transform_19, window_bounds = array<i64: 1, 1, 128>}]} {
    %c0 = arith.constant 0 : index
    %c0_0 = arith.constant 0 : index
    %c0_1 = arith.constant 0 : index
    %0 = vector.load %arg1[%c0, %c0_0, %c0_1] : memref<1x28x28xf32, #tpu.memory_space<vmem>>, vector<1x24x28xf32>
    %1 = vector.shape_cast %0 : vector<1x24x28xf32> to vector<24x28xf32>
    %c0_2 = arith.constant 0 : index
    %c0_3 = arith.constant 0 : index
    %c0_4 = arith.constant 0 : index
    %2 = vector.load %arg2[%c0_2, %c0_3, %c0_4] : memref<5x28x384xf32, #tpu.memory_space<vmem>>, vector<1x28x384xf32>
    %3 = vector.shape_cast %2 : vector<1x28x384xf32> to vector<28x384xf32>
    %cst = arith.constant dense<0.000000e+00> : vector<24x384xf32>
    %4 = tpu.matmul %1, %3, %cst {dimension_numbers = #tpu.dot_dimension_numbers<[1], [0], [0], [1], [0, 0, 1, 1], [], []>} : vector<24x28xf32>, vector<28x384xf32>, vector<24x384xf32> -> vector<24x384xf32>
    %c0_5 = arith.constant 0 : index
    %c1 = arith.constant 1 : index
    %c0_6 = arith.constant 0 : index
    %5 = vector.load %arg1[%c0_5, %c1, %c0_6] : memref<1x28x28xf32, #tpu.memory_space<vmem>>, vector<1x24x28xf32>
    %6 = vector.shape_cast %5 : vector<1x24x28xf32> to vector<24x28xf32>
    %c1_7 = arith.constant 1 : index
    %c0_8 = arith.constant 0 : index
    %c0_9 = arith.constant 0 : index
    %7 = vector.load %arg2[%c1_7, %c0_8, %c0_9] : memref<5x28x384xf32, #tpu.memory_space<vmem>>, vector<1x28x384xf32>
    %8 = vector.shape_cast %7 : vector<1x28x384xf32> to vector<28x384xf32>
    %cst_10 = arith.constant dense<0.000000e+00> : vector<24x384xf32>
    %9 = tpu.matmul %6, %8, %cst_10 {dimension_numbers = #tpu.dot_dimension_numbers<[1], [0], [0], [1], [0, 0, 1, 1], [], []>} : vector<24x28xf32>, vector<28x384xf32>, vector<24x384xf32> -> vector<24x384xf32>
    %10 = arith.addf %4, %9 : vector<24x384xf32>
    %c0_11 = arith.constant 0 : index
    %c2 = arith.constant 2 : index
    %c0_12 = arith.constant 0 : index
    %11 = vector.load %arg1[%c0_11, %c2, %c0_12] : memref<1x28x28xf32, #tpu.memory_space<vmem>>, vector<1x24x28xf32>
    %12 = vector.shape_cast %11 : vector<1x24x28xf32> to vector<24x28xf32>
    %c2_13 = arith.constant 2 : index
    %c0_14 = arith.constant 0 : index
    %c0_15 = arith.constant 0 : index
    %13 = vector.load %arg2[%c2_13, %c0_14, %c0_15] : memref<5x28x384xf32, #tpu.memory_space<vmem>>, vector<1x28x384xf32>
    %14 = vector.shape_cast %13 : vector<1x28x384xf32> to vector<28x384xf32>
    %cst_16 = arith.constant dense<0.000000e+00> : vector<24x384xf32>
    %15 = tpu.matmul %12, %14, %cst_16 {dimension_numbers = #tpu.dot_dimension_numbers<[1], [0], [0], [1], [0, 0, 1, 1], [], []>} : vector<24x28xf32>, vector<28x384xf32>, vector<24x384xf32> -> vector<24x384xf32>
    %16 = arith.addf %10, %15 : vector<24x384xf32>
    %c0_17 = arith.constant 0 : index
    %c3 = arith.constant 3 : index
    %c0_18 = arith.constant 0 : index
    %17 = vector.load %arg1[%c0_17, %c3, %c0_18] : memref<1x28x28xf32, #tpu.memory_space<vmem>>, vector<1x24x28xf32>
    %18 = vector.shape_cast %17 : vector<1x24x28xf32> to vector<24x28xf32>
    %c3_19 = arith.constant 3 : index
    %c0_20 = arith.constant 0 : index
    %c0_21 = arith.constant 0 : index
    %19 = vector.load %arg2[%c3_19, %c0_20, %c0_21] : memref<5x28x384xf32, #tpu.memory_space<vmem>>, vector<1x28x384xf32>
    %20 = vector.shape_cast %19 : vector<1x28x384xf32> to vector<28x384xf32>
    %cst_22 = arith.constant dense<0.000000e+00> : vector<24x384xf32>
    %21 = tpu.matmul %18, %20, %cst_22 {dimension_numbers = #tpu.dot_dimension_numbers<[1], [0], [0], [1], [0, 0, 1, 1], [], []>} : vector<24x28xf32>, vector<28x384xf32>, vector<24x384xf32> -> vector<24x384xf32>
    %22 = arith.addf %16, %21 : vector<24x384xf32>
    %c0_23 = arith.constant 0 : index
    %c4 = arith.constant 4 : index
    %c0_24 = arith.constant 0 : index
    %23 = vector.load %arg1[%c0_23, %c4, %c0_24] : memref<1x28x28xf32, #tpu.memory_space<vmem>>, vector<1x24x28xf32>
    %24 = vector.shape_cast %23 : vector<1x24x28xf32> to vector<24x28xf32>
    %c4_25 = arith.constant 4 : index
    %c0_26 = arith.constant 0 : index
    %c0_27 = arith.constant 0 : index
    %25 = vector.load %arg2[%c4_25, %c0_26, %c0_27] : memref<5x28x384xf32, #tpu.memory_space<vmem>>, vector<1x28x384xf32>
    %26 = vector.shape_cast %25 : vector<1x28x384xf32> to vector<28x384xf32>
    %cst_28 = arith.constant dense<0.000000e+00> : vector<24x384xf32>
    %27 = tpu.matmul %24, %26, %cst_28 {dimension_numbers = #tpu.dot_dimension_numbers<[1], [0], [0], [1], [0, 0, 1, 1], [], []>} : vector<24x28xf32>, vector<28x384xf32>, vector<24x384xf32> -> vector<24x384xf32>
    %28 = arith.addf %22, %27 : vector<24x384xf32>
    %c0_29 = arith.constant 0 : index
    %c0_30 = arith.constant 0 : index
    %29 = vector.load %arg3[%c0_29, %c0_30] : memref<1x384xf32, #tpu.memory_space<vmem>>, vector<1x384xf32>
    %30 = vector.broadcast %29 : vector<1x384xf32> to vector<24x384xf32>
    %31 = arith.addf %28, %30 : vector<24x384xf32>
    %cst_31 = arith.constant 0.000000e+00 : f32
    %32 = vector.broadcast %cst_31 : f32 to vector<24x384xf32>
    %33 = arith.maximumf %31, %32 : vector<24x384xf32>
    %c0_32 = arith.constant 0 : index
    %c0_33 = arith.constant 0 : index
    %c0_34 = arith.constant 0 : index
    %34 = vector.load %arg16[%c0_32, %c0_33, %c0_34] : memref<1x24x384xf32, #tpu.memory_space<vmem>>, vector<1x24x384xf32>
    %35 = vector.shape_cast %34 : vector<1x24x384xf32> to vector<24x384xf32>
    %36 = vector.shape_cast %33 : vector<24x384xf32> to vector<1x24x384xf32>
    tpu.vector_store %arg16[%c0_32, %c0_33, %c0_34], %36 {strides = array<i32>} : memref<1x24x384xf32, #tpu.memory_space<vmem>>, vector<1x24x384xf32>,
    %c0_35 = arith.constant 0 : index
    %c0_36 = arith.constant 0 : index
    %37 = vector.load %arg4[%c0_35, %c0_36] : memref<12x24xf32, #tpu.memory_space<vmem>>, vector<12x24xf32>
    %cst_37 = arith.constant dense<0.000000e+00> : vector<12x384xf32>
    %38 = tpu.matmul %37, %33, %cst_37 {dimension_numbers = #tpu.dot_dimension_numbers<[1], [0], [0], [1], [0, 0, 1, 1], [], []>} : vector<12x24xf32>, vector<24x384xf32>, vector<12x384xf32> -> vector<12x384xf32>
    %c0_38 = arith.constant 0 : index
    %c0_39 = arith.constant 0 : index
    %39 = vector.load %arg5[%c0_38, %c0_39] : memref<384x192xf32, #tpu.memory_space<vmem>>, vector<384x192xf32>
    %cst_40 = arith.constant dense<0.000000e+00> : vector<12x192xf32>
    %40 = tpu.matmul %38, %39, %cst_40 {dimension_numbers = #tpu.dot_dimension_numbers<[1], [0], [0], [1], [0, 0, 1, 1], [], []>} : vector<12x384xf32>, vector<384x192xf32>, vector<12x192xf32> -> vector<12x192xf32>
    %c0_41 = arith.constant 0 : index
    %c0_42 = arith.constant 0 : index
    %41 = vector.load %arg21[%c0_41, %c0_42] : memref<12x192xf32, #tpu.memory_space<vmem>>, vector<12x192xf32>
    tpu.vector_store %arg21[%c0_41, %c0_42], %40 {strides = array<i32>} : memref<12x192xf32, #tpu.memory_space<vmem>>, vector<12x192xf32>,
    %c0_43 = arith.constant 0 : index
    %c0_44 = arith.constant 0 : index
    %42 = vector.load %arg21[%c0_43, %c0_44] : memref<12x192xf32, #tpu.memory_space<vmem>>, vector<8x192xf32>
    %c0_45 = arith.constant 0 : index
    %c0_46 = arith.constant 0 : index
    %c0_47 = arith.constant 0 : index
    %43 = vector.load %arg6[%c0_45, %c0_46, %c0_47] : memref<5x192x128xf32, #tpu.memory_space<vmem>>, vector<1x192x128xf32>
    %44 = vector.shape_cast %43 : vector<1x192x128xf32> to vector<192x128xf32>
    %cst_48 = arith.constant dense<0.000000e+00> : vector<8x128xf32>
    %45 = tpu.matmul %42, %44, %cst_48 {dimension_numbers = #tpu.dot_dimension_numbers<[1], [0], [0], [1], [0, 0, 1, 1], [], []>} : vector<8x192xf32>, vector<192x128xf32>, vector<8x128xf32> -> vector<8x128xf32>
    %c1_49 = arith.constant 1 : index
    %c0_50 = arith.constant 0 : index
    %46 = vector.load %arg21[%c1_49, %c0_50] : memref<12x192xf32, #tpu.memory_space<vmem>>, vector<8x192xf32>
    %c1_51 = arith.constant 1 : index
    %c0_52 = arith.constant 0 : index
    %c0_53 = arith.constant 0 : index
    %47 = vector.load %arg6[%c1_51, %c0_52, %c0_53] : memref<5x192x128xf32, #tpu.memory_space<vmem>>, vector<1x192x128xf32>
    %48 = vector.shape_cast %47 : vector<1x192x128xf32> to vector<192x128xf32>
    %cst_54 = arith.constant dense<0.000000e+00> : vector<8x128xf32>
    %49 = tpu.matmul %46, %48, %cst_54 {dimension_numbers = #tpu.dot_dimension_numbers<[1], [0], [0], [1], [0, 0, 1, 1], [], []>} : vector<8x192xf32>, vector<192x128xf32>, vector<8x128xf32> -> vector<8x128xf32>
    %50 = arith.addf %45, %49 : vector<8x128xf32>
    %c2_55 = arith.constant 2 : index
    %c0_56 = arith.constant 0 : index
    %51 = vector.load %arg21[%c2_55, %c0_56] : memref<12x192xf32, #tpu.memory_space<vmem>>, vector<8x192xf32>
    %c2_57 = arith.constant 2 : index
    %c0_58 = arith.constant 0 : index
    %c0_59 = arith.constant 0 : index
    %52 = vector.load %arg6[%c2_57, %c0_58, %c0_59] : memref<5x192x128xf32, #tpu.memory_space<vmem>>, vector<1x192x128xf32>
    %53 = vector.shape_cast %52 : vector<1x192x128xf32> to vector<192x128xf32>
    %cst_60 = arith.constant dense<0.000000e+00> : vector<8x128xf32>
    %54 = tpu.matmul %51, %53, %cst_60 {dimension_numbers = #tpu.dot_dimension_numbers<[1], [0], [0], [1], [0, 0, 1, 1], [], []>} : vector<8x192xf32>, vector<192x128xf32>, vector<8x128xf32> -> vector<8x128xf32>
    %55 = arith.addf %50, %54 : vector<8x128xf32>
    %c3_61 = arith.constant 3 : index
    %c0_62 = arith.constant 0 : index
    %56 = vector.load %arg21[%c3_61, %c0_62] : memref<12x192xf32, #tpu.memory_space<vmem>>, vector<8x192xf32>
    %c3_63 = arith.constant 3 : index
    %c0_64 = arith.constant 0 : index
    %c0_65 = arith.constant 0 : index
    %57 = vector.load %arg6[%c3_63, %c0_64, %c0_65] : memref<5x192x128xf32, #tpu.memory_space<vmem>>, vector<1x192x128xf32>
    %58 = vector.shape_cast %57 : vector<1x192x128xf32> to vector<192x128xf32>
    %cst_66 = arith.constant dense<0.000000e+00> : vector<8x128xf32>
    %59 = tpu.matmul %56, %58, %cst_66 {dimension_numbers = #tpu.dot_dimension_numbers<[1], [0], [0], [1], [0, 0, 1, 1], [], []>} : vector<8x192xf32>, vector<192x128xf32>, vector<8x128xf32> -> vector<8x128xf32>
    %60 = arith.addf %55, %59 : vector<8x128xf32>
    %c4_67 = arith.constant 4 : index
    %c0_68 = arith.constant 0 : index
    %61 = vector.load %arg21[%c4_67, %c0_68] : memref<12x192xf32, #tpu.memory_space<vmem>>, vector<8x192xf32>
    %c4_69 = arith.constant 4 : index
    %c0_70 = arith.constant 0 : index
    %c0_71 = arith.constant 0 : index
    %62 = vector.load %arg6[%c4_69, %c0_70, %c0_71] : memref<5x192x128xf32, #tpu.memory_space<vmem>>, vector<1x192x128xf32>
    %63 = vector.shape_cast %62 : vector<1x192x128xf32> to vector<192x128xf32>
    %cst_72 = arith.constant dense<0.000000e+00> : vector<8x128xf32>
    %64 = tpu.matmul %61, %63, %cst_72 {dimension_numbers = #tpu.dot_dimension_numbers<[1], [0], [0], [1], [0, 0, 1, 1], [], []>} : vector<8x192xf32>, vector<192x128xf32>, vector<8x128xf32> -> vector<8x128xf32>
    %65 = arith.addf %60, %64 : vector<8x128xf32>
    %c0_73 = arith.constant 0 : index
    %c0_74 = arith.constant 0 : index
    %66 = vector.load %arg7[%c0_73, %c0_74] : memref<1x128xf32, #tpu.memory_space<vmem>>, vector<1x128xf32>
    %67 = vector.broadcast %66 : vector<1x128xf32> to vector<8x128xf32>
    %68 = arith.addf %65, %67 : vector<8x128xf32>
    %cst_75 = arith.constant 0.000000e+00 : f32
    %69 = vector.broadcast %cst_75 : f32 to vector<8x128xf32>
    %70 = arith.maximumf %68, %69 : vector<8x128xf32>
    %c0_76 = arith.constant 0 : index
    %c0_77 = arith.constant 0 : index
    %c0_78 = arith.constant 0 : index
    %71 = vector.load %arg17[%c0_76, %c0_77, %c0_78] : memref<1x8x128xf32, #tpu.memory_space<vmem>>, vector<1x8x128xf32>
    %72 = vector.shape_cast %71 : vector<1x8x128xf32> to vector<8x128xf32>
    %73 = vector.shape_cast %70 : vector<8x128xf32> to vector<1x8x128xf32>
    tpu.vector_store %arg17[%c0_76, %c0_77, %c0_78], %73 {strides = array<i32>} : memref<1x8x128xf32, #tpu.memory_space<vmem>>, vector<1x8x128xf32>,
    %c0_79 = arith.constant 0 : index
    %c0_80 = arith.constant 0 : index
    %74 = vector.load %arg8[%c0_79, %c0_80] : memref<4x8xf32, #tpu.memory_space<vmem>>, vector<4x8xf32>
    %cst_81 = arith.constant dense<0.000000e+00> : vector<4x128xf32>
    %75 = tpu.matmul %74, %70, %cst_81 {dimension_numbers = #tpu.dot_dimension_numbers<[1], [0], [0], [1], [0, 0, 1, 1], [], []>} : vector<4x8xf32>, vector<8x128xf32>, vector<4x128xf32> -> vector<4x128xf32>
    %c0_82 = arith.constant 0 : index
    %c0_83 = arith.constant 0 : index
    %76 = vector.load %arg9[%c0_82, %c0_83] : memref<128x64xf32, #tpu.memory_space<vmem>>, vector<128x64xf32>
    %cst_84 = arith.constant dense<0.000000e+00> : vector<4x64xf32>
    %77 = tpu.matmul %75, %76, %cst_84 {dimension_numbers = #tpu.dot_dimension_numbers<[1], [0], [0], [1], [0, 0, 1, 1], [], []>} : vector<4x128xf32>, vector<128x64xf32>, vector<4x64xf32> -> vector<4x64xf32>
    %c0_85 = arith.constant 0 : index
    %c0_86 = arith.constant 0 : index
    %78 = vector.load %arg22[%c0_85, %c0_86] : memref<4x64xf32, #tpu.memory_space<vmem>>, vector<4x64xf32>
    tpu.vector_store %arg22[%c0_85, %c0_86], %77 {strides = array<i32>} : memref<4x64xf32, #tpu.memory_space<vmem>>, vector<4x64xf32>,
    %c0_87 = arith.constant 0 : index
    %c0_88 = arith.constant 0 : index
    %79 = vector.load %arg22[%c0_87, %c0_88] : memref<4x64xf32, #tpu.memory_space<vmem>>, vector<1x64xf32>
    %c0_89 = arith.constant 0 : index
    %c0_90 = arith.constant 0 : index
    %c0_91 = arith.constant 0 : index
    %80 = vector.load %arg10[%c0_89, %c0_90, %c0_91] : memref<4x64x128xf32, #tpu.memory_space<vmem>>, vector<1x64x128xf32>
    %81 = vector.shape_cast %80 : vector<1x64x128xf32> to vector<64x128xf32>
    %cst_92 = arith.constant dense<0.000000e+00> : vector<1x128xf32>
    %82 = tpu.matmul %79, %81, %cst_92 {dimension_numbers = #tpu.dot_dimension_numbers<[1], [0], [0], [1], [0, 0, 1, 1], [], []>} : vector<1x64xf32>, vector<64x128xf32>, vector<1x128xf32> -> vector<1x128xf32>
    %c1_93 = arith.constant 1 : index
    %c0_94 = arith.constant 0 : index
    %83 = vector.load %arg22[%c1_93, %c0_94] : memref<4x64xf32, #tpu.memory_space<vmem>>, vector<1x64xf32>
    %c1_95 = arith.constant 1 : index
    %c0_96 = arith.constant 0 : index
    %c0_97 = arith.constant 0 : index
    %84 = vector.load %arg10[%c1_95, %c0_96, %c0_97] : memref<4x64x128xf32, #tpu.memory_space<vmem>>, vector<1x64x128xf32>
    %85 = vector.shape_cast %84 : vector<1x64x128xf32> to vector<64x128xf32>
    %cst_98 = arith.constant dense<0.000000e+00> : vector<1x128xf32>
    %86 = tpu.matmul %83, %85, %cst_98 {dimension_numbers = #tpu.dot_dimension_numbers<[1], [0], [0], [1], [0, 0, 1, 1], [], []>} : vector<1x64xf32>, vector<64x128xf32>, vector<1x128xf32> -> vector<1x128xf32>
    %87 = arith.addf %82, %86 : vector<1x128xf32>
    %c2_99 = arith.constant 2 : index
    %c0_100 = arith.constant 0 : index
    %88 = vector.load %arg22[%c2_99, %c0_100] : memref<4x64xf32, #tpu.memory_space<vmem>>, vector<1x64xf32>
    %c2_101 = arith.constant 2 : index
    %c0_102 = arith.constant 0 : index
    %c0_103 = arith.constant 0 : index
    %89 = vector.load %arg10[%c2_101, %c0_102, %c0_103] : memref<4x64x128xf32, #tpu.memory_space<vmem>>, vector<1x64x128xf32>
    %90 = vector.shape_cast %89 : vector<1x64x128xf32> to vector<64x128xf32>
    %cst_104 = arith.constant dense<0.000000e+00> : vector<1x128xf32>
    %91 = tpu.matmul %88, %90, %cst_104 {dimension_numbers = #tpu.dot_dimension_numbers<[1], [0], [0], [1], [0, 0, 1, 1], [], []>} : vector<1x64xf32>, vector<64x128xf32>, vector<1x128xf32> -> vector<1x128xf32>
    %92 = arith.addf %87, %91 : vector<1x128xf32>
    %c3_105 = arith.constant 3 : index
    %c0_106 = arith.constant 0 : index
    %93 = vector.load %arg22[%c3_105, %c0_106] : memref<4x64xf32, #tpu.memory_space<vmem>>, vector<1x64xf32>
    %c3_107 = arith.constant 3 : index
    %c0_108 = arith.constant 0 : index
    %c0_109 = arith.constant 0 : index
    %94 = vector.load %arg10[%c3_107, %c0_108, %c0_109] : memref<4x64x128xf32, #tpu.memory_space<vmem>>, vector<1x64x128xf32>
    %95 = vector.shape_cast %94 : vector<1x64x128xf32> to vector<64x128xf32>
    %cst_110 = arith.constant dense<0.000000e+00> : vector<1x128xf32>
    %96 = tpu.matmul %93, %95, %cst_110 {dimension_numbers = #tpu.dot_dimension_numbers<[1], [0], [0], [1], [0, 0, 1, 1], [], []>} : vector<1x64xf32>, vector<64x128xf32>, vector<1x128xf32> -> vector<1x128xf32>
    %97 = arith.addf %92, %96 : vector<1x128xf32>
    %c0_111 = arith.constant 0 : index
    %c0_112 = arith.constant 0 : index
    %98 = vector.load %arg11[%c0_111, %c0_112] : memref<1x128xf32, #tpu.memory_space<vmem>>, vector<1x128xf32>
    %99 = arith.addf %97, %98 : vector<1x128xf32>
    %cst_113 = arith.constant 0.000000e+00 : f32
    %100 = vector.broadcast %cst_113 : f32 to vector<1x128xf32>
    %101 = arith.maximumf %99, %100 : vector<1x128xf32>
    %c0_114 = arith.constant 0 : index
    %c0_115 = arith.constant 0 : index
    %c0_116 = arith.constant 0 : index
    %102 = vector.load %arg18[%c0_114, %c0_115, %c0_116] : memref<1x1x128xf32, #tpu.memory_space<vmem>>, vector<1x1x128xf32>
    %103 = vector.shape_cast %102 : vector<1x1x128xf32> to vector<1x128xf32>
    %104 = vector.shape_cast %101 : vector<1x128xf32> to vector<1x1x128xf32>
    tpu.vector_store %arg18[%c0_114, %c0_115, %c0_116], %104 {strides = array<i32>} : memref<1x1x128xf32, #tpu.memory_space<vmem>>, vector<1x1x128xf32>,
    %c0_117 = arith.constant 0 : index
    %c0_118 = arith.constant 0 : index
    %105 = vector.load %arg12[%c0_117, %c0_118] : memref<128x128xf32, #tpu.memory_space<vmem>>, vector<128x128xf32>
    %cst_119 = arith.constant dense<0.000000e+00> : vector<1x128xf32>
    %106 = tpu.matmul %101, %105, %cst_119 {dimension_numbers = #tpu.dot_dimension_numbers<[1], [0], [0], [1], [0, 0, 1, 1], [], []>} : vector<1x128xf32>, vector<128x128xf32>, vector<1x128xf32> -> vector<1x128xf32>
    %c0_120 = arith.constant 0 : index
    %c0_121 = arith.constant 0 : index
    %107 = vector.load %arg13[%c0_120, %c0_121] : memref<1x128xf32, #tpu.memory_space<vmem>>, vector<1x128xf32>
    %108 = arith.addf %106, %107 : vector<1x128xf32>
    %cst_122 = arith.constant 0.000000e+00 : f32
    %109 = vector.broadcast %cst_122 : f32 to vector<1x128xf32>
    %110 = arith.maximumf %108, %109 : vector<1x128xf32>
    %c0_123 = arith.constant 0 : index
    %c0_124 = arith.constant 0 : index
    %c0_125 = arith.constant 0 : index
    %111 = vector.load %arg19[%c0_123, %c0_124, %c0_125] : memref<1x1x128xf32, #tpu.memory_space<vmem>>, vector<1x1x128xf32>
    %112 = vector.shape_cast %111 : vector<1x1x128xf32> to vector<1x128xf32>
    %113 = vector.shape_cast %110 : vector<1x128xf32> to vector<1x1x128xf32>
    tpu.vector_store %arg19[%c0_123, %c0_124, %c0_125], %113 {strides = array<i32>} : memref<1x1x128xf32, #tpu.memory_space<vmem>>, vector<1x1x128xf32>,
    %c0_126 = arith.constant 0 : index
    %c0_127 = arith.constant 0 : index
    %114 = vector.load %arg14[%c0_126, %c0_127] : memref<128x128xf32, #tpu.memory_space<vmem>>, vector<128x128xf32>
    %cst_128 = arith.constant dense<0.000000e+00> : vector<1x128xf32>
    %115 = tpu.matmul %110, %114, %cst_128 {dimension_numbers = #tpu.dot_dimension_numbers<[1], [0], [0], [1], [0, 0, 1, 1], [], []>} : vector<1x128xf32>, vector<128x128xf32>, vector<1x128xf32> -> vector<1x128xf32>
    %c0_129 = arith.constant 0 : index
    %c0_130 = arith.constant 0 : index
    %116 = vector.load %arg15[%c0_129, %c0_130] : memref<1x128xf32, #tpu.memory_space<vmem>>, vector<1x128xf32>
    %117 = arith.addf %115, %116 : vector<1x128xf32>
    %c0_131 = arith.constant 0 : index
    %c0_132 = arith.constant 0 : index
    %c0_133 = arith.constant 0 : index
    %118 = vector.load %arg20[%c0_131, %c0_132, %c0_133] : memref<1x1x128xf32, #tpu.memory_space<vmem>>, vector<1x1x128xf32>
    %119 = vector.shape_cast %118 : vector<1x1x128xf32> to vector<1x128xf32>
    %120 = vector.shape_cast %117 : vector<1x128xf32> to vector<1x1x128xf32>
    tpu.vector_store %arg20[%c0_131, %c0_132, %c0_133], %120 {strides = array<i32>} : memref<1x1x128xf32, #tpu.memory_space<vmem>>, vector<1x1x128xf32>,
    return
  }
  func.func @transform_0(%arg0: i32) -> (i32, i32, i32) {
    %c0_i32 = arith.constant 0 : i32
    %c0_i32_0 = arith.constant 0 : i32
    %c0_i32_1 = arith.constant 0 : i32
    return %arg0, %c0_i32, %c0_i32_0 : i32, i32, i32
  }
  func.func @transform_1(%arg0: i32) -> (i32, i32, i32) {
    %c0_i32 = arith.constant 0 : i32
    %c0_i32_0 = arith.constant 0 : i32
    %c0_i32_1 = arith.constant 0 : i32
    %c0_i32_2 = arith.constant 0 : i32
    return %c0_i32, %c0_i32_0, %c0_i32_1 : i32, i32, i32
  }
  func.func @transform_2(%arg0: i32) -> (i32, i32) {
    %c0_i32 = arith.constant 0 : i32
    %c0_i32_0 = arith.constant 0 : i32
    %c0_i32_1 = arith.constant 0 : i32
    return %c0_i32, %c0_i32_0 : i32, i32
  }
  func.func @transform_3(%arg0: i32) -> (i32, i32) {
    %c0_i32 = arith.constant 0 : i32
    %c0_i32_0 = arith.constant 0 : i32
    %c0_i32_1 = arith.constant 0 : i32
    return %c0_i32, %c0_i32_0 : i32, i32
  }
  func.func @transform_4(%arg0: i32) -> (i32, i32) {
    %c0_i32 = arith.constant 0 : i32
    %c0_i32_0 = arith.constant 0 : i32
    %c0_i32_1 = arith.constant 0 : i32
    return %c0_i32, %c0_i32_0 : i32, i32
  }
  func.func @transform_5(%arg0: i32) -> (i32, i32, i32) {
    %c0_i32 = arith.constant 0 : i32
    %c0_i32_0 = arith.constant 0 : i32
    %c0_i32_1 = arith.constant 0 : i32
    %c0_i32_2 = arith.constant 0 : i32
    return %c0_i32, %c0_i32_0, %c0_i32_1 : i32, i32, i32
  }
  func.func @transform_6(%arg0: i32) -> (i32, i32) {
    %c0_i32 = arith.constant 0 : i32
    %c0_i32_0 = arith.constant 0 : i32
    %c0_i32_1 = arith.constant 0 : i32
    return %c0_i32, %c0_i32_0 : i32, i32
  }
  func.func @transform_7(%arg0: i32) -> (i32, i32) {
    %c0_i32 = arith.constant 0 : i32
    %c0_i32_0 = arith.constant 0 : i32
    %c0_i32_1 = arith.constant 0 : i32
    return %c0_i32, %c0_i32_0 : i32, i32
  }
  func.func @transform_8(%arg0: i32) -> (i32, i32) {
    %c0_i32 = arith.constant 0 : i32
    %c0_i32_0 = arith.constant 0 : i32
    %c0_i32_1 = arith.constant 0 : i32
    return %c0_i32, %c0_i32_0 : i32, i32
  }
  func.func @transform_9(%arg0: i32) -> (i32, i32, i32) {
    %c0_i32 = arith.constant 0 : i32
    %c0_i32_0 = arith.constant 0 : i32
    %c0_i32_1 = arith.constant 0 : i32
    %c0_i32_2 = arith.constant 0 : i32
    return %c0_i32, %c0_i32_0, %c0_i32_1 : i32, i32, i32
  }
  func.func @transform_10(%arg0: i32) -> (i32, i32) {
    %c0_i32 = arith.constant 0 : i32
    %c0_i32_0 = arith.constant 0 : i32
    %c0_i32_1 = arith.constant 0 : i32
    return %c0_i32, %c0_i32_0 : i32, i32
  }
  func.func @transform_11(%arg0: i32) -> (i32, i32) {
    %c0_i32 = arith.constant 0 : i32
    %c0_i32_0 = arith.constant 0 : i32
    %c0_i32_1 = arith.constant 0 : i32
    return %c0_i32, %c0_i32_0 : i32, i32
  }
  func.func @transform_12(%arg0: i32) -> (i32, i32) {
    %c0_i32 = arith.constant 0 : i32
    %c0_i32_0 = arith.constant 0 : i32
    %c0_i32_1 = arith.constant 0 : i32
    return %c0_i32, %c0_i32_0 : i32, i32
  }
  func.func @transform_13(%arg0: i32) -> (i32, i32) {
    %c0_i32 = arith.constant 0 : i32
    %c0_i32_0 = arith.constant 0 : i32
    %c0_i32_1 = arith.constant 0 : i32
    return %c0_i32, %c0_i32_0 : i32, i32
  }
  func.func @transform_14(%arg0: i32) -> (i32, i32) {
    %c0_i32 = arith.constant 0 : i32
    %c0_i32_0 = arith.constant 0 : i32
    %c0_i32_1 = arith.constant 0 : i32
    return %c0_i32, %c0_i32_0 : i32, i32
  }
  func.func @transform_15(%arg0: i32) -> (i32, i32, i32) {
    %c0_i32 = arith.constant 0 : i32
    %c0_i32_0 = arith.constant 0 : i32
    %c0_i32_1 = arith.constant 0 : i32
    return %arg0, %c0_i32, %c0_i32_0 : i32, i32, i32
  }
  func.func @transform_16(%arg0: i32) -> (i32, i32, i32) {
    %c0_i32 = arith.constant 0 : i32
    %c0_i32_0 = arith.constant 0 : i32
    %c0_i32_1 = arith.constant 0 : i32
    return %arg0, %c0_i32, %c0_i32_0 : i32, i32, i32
  }
  func.func @transform_17(%arg0: i32) -> (i32, i32, i32) {
    %c0_i32 = arith.constant 0 : i32
    %c0_i32_0 = arith.constant 0 : i32
    %c0_i32_1 = arith.constant 0 : i32
    return %arg0, %c0_i32, %c0_i32_0 : i32, i32, i32
  }
  func.func @transform_18(%arg0: i32) -> (i32, i32, i32) {
    %c0_i32 = arith.constant 0 : i32
    %c0_i32_0 = arith.constant 0 : i32
    %c0_i32_1 = arith.constant 0 : i32
    return %arg0, %c0_i32, %c0_i32_0 : i32, i32, i32
  }
  func.func @transform_19(%arg0: i32) -> (i32, i32, i32) {
    %c0_i32 = arith.constant 0 : i32
    %c0_i32_0 = arith.constant 0 : i32
    %c0_i32_1 = arith.constant 0 : i32
    return %arg0, %c0_i32, %c0_i32_0 : i32, i32, i32
  }
}

</mosaic_0001>

<llo_original>
// kernel: lenet_forward.1
$region0: #{lenet_forward.1}
  #allocation0 [shape = 'u32[]', space=smem, size = 0x4, offset = 0x4, fixed_abs, tag = 'smem constant byte address 0x4 - core index']
  #allocation1 [shape = 'u32[72,128]{1,0:T(1,128)}', space=vmem, size = 0x9000, scoped, tag = 'internal scratch']
  #allocation2 [shape = 'f32[12,192]{1,0:T(8,128)}', space=vmem, size = 0x4000, scoped, tag = 'scratch operand']
  #allocation3 [shape = 'f32[4,64]{1,0:T(4,128)}', space=vmem, size = 0x800, scoped, tag = 'scratch operand']
  %s0 = inlined_call_operand.vmem [shape: f32[2,28,28], index: 0, kind: input, shape index: {}]
  %s1 = inlined_call_operand.hbm [shape: f32[5,28,384], index: 1, kind: input, shape index: {}]
  %s2 = inlined_call_operand.vmem [shape: f32[1,384], index: 2, kind: input, shape index: {}]
  %s3 = inlined_call_operand.vmem [shape: f32[12,24], index: 3, kind: input, shape index: {}]
  %s4 = inlined_call_operand.hbm [shape: f32[384,192], index: 4, kind: input, shape index: {}]
  %s5 = inlined_call_operand.hbm [shape: f32[5,192,128], index: 5, kind: input, shape index: {}]
  %s6 = inlined_call_operand.vmem [shape: f32[1,128], index: 6, kind: input, shape index: {}]
  %s7 = inlined_call_operand.vmem [shape: f32[4,8], index: 7, kind: input, shape index: {}]
  %s8 = inlined_call_operand.vmem [shape: f32[128,64], index: 8, kind: input, shape index: {}]
  %s9 = inlined_call_operand.hbm [shape: f32[4,64,128], index: 9, kind: input, shape index: {}]
  %s10 = inlined_call_operand.vmem [shape: f32[1,128], index: 10, kind: input, shape index: {}]
  %s11 = inlined_call_operand.hbm [shape: f32[128,128], index: 11, kind: input, shape index: {}]
  %s12 = inlined_call_operand.vmem [shape: f32[1,128], index: 12, kind: input, shape index: {}]
  %s13 = inlined_call_operand.hbm [shape: f32[128,128], index: 13, kind: input, shape index: {}]
  %s14 = inlined_call_operand.vmem [shape: f32[1,128], index: 14, kind: input, shape index: {}]
  %s15 = inlined_call_operand.vmem [shape: f32[2,24,384], index: 15, kind: output, shape index: {0}]
  %s16 = inlined_call_operand.vmem [shape: f32[2,8,128], index: 16, kind: output, shape index: {1}]
  %s17 = inlined_call_operand.hbm [shape: f32[2,1,128], index: 17, kind: output, shape index: {2}]
  %s18 = inlined_call_operand.hbm [shape: f32[2,1,128], index: 18, kind: output, shape index: {3}]
  %s19 = inlined_call_operand.hbm [shape: f32[2,1,128], index: 19, kind: output, shape index: {4}]
  %20 = xla_tuple %s15, %s16, %s17, %s18, %s19
  %s21 = sld [smem:[#allocation0]]
  $region149: #{lenet_forward.1} parent=0
    _
  %s23 = ssub.s32 1, %s21
  %s24 = scalar_select 0, %s23, %s21
  $region1: #{lenet_forward.1} parent=0
    #allocation4 [shape = 'u8[245760]{0}', space=vmem, size = 0x3c000, scoped, tag = 'input window, operand 1, single buffered']
    #allocation5 [shape = 's32[2]{0}', space=sflag, size = 0x8, scoped, tag = 'scoped memory for lenet_forward.1']
    #allocation6 [shape = 's32[2]{0}', space=sflag, size = 0x8, scoped, tag = 'scoped memory for lenet_forward.1']
    #allocation7 [shape = 'u8[393216]{0}', space=vmem, size = 0x60000, scoped, tag = 'input window, operand 4, single buffered']
    #allocation8 [shape = 's32[1]{0}', space=sflag, size = 0x4, scoped, tag = 'scoped memory for lenet_forward.1']
    #allocation9 [shape = 'u8[491520]{0}', space=vmem, size = 0x78000, scoped, tag = 'input window, operand 5, single buffered']
    #allocation10 [shape = 'u8[131072]{0}', space=vmem, size = 0x20000, scoped, tag = 'input window, operand 9, single buffered']
    #allocation11 [shape = 's32[1]{0}', space=sflag, size = 0x4, scoped, tag = 'scoped memory for lenet_forward.1']
    #allocation12 [shape = 'u8[65536]{0}', space=vmem, size = 0x10000, scoped, tag = 'input window, operand 11, single buffered']
    #allocation13 [shape = 'u8[65536]{0}', space=vmem, size = 0x10000, scoped, tag = 'input window, operand 13, single buffered']
    #allocation14 [shape = 's32[1]{0}', space=sflag, size = 0x4, scoped, tag = 'scoped memory for lenet_forward.1']
    #allocation15 [shape = 'u8[1024]{0}', space=vmem, size = 0x400, scoped, tag = 'output window, operand 2']
    #allocation16 [shape = 'u8[1024]{0}', space=vmem, size = 0x400, scoped, tag = 'output window, operand 3']
    #allocation17 [shape = 's32[2]{0}', space=sflag, size = 0x8, scoped, tag = 'scoped memory for lenet_forward.1']
    #allocation18 [shape = 'u8[1024]{0}', space=vmem, size = 0x400, scoped, tag = 'output window, operand 4']
    %25 = vsyncpa [#allocation5], 0
    %26 = vsyncpa [#allocation8], 0
    %27 = vsyncpa [#allocation11], 0
    %28 = vsyncpa [#allocation14], 0
    %29 = vsyncpa [#allocation6], 0
    %s30 = scalar_lea.sflag [#allocation6], 1
    %31 = vsyncpa %s30, 0
    %32 = vsyncpa [#allocation17], 0
    %s33 = scalar_lea.sflag [#allocation17], 1
    %34 = vsyncpa %s33, 0
    loop: start=0, step=1, limit=4
    $region2: #{lenet_forward.1} parent=1 // loop_pre_header
      _
    $region3: #{lenet_forward.1} parent=1 // loop_header
      %s36 = sphi 0, %s40
      %p37 = scmp.ge.s32.totalorder %s36, 4
      %s46 = sphi 0, %s48
      %s49 = sphi 0, %s46
      %s50 = sphi 0, %s49
      %s66 = sphi 0, %s50
      %s70 = sphi 0, %s70
      %s72 = sphi 0, %s70
      %s73 = sphi 0, %s72
      %s87 = sphi 0, %s73
      %s91 = sphi 0, %s91
      %s93 = sphi 0, %s91
      %s94 = sphi 0, %s93
      %s108 = sphi 0, %s94
      %s112 = sphi 0, %s112
      %s114 = sphi 0, %s112
      %s115 = sphi 0, %s114
      %s129 = sphi 0, %s115
      %s133 = sphi 0, %s133
      %s135 = sphi 0, %s133
      %s136 = sphi 0, %s135
      %s150 = sphi 0, %s136
      %s154 = sphi 0, %s154
      %s156 = sphi 0, %s154
      %s157 = sphi 0, %s156
      %s171 = sphi 0, %s157
      %s175 = sphi 0, %s175
      %s177 = sphi 0, %s175
      %s178 = sphi 0, %s177
      %s192 = sphi 0, %s178
      %s196 = sphi 0, %s196
      %s198 = sphi 0, %s196
      %s199 = sphi 0, %s198
      %s213 = sphi 0, %s199
      %s217 = sphi 0, %s217
      %s219 = sphi 0, %s217
      %s220 = sphi 0, %s219
      %s234 = sphi 0, %s220
      %s238 = sphi 0, %s238
      %s240 = sphi 0, %s238
      %s241 = sphi 0, %s240
      %s255 = sphi 0, %s241
      %s259 = sphi 0, %s259
      %s261 = sphi 0, %s259
      %s262 = sphi 0, %s261
      %s276 = sphi 0, %s262
      %s280 = sphi 0, %s280
      %s282 = sphi 0, %s280
      %s283 = sphi 0, %s282
      %s297 = sphi 0, %s283
      %s301 = sphi 0, %s301
      %s303 = sphi 0, %s301
      %s304 = sphi 0, %s303
      %s318 = sphi 0, %s304
      %s322 = sphi 0, %s322
      %s324 = sphi 0, %s322
      %s325 = sphi 0, %s324
      %s339 = sphi 0, %s325
      %s343 = sphi 0, %s343
      %s345 = sphi 0, %s343
      %s346 = sphi 0, %s345
      %s360 = sphi 0, %s346
      %s366 = sphi 0, %s368
      %s369 = sphi 0, %s366
      %s370 = sphi 0, %s369
      %s386 = sphi 0, %s370
      %s392 = sphi 0, %s394
      %s395 = sphi 0, %s392
      %s396 = sphi 0, %s395
      %s412 = sphi 0, %s396
      %s418 = sphi 0, %s420
      %s421 = sphi 0, %s418
      %s422 = sphi 0, %s421
      %s438 = sphi 0, %s422
      %s444 = sphi 0, %s446
      %s447 = sphi 0, %s444
      %s448 = sphi 0, %s447
      %s464 = sphi 0, %s448
      %s470 = sphi 0, %s472
      %s473 = sphi 0, %s470
      %s474 = sphi 0, %s473
      %s490 = sphi 0, %s474
    $region4: #{lenet_forward.1} parent=1 // loop_header_branch
      %39 = sbr.rel (%p37) target = $region8
    $region5: #{lenet_forward.1} parent=1 // loop_body
      %s41 = ssub.s32 %s36, 1
      %s42 = ssub.s32 %s36, 2
      %s43 = sadd.s32 %s36, 1
      %s44 = ssub.s32 %s36, %s43
      %p45 = scmp.eq.s32.totalorder %s44, 0
      %s47 = sadd.s32 %s46, 1
      %s48 = scalar_select %p45, %s46, %s47
      %p51 = pneg %p45
      %p52 = scmp.eq.s32.totalorder %s36, 1
      %p53 = por %p51, %p52
      %p54 = scmp.ne.s32.totalorder %s46, %s49
      %p55 = scmp.eq.s32.totalorder %s36, 0
      %p56 = por %p54, %p55
      %p57 = scmp.ne.s32.totalorder %s46, %s49
      %p58 = scmp.eq.s32.totalorder %s41, 1
      %p59 = por %p57, %p58
      %p60 = scmp.ne.s32.totalorder %s49, %s50
      %p61 = scmp.eq.s32.totalorder %s41, 0
      %p62 = por %p60, %p61
      %p63 = scmp.ne.s32.totalorder %s49, %s50
      %p64 = scmp.eq.s32.totalorder %s42, 1
      %p65 = por %p63, %p64
      %p67 = scmp.ne.s32.totalorder %s50, %s66
      %p68 = scmp.eq.s32.totalorder %s42, 0
      %p69 = por %p67, %p68
      %s71 = sadd.s32 %s70, 1
      %p74 = scmp.eq.s32.totalorder %s36, 1
      %p75 = scmp.ne.s32.totalorder %s70, %s72
      %p76 = scmp.eq.s32.totalorder %s36, 0
      %p77 = por %p75, %p76
      %p78 = scmp.ne.s32.totalorder %s70, %s72
      %p79 = scmp.eq.s32.totalorder %s41, 1
      %p80 = por %p78, %p79
      %p81 = scmp.ne.s32.totalorder %s72, %s73
      %p82 = scmp.eq.s32.totalorder %s41, 0
      %p83 = por %p81, %p82
      %p84 = scmp.ne.s32.totalorder %s72, %s73
      %p85 = scmp.eq.s32.totalorder %s42, 1
      %p86 = por %p84, %p85
      %p88 = scmp.ne.s32.totalorder %s73, %s87
      %p89 = scmp.eq.s32.totalorder %s42, 0
      %p90 = por %p88, %p89
      %s92 = sadd.s32 %s91, 1
      %p95 = scmp.eq.s32.totalorder %s36, 1
      %p96 = scmp.ne.s32.totalorder %s91, %s93
      %p97 = scmp.eq.s32.totalorder %s36, 0
      %p98 = por %p96, %p97
      %p99 = scmp.ne.s32.totalorder %s91, %s93
      %p100 = scmp.eq.s32.totalorder %s41, 1
      %p101 = por %p99, %p100
      %p102 = scmp.ne.s32.totalorder %s93, %s94
      %p103 = scmp.eq.s32.totalorder %s41, 0
      %p104 = por %p102, %p103
      %p105 = scmp.ne.s32.totalorder %s93, %s94
      %p106 = scmp.eq.s32.totalorder %s42, 1
      %p107 = por %p105, %p106
      %p109 = scmp.ne.s32.totalorder %s94, %s108
      %p110 = scmp.eq.s32.totalorder %s42, 0
      %p111 = por %p109, %p110
      %s113 = sadd.s32 %s112, 1
      %p116 = scmp.eq.s32.totalorder %s36, 1
      %p117 = scmp.ne.s32.totalorder %s112, %s114
      %p118 = scmp.eq.s32.totalorder %s36, 0
      %p119 = por %p117, %p118
      %p120 = scmp.ne.s32.totalorder %s112, %s114
      %p121 = scmp.eq.s32.totalorder %s41, 1
      %p122 = por %p120, %p121
      %p123 = scmp.ne.s32.totalorder %s114, %s115
      %p124 = scmp.eq.s32.totalorder %s41, 0
      %p125 = por %p123, %p124
      %p126 = scmp.ne.s32.totalorder %s114, %s115
      %p127 = scmp.eq.s32.totalorder %s42, 1
      %p128 = por %p126, %p127
      %p130 = scmp.ne.s32.totalorder %s115, %s129
      %p131 = scmp.eq.s32.totalorder %s42, 0
      %p132 = por %p130, %p131
      %s134 = sadd.s32 %s133, 1
      %p137 = scmp.eq.s32.totalorder %s36, 1
      %p138 = scmp.ne.s32.totalorder %s133, %s135
      %p139 = scmp.eq.s32.totalorder %s36, 0
      %p140 = por %p138, %p139
      %p141 = scmp.ne.s32.totalorder %s133, %s135
      %p142 = scmp.eq.s32.totalorder %s41, 1
      %p143 = por %p141, %p142
      %p144 = scmp.ne.s32.totalorder %s135, %s136
      %p145 = scmp.eq.s32.totalorder %s41, 0
      %p146 = por %p144, %p145
      %p147 = scmp.ne.s32.totalorder %s135, %s136
      %p148 = scmp.eq.s32.totalorder %s42, 1
      %p149 = por %p147, %p148
      %p151 = scmp.ne.s32.totalorder %s136, %s150
      %p152 = scmp.eq.s32.totalorder %s42, 0
      %p153 = por %p151, %p152
      %s155 = sadd.s32 %s154, 1
      %p158 = scmp.eq.s32.totalorder %s36, 1
      %p159 = scmp.ne.s32.totalorder %s154, %s156
      %p160 = scmp.eq.s32.totalorder %s36, 0
      %p161 = por %p159, %p160
      %p162 = scmp.ne.s32.totalorder %s154, %s156
      %p163 = scmp.eq.s32.totalorder %s41, 1
      %p164 = por %p162, %p163
      %p165 = scmp.ne.s32.totalorder %s156, %s157
      %p166 = scmp.eq.s32.totalorder %s41, 0
      %p167 = por %p165, %p166
      %p168 = scmp.ne.s32.totalorder %s156, %s157
      %p169 = scmp.eq.s32.totalorder %s42, 1
      %p170 = por %p168, %p169
      %p172 = scmp.ne.s32.totalorder %s157, %s171
      %p173 = scmp.eq.s32.totalorder %s42, 0
      %p174 = por %p172, %p173
      %s176 = sadd.s32 %s175, 1
      %p179 = scmp.eq.s32.totalorder %s36, 1
      %p180 = scmp.ne.s32.totalorder %s175, %s177
      %p181 = scmp.eq.s32.totalorder %s36, 0
      %p182 = por %p180, %p181
      %p183 = scmp.ne.s32.totalorder %s175, %s177
      %p184 = scmp.eq.s32.totalorder %s41, 1
      %p185 = por %p183, %p184
      %p186 = scmp.ne.s32.totalorder %s177, %s178
      %p187 = scmp.eq.s32.totalorder %s41, 0
      %p188 = por %p186, %p187
      %p189 = scmp.ne.s32.totalorder %s177, %s178
      %p190 = scmp.eq.s32.totalorder %s42, 1
      %p191 = por %p189, %p190
      %p193 = scmp.ne.s32.totalorder %s178, %s192
      %p194 = scmp.eq.s32.totalorder %s42, 0
      %p195 = por %p193, %p194
      %s197 = sadd.s32 %s196, 1
      %p200 = scmp.eq.s32.totalorder %s36, 1
      %p201 = scmp.ne.s32.totalorder %s196, %s198
      %p202 = scmp.eq.s32.totalorder %s36, 0
      %p203 = por %p201, %p202
      %p204 = scmp.ne.s32.totalorder %s196, %s198
      %p205 = scmp.eq.s32.totalorder %s41, 1
      %p206 = por %p204, %p205
      %p207 = scmp.ne.s32.totalorder %s198, %s199
      %p208 = scmp.eq.s32.totalorder %s41, 0
      %p209 = por %p207, %p208
      %p210 = scmp.ne.s32.totalorder %s198, %s199
      %p211 = scmp.eq.s32.totalorder %s42, 1
      %p212 = por %p210, %p211
      %p214 = scmp.ne.s32.totalorder %s199, %s213
      %p215 = scmp.eq.s32.totalorder %s42, 0
      %p216 = por %p214, %p215
      %s218 = sadd.s32 %s217, 1
      %p221 = scmp.eq.s32.totalorder %s36, 1
      %p222 = scmp.ne.s32.totalorder %s217, %s219
      %p223 = scmp.eq.s32.totalorder %s36, 0
      %p224 = por %p222, %p223
      %p225 = scmp.ne.s32.totalorder %s217, %s219
      %p226 = scmp.eq.s32.totalorder %s41, 1
      %p227 = por %p225, %p226
      %p228 = scmp.ne.s32.totalorder %s219, %s220
      %p229 = scmp.eq.s32.totalorder %s41, 0
      %p230 = por %p228, %p229
      %p231 = scmp.ne.s32.totalorder %s219, %s220
      %p232 = scmp.eq.s32.totalorder %s42, 1
      %p233 = por %p231, %p232
      %p235 = scmp.ne.s32.totalorder %s220, %s234
      %p236 = scmp.eq.s32.totalorder %s42, 0
      %p237 = por %p235, %p236
      %s239 = sadd.s32 %s238, 1
      %p242 = scmp.eq.s32.totalorder %s36, 1
      %p243 = scmp.ne.s32.totalorder %s238, %s240
      %p244 = scmp.eq.s32.totalorder %s36, 0
      %p245 = por %p243, %p244
      %p246 = scmp.ne.s32.totalorder %s238, %s240
      %p247 = scmp.eq.s32.totalorder %s41, 1
      %p248 = por %p246, %p247
      %p249 = scmp.ne.s32.totalorder %s240, %s241
      %p250 = scmp.eq.s32.totalorder %s41, 0
      %p251 = por %p249, %p250
      %p252 = scmp.ne.s32.totalorder %s240, %s241
      %p253 = scmp.eq.s32.totalorder %s42, 1
      %p254 = por %p252, %p253
      %p256 = scmp.ne.s32.totalorder %s241, %s255
      %p257 = scmp.eq.s32.totalorder %s42, 0
      %p258 = por %p256, %p257
      %s260 = sadd.s32 %s259, 1
      %p263 = scmp.eq.s32.totalorder %s36, 1
      %p264 = scmp.ne.s32.totalorder %s259, %s261
      %p265 = scmp.eq.s32.totalorder %s36, 0
      %p266 = por %p264, %p265
      %p267 = scmp.ne.s32.totalorder %s259, %s261
      %p268 = scmp.eq.s32.totalorder %s41, 1
      %p269 = por %p267, %p268
      %p270 = scmp.ne.s32.totalorder %s261, %s262
      %p271 = scmp.eq.s32.totalorder %s41, 0
      %p272 = por %p270, %p271
      %p273 = scmp.ne.s32.totalorder %s261, %s262
      %p274 = scmp.eq.s32.totalorder %s42, 1
      %p275 = por %p273, %p274
      %p277 = scmp.ne.s32.totalorder %s262, %s276
      %p278 = scmp.eq.s32.totalorder %s42, 0
      %p279 = por %p277, %p278
      %s281 = sadd.s32 %s280, 1
      %p284 = scmp.eq.s32.totalorder %s36, 1
      %p285 = scmp.ne.s32.totalorder %s280, %s282
      %p286 = scmp.eq.s32.totalorder %s36, 0
      %p287 = por %p285, %p286
      %p288 = scmp.ne.s32.totalorder %s280, %s282
      %p289 = scmp.eq.s32.totalorder %s41, 1
      %p290 = por %p288, %p289
      %p291 = scmp.ne.s32.totalorder %s282, %s283
      %p292 = scmp.eq.s32.totalorder %s41, 0
      %p293 = por %p291, %p292
      %p294 = scmp.ne.s32.totalorder %s282, %s283
      %p295 = scmp.eq.s32.totalorder %s42, 1
      %p296 = por %p294, %p295
      %p298 = scmp.ne.s32.totalorder %s283, %s297
      %p299 = scmp.eq.s32.totalorder %s42, 0
      %p300 = por %p298, %p299
      %s302 = sadd.s32 %s301, 1
      %p305 = scmp.eq.s32.totalorder %s36, 1
      %p306 = scmp.ne.s32.totalorder %s301, %s303
      %p307 = scmp.eq.s32.totalorder %s36, 0
      %p308 = por %p306, %p307
      %p309 = scmp.ne.s32.totalorder %s301, %s303
      %p310 = scmp.eq.s32.totalorder %s41, 1
      %p311 = por %p309, %p310
      %p312 = scmp.ne.s32.totalorder %s303, %s304
      %p313 = scmp.eq.s32.totalorder %s41, 0
      %p314 = por %p312, %p313
      %p315 = scmp.ne.s32.totalorder %s303, %s304
      %p316 = scmp.eq.s32.totalorder %s42, 1
      %p317 = por %p315, %p316
      %p319 = scmp.ne.s32.totalorder %s304, %s318
      %p320 = scmp.eq.s32.totalorder %s42, 0
      %p321 = por %p319, %p320
      %s323 = sadd.s32 %s322, 1
      %p326 = scmp.eq.s32.totalorder %s36, 1
      %p327 = scmp.ne.s32.totalorder %s322, %s324
      %p328 = scmp.eq.s32.totalorder %s36, 0
      %p329 = por %p327, %p328
      %p330 = scmp.ne.s32.totalorder %s322, %s324
      %p331 = scmp.eq.s32.totalorder %s41, 1
      %p332 = por %p330, %p331
      %p333 = scmp.ne.s32.totalorder %s324, %s325
      %p334 = scmp.eq.s32.totalorder %s41, 0
      %p335 = por %p333, %p334
      %p336 = scmp.ne.s32.totalorder %s324, %s325
      %p337 = scmp.eq.s32.totalorder %s42, 1
      %p338 = por %p336, %p337
      %p340 = scmp.ne.s32.totalorder %s325, %s339
      %p341 = scmp.eq.s32.totalorder %s42, 0
      %p342 = por %p340, %p341
      %s344 = sadd.s32 %s343, 1
      %p347 = scmp.eq.s32.totalorder %s36, 1
      %p348 = scmp.ne.s32.totalorder %s343, %s345
      %p349 = scmp.eq.s32.totalorder %s36, 0
      %p350 = por %p348, %p349
      %p351 = scmp.ne.s32.totalorder %s343, %s345
      %p352 = scmp.eq.s32.totalorder %s41, 1
      %p353 = por %p351, %p352
      %p354 = scmp.ne.s32.totalorder %s345, %s346
      %p355 = scmp.eq.s32.totalorder %s41, 0
      %p356 = por %p354, %p355
      %p357 = scmp.ne.s32.totalorder %s345, %s346
      %p358 = scmp.eq.s32.totalorder %s42, 1
      %p359 = por %p357, %p358
      %p361 = scmp.ne.s32.totalorder %s346, %s360
      %p362 = scmp.eq.s32.totalorder %s42, 0
      %p363 = por %p361, %p362
      %s364 = ssub.s32 %s36, %s43
      %p365 = scmp.eq.s32.totalorder %s364, 0
      %s367 = sadd.s32 %s366, 1
      %s368 = scalar_select %p365, %s366, %s367
      %p371 = pneg %p365
      %p372 = scmp.eq.s32.totalorder %s36, 1
      %p373 = por %p371, %p372
      %p374 = scmp.ne.s32.totalorder %s366, %s369
      %p375 = scmp.eq.s32.totalorder %s36, 0
      %p376 = por %p374, %p375
      %p377 = scmp.ne.s32.totalorder %s366, %s369
      %p378 = scmp.eq.s32.totalorder %s41, 1
      %p379 = por %p377, %p378
      %p380 = scmp.ne.s32.totalorder %s369, %s370
      %p381 = scmp.eq.s32.totalorder %s41, 0
      %p382 = por %p380, %p381
      %p383 = scmp.ne.s32.totalorder %s369, %s370
      %p384 = scmp.eq.s32.totalorder %s42, 1
      %p385 = por %p383, %p384
      %p387 = scmp.ne.s32.totalorder %s370, %s386
      %p388 = scmp.eq.s32.totalorder %s42, 0
      %p389 = por %p387, %p388
      %s390 = ssub.s32 %s36, %s43
      %p391 = scmp.eq.s32.totalorder %s390, 0
      %s393 = sadd.s32 %s392, 1
      %s394 = scalar_select %p391, %s392, %s393
      %p397 = pneg %p391
      %p398 = scmp.eq.s32.totalorder %s36, 1
      %p399 = por %p397, %p398
      %p400 = scmp.ne.s32.totalorder %s392, %s395
      %p401 = scmp.eq.s32.totalorder %s36, 0
      %p402 = por %p400, %p401
      %p403 = scmp.ne.s32.totalorder %s392, %s395
      %p404 = scmp.eq.s32.totalorder %s41, 1
      %p405 = por %p403, %p404
      %p406 = scmp.ne.s32.totalorder %s395, %s396
      %p407 = scmp.eq.s32.totalorder %s41, 0
      %p408 = por %p406, %p407
      %p409 = scmp.ne.s32.totalorder %s395, %s396
      %p410 = scmp.eq.s32.totalorder %s42, 1
      %p411 = por %p409, %p410
      %p413 = scmp.ne.s32.totalorder %s396, %s412
      %p414 = scmp.eq.s32.totalorder %s42, 0
      %p415 = por %p413, %p414
      %s416 = ssub.s32 %s36, %s43
      %p417 = scmp.eq.s32.totalorder %s416, 0
      %s419 = sadd.s32 %s418, 1
      %s420 = scalar_select %p417, %s418, %s419
      %p423 = pneg %p417
      %p424 = scmp.eq.s32.totalorder %s36, 1
      %p425 = por %p423, %p424
      %p426 = scmp.ne.s32.totalorder %s418, %s421
      %p427 = scmp.eq.s32.totalorder %s36, 0
      %p428 = por %p426, %p427
      %p429 = scmp.ne.s32.totalorder %s418, %s421
      %p430 = scmp.eq.s32.totalorder %s41, 1
      %p431 = por %p429, %p430
      %p432 = scmp.ne.s32.totalorder %s421, %s422
      %p433 = scmp.eq.s32.totalorder %s41, 0
      %p434 = por %p432, %p433
      %p435 = scmp.ne.s32.totalorder %s421, %s422
      %p436 = scmp.eq.s32.totalorder %s42, 1
      %p437 = por %p435, %p436
      %p439 = scmp.ne.s32.totalorder %s422, %s438
      %p440 = scmp.eq.s32.totalorder %s42, 0
      %p441 = por %p439, %p440
      %s442 = ssub.s32 %s36, %s43
      %p443 = scmp.eq.s32.totalorder %s442, 0
      %s445 = sadd.s32 %s444, 1
      %s446 = scalar_select %p443, %s444, %s445
      %p449 = pneg %p443
      %p450 = scmp.eq.s32.totalorder %s36, 1
      %p451 = por %p449, %p450
      %p452 = scmp.ne.s32.totalorder %s444, %s447
      %p453 = scmp.eq.s32.totalorder %s36, 0
      %p454 = por %p452, %p453
      %p455 = scmp.ne.s32.totalorder %s444, %s447
      %p456 = scmp.eq.s32.totalorder %s41, 1
      %p457 = por %p455, %p456
      %p458 = scmp.ne.s32.totalorder %s447, %s448
      %p459 = scmp.eq.s32.totalorder %s41, 0
      %p460 = por %p458, %p459
      %p461 = scmp.ne.s32.totalorder %s447, %s448
      %p462 = scmp.eq.s32.totalorder %s42, 1
      %p463 = por %p461, %p462
      %p465 = scmp.ne.s32.totalorder %s448, %s464
      %p466 = scmp.eq.s32.totalorder %s42, 0
      %p467 = por %p465, %p466
      %s468 = ssub.s32 %s36, %s43
      %p469 = scmp.eq.s32.totalorder %s468, 0
      %s471 = sadd.s32 %s470, 1
      %s472 = scalar_select %p469, %s470, %s471
      %p475 = pneg %p469
      %p476 = scmp.eq.s32.totalorder %s36, 1
      %p477 = por %p475, %p476
      %p478 = scmp.ne.s32.totalorder %s470, %s473
      %p479 = scmp.eq.s32.totalorder %s36, 0
      %p480 = por %p478, %p479
      %p481 = scmp.ne.s32.totalorder %s470, %s473
      %p482 = scmp.eq.s32.totalorder %s41, 1
      %p483 = por %p481, %p482
      %p484 = scmp.ne.s32.totalorder %s473, %s474
      %p485 = scmp.eq.s32.totalorder %s41, 0
      %p486 = por %p484, %p485
      %p487 = scmp.ne.s32.totalorder %s473, %s474
      %p488 = scmp.eq.s32.totalorder %s42, 1
      %p489 = por %p487, %p488
      %p491 = scmp.ne.s32.totalorder %s474, %s490
      %p492 = scmp.eq.s32.totalorder %s42, 0
      %p493 = por %p491, %p492
      %p494 = scmp.le.s32.totalorder 1, %s36
      %p495 = scmp.lt.s32.totalorder %s36, 3
      %p496 = pnand %p494, %p495
      %p497 = pneg %p496
      // Predicated region
      $region9: #{lenet_forward.1} parent=5 // pred_check
        _
      $region10: #{lenet_forward.1} parent=5 // pred_check_branch
        %499 = sbr.rel (%p496) target = $region12
      $region11: #{lenet_forward.1} parent=5 // pred_region
        %s500 = ssub.s32 %s36, 1
        // Predicated region
        $region13: #{lenet_forward.1} parent=11 // pred_check
          %p501 = pneg %p83
        $region14: #{lenet_forward.1} parent=11 // pred_check_branch
          %503 = sbr.rel (%p501) target = $region16
        $region15: #{lenet_forward.1} parent=11 // pred_region
          %505 = vsyncadd [#allocation5], 0
          %s506 = sshll.u32 %s1, 4
          %s507 = int_to_ptr.hbm [resolvable:$true] %s506
          %s508 = sshll.u32 [#allocation4], 4
          %s509 = int_to_ptr.vmem [resolvable:$true] %s508
          %514 = dma.hbm_to_vmem [thread:$0]  %s507, 7680, %s509, [#allocation5], 384, 384, 24
        $region16: #{lenet_forward.1} parent=11 // pred_fallthru
          _
        // Predicated region
        $region17: #{lenet_forward.1} parent=11 // pred_check
          %p515 = pneg %p104
        $region18: #{lenet_forward.1} parent=11 // pred_check_branch
          %517 = sbr.rel (%p515) target = $region20
        $region19: #{lenet_forward.1} parent=11 // pred_region
          _
        $region20: #{lenet_forward.1} parent=11 // pred_fallthru
          _
        // Predicated region
        $region21: #{lenet_forward.1} parent=11 // pred_check
          %p518 = pneg %p125
        $region22: #{lenet_forward.1} parent=11 // pred_check_branch
          %520 = sbr.rel (%p518) target = $region24
        $region23: #{lenet_forward.1} parent=11 // pred_region
          _
        $region24: #{lenet_forward.1} parent=11 // pred_fallthru
          _
        // Predicated region
        $region25: #{lenet_forward.1} parent=11 // pred_check
          %p521 = pneg %p146
        $region26: #{lenet_forward.1} parent=11 // pred_check_branch
          %523 = sbr.rel (%p521) target = $region28
        $region27: #{lenet_forward.1} parent=11 // pred_region
          %525 = vsyncadd [#allocation8], 0
          %s526 = sshll.u32 %s4, 4
          %s527 = int_to_ptr.hbm [resolvable:$true] %s526
          %s528 = sshll.u32 [#allocation7], 4
          %s529 = int_to_ptr.vmem [resolvable:$true] %s528
          %534 = dma.hbm_to_vmem [thread:$0]  %s527, 12288, %s529, [#allocation8], 256, 256, 16
        $region28: #{lenet_forward.1} parent=11 // pred_fallthru
          _
        // Predicated region
        $region29: #{lenet_forward.1} parent=11 // pred_check
          %p535 = pneg %p167
        $region30: #{lenet_forward.1} parent=11 // pred_check_branch
          %537 = sbr.rel (%p535) target = $region32
        $region31: #{lenet_forward.1} parent=11 // pred_region
          %539 = vsyncadd [#allocation8], 0
          %s540 = sshll.u32 %s5, 4
          %s541 = int_to_ptr.hbm [resolvable:$true] %s540
          %s542 = sshll.u32 [#allocation9], 4
          %s543 = int_to_ptr.vmem [resolvable:$true] %s542
          %548 = dma.hbm_to_vmem [thread:$0]  %s541, 15360, %s543, [#allocation8], 128, 128, 8
        $region32: #{lenet_forward.1} parent=11 // pred_fallthru
          _
        // Predicated region
        $region33: #{lenet_forward.1} parent=11 // pred_check
          %p549 = pneg %p188
        $region34: #{lenet_forward.1} parent=11 // pred_check_branch
          %551 = sbr.rel (%p549) target = $region36
        $region35: #{lenet_forward.1} parent=11 // pred_region
          _
        $region36: #{lenet_forward.1} parent=11 // pred_fallthru
          _
        // Predicated region
        $region37: #{lenet_forward.1} parent=11 // pred_check
          %p552 = pneg %p209
        $region38: #{lenet_forward.1} parent=11 // pred_check_branch
          %554 = sbr.rel (%p552) target = $region40
        $region39: #{lenet_forward.1} parent=11 // pred_region
          _
        $region40: #{lenet_forward.1} parent=11 // pred_fallthru
          _
        // Predicated region
        $region41: #{lenet_forward.1} parent=11 // pred_check
          %p555 = pneg %p230
        $region42: #{lenet_forward.1} parent=11 // pred_check_branch
          %557 = sbr.rel (%p555) target = $region44
        $region43: #{lenet_forward.1} parent=11 // pred_region
          _
        $region44: #{lenet_forward.1} parent=11 // pred_fallthru
          _
        // Predicated region
        $region45: #{lenet_forward.1} parent=11 // pred_check
          %p558 = pneg %p251
        $region46: #{lenet_forward.1} parent=11 // pred_check_branch
          %560 = sbr.rel (%p558) target = $region48
        $region47: #{lenet_forward.1} parent=11 // pred_region
          %562 = vsyncadd [#allocation11], 0
          %s563 = sshll.u32 %s9, 4
          %s564 = int_to_ptr.hbm [resolvable:$true] %s563
          %s565 = sshll.u32 [#allocation10], 4
          %s566 = int_to_ptr.vmem [resolvable:$true] %s565
          %571 = dma.hbm_to_vmem [thread:$0]  %s564, 4096, %s566, [#allocation11], 128, 128, 8
        $region48: #{lenet_forward.1} parent=11 // pred_fallthru
          _
        // Predicated region
        $region49: #{lenet_forward.1} parent=11 // pred_check
          %p572 = pneg %p272
        $region50: #{lenet_forward.1} parent=11 // pred_check_branch
          %574 = sbr.rel (%p572) target = $region52
        $region51: #{lenet_forward.1} parent=11 // pred_region
          _
        $region52: #{lenet_forward.1} parent=11 // pred_fallthru
          _
        // Predicated region
        $region53: #{lenet_forward.1} parent=11 // pred_check
          %p575 = pneg %p293
        $region54: #{lenet_forward.1} parent=11 // pred_check_branch
          %577 = sbr.rel (%p575) target = $region56
        $region55: #{lenet_forward.1} parent=11 // pred_region
          %579 = vsyncadd [#allocation11], 0
          %s580 = sshll.u32 %s11, 4
          %s581 = int_to_ptr.hbm [resolvable:$true] %s580
          %s582 = sshll.u32 [#allocation12], 4
          %s583 = int_to_ptr.vmem [resolvable:$true] %s582
          %588 = dma.hbm_to_vmem [thread:$0]  %s581, 2048, %s583, [#allocation11], 128, 128, 8
        $region56: #{lenet_forward.1} parent=11 // pred_fallthru
          _
        // Predicated region
        $region57: #{lenet_forward.1} parent=11 // pred_check
          %p589 = pneg %p314
        $region58: #{lenet_forward.1} parent=11 // pred_check_branch
          %591 = sbr.rel (%p589) target = $region60
        $region59: #{lenet_forward.1} parent=11 // pred_region
          _
        $region60: #{lenet_forward.1} parent=11 // pred_fallthru
          _
        // Predicated region
        $region61: #{lenet_forward.1} parent=11 // pred_check
          %p592 = pneg %p335
        $region62: #{lenet_forward.1} parent=11 // pred_check_branch
          %594 = sbr.rel (%p592) target = $region64
        $region63: #{lenet_forward.1} parent=11 // pred_region
          %596 = vsyncadd [#allocation14], 0
          %s597 = sshll.u32 %s13, 4
          %s598 = int_to_ptr.hbm [resolvable:$true] %s597
          %s599 = sshll.u32 [#allocation13], 4
          %s600 = int_to_ptr.vmem [resolvable:$true] %s599
          %605 = dma.hbm_to_vmem [thread:$0]  %s598, 2048, %s600, [#allocation14], 128, 128, 8
        $region64: #{lenet_forward.1} parent=11 // pred_fallthru
          _
        // Predicated region
        $region65: #{lenet_forward.1} parent=11 // pred_check
          %p606 = pneg %p356
        $region66: #{lenet_forward.1} parent=11 // pred_check_branch
          %608 = sbr.rel (%p606) target = $region68
        $region67: #{lenet_forward.1} parent=11 // pred_region
          _
        $region68: #{lenet_forward.1} parent=11 // pred_fallthru
          _
      $region12: #{lenet_forward.1} parent=5 // pred_fallthru
        _
      %p609 = scmp.lt.s32.totalorder %s36, 2
      // Predicated region
      $region69: #{lenet_forward.1} parent=5 // pred_check
        %p610 = pneg %p609
      $region70: #{lenet_forward.1} parent=5 // pred_check_branch
        %612 = sbr.rel (%p610) target = $region72
      $region71: #{lenet_forward.1} parent=5 // pred_region
        // Predicated region
        $region73: #{lenet_forward.1} parent=71 // pred_check
          %p613 = pneg %p56
        $region74: #{lenet_forward.1} parent=71 // pred_check_branch
          %615 = sbr.rel (%p613) target = $region76
        $region75: #{lenet_forward.1} parent=71 // pred_region
          %p616 = scmp.lt.s32.totalorder %s36, 1
          %s617 = scalar_select %p616, %s36, 1
          %s618 = smul.addr %s617, 4
          %s619 = smul.addr %s618, 8
          %s620 = scalar_lea.vmem %s0, %s619
        $region76: #{lenet_forward.1} parent=71 // pred_fallthru
          _
      $region72: #{lenet_forward.1} parent=5 // pred_fallthru
        _
      %p621 = scmp.le.s32.totalorder 1, %s36
      %p622 = scmp.lt.s32.totalorder %s36, 3
      %p623 = pnand %p621, %p622
      %p624 = pneg %p623
      // Predicated region
      $region77: #{lenet_forward.1} parent=5 // pred_check
        _
      $region78: #{lenet_forward.1} parent=5 // pred_check_branch
        %626 = sbr.rel (%p623) target = $region80
      $region79: #{lenet_forward.1} parent=5 // pred_region
        %s627 = ssub.s32 %s36, 1
        // Predicated region
        $region81: #{lenet_forward.1} parent=79 // pred_check
          %p628 = pneg %p83
        $region82: #{lenet_forward.1} parent=79 // pred_check_branch
          %630 = sbr.rel (%p628) target = $region84
        $region83: #{lenet_forward.1} parent=79 // pred_region
          %632 = dma.done [#allocation5], 7680
        $region84: #{lenet_forward.1} parent=79 // pred_fallthru
          _
        // Predicated region
        $region85: #{lenet_forward.1} parent=79 // pred_check
          %p633 = pneg %p146
        $region86: #{lenet_forward.1} parent=79 // pred_check_branch
          %635 = sbr.rel (%p633) target = $region88
        $region87: #{lenet_forward.1} parent=79 // pred_region
          %637 = dma.done [#allocation8], 12288
        $region88: #{lenet_forward.1} parent=79 // pred_fallthru
          _
        // Predicated region
        $region89: #{lenet_forward.1} parent=79 // pred_check
          %p638 = pneg %p167
        $region90: #{lenet_forward.1} parent=79 // pred_check_branch
          %640 = sbr.rel (%p638) target = $region92
        $region91: #{lenet_forward.1} parent=79 // pred_region
          %642 = dma.done [#allocation8], 15360
        $region92: #{lenet_forward.1} parent=79 // pred_fallthru
          _
        // Predicated region
        $region93: #{lenet_forward.1} parent=79 // pred_check
          %p643 = pneg %p251
        $region94: #{lenet_forward.1} parent=79 // pred_check_branch
          %645 = sbr.rel (%p643) target = $region96
        $region95: #{lenet_forward.1} parent=79 // pred_region
          %647 = dma.done [#allocation11], 4096
        $region96: #{lenet_forward.1} parent=79 // pred_fallthru
          _
        // Predicated region
        $region97: #{lenet_forward.1} parent=79 // pred_check
          %p648 = pneg %p293
        $region98: #{lenet_forward.1} parent=79 // pred_check_branch
          %650 = sbr.rel (%p648) target = $region100
        $region99: #{lenet_forward.1} parent=79 // pred_region
          %652 = dma.done [#allocation11], 2048
        $region100: #{lenet_forward.1} parent=79 // pred_fallthru
          _
        // Predicated region
        $region101: #{lenet_forward.1} parent=79 // pred_check
          %p653 = pneg %p335
        $region102: #{lenet_forward.1} parent=79 // pred_check_branch
          %655 = sbr.rel (%p653) target = $region104
        $region103: #{lenet_forward.1} parent=79 // pred_region
          %657 = dma.done [#allocation14], 2048
        $region104: #{lenet_forward.1} parent=79 // pred_fallthru
          _
        %p658 = scmp.lt.s32.totalorder %s41, 1
        %s659 = scalar_select %p658, %s41, 1
        %s660 = smul.addr %s659, 4
        %s661 = smul.addr %s660, 8
        %s662 = scalar_lea.vmem %s0, %s661
        %p663 = pneg %p62
        %p664 = pneg %p59
        %p665 = pneg %p83
        %p666 = pneg %p80
        %p667 = pneg %p104
        %p668 = pneg %p101
        %p669 = pneg %p125
        %p670 = pneg %p122
        %p671 = pneg %p146
        %p672 = pneg %p143
        %p673 = pneg %p167
        %p674 = pneg %p164
        %p675 = pneg %p188
        %p676 = pneg %p185
        %p677 = pneg %p209
        %p678 = pneg %p206
        %p679 = pneg %p230
        %p680 = pneg %p227
        %p681 = pneg %p251
        %p682 = pneg %p248
        %p683 = pneg %p272
        %p684 = pneg %p269
        %p685 = pneg %p293
        %p686 = pneg %p290
        %p687 = pneg %p314
        %p688 = pneg %p311
        %p689 = pneg %p335
        %p690 = pneg %p332
        %p691 = pneg %p356
        %p692 = pneg %p353
        %p693 = pneg %p382
        %p694 = pneg %p379
        %p695 = scmp.lt.s32.totalorder %s41, 1
        %s696 = scalar_select %p695, %s41, 1
        %s697 = smul.addr %s696, 9
        %s698 = smul.addr %s697, 8
        %s699 = scalar_lea.vmem %s15, %s698
        %p700 = pneg %p408
        %p701 = pneg %p405
        %p702 = scmp.lt.s32.totalorder %s41, 1
        %s703 = scalar_select %p702, %s41, 1
        %s704 = smul.addr %s703, 8
        %s705 = scalar_lea.vmem %s16, %s704
        %p706 = pneg %p434
        %p707 = pneg %p431
        %s708 = sand.u32 %s421, 1
        %s709 = scalar_lea.sflag [#allocation6], %s708
        %s710 = sand.u32 %s421, 1
        %s711 = scalar_lea.vmem [#allocation15], %s710
        %p712 = pneg %p460
        %p713 = pneg %p457
        %s714 = sand.u32 %s41, 1
        %s715 = scalar_lea.sflag [#allocation17], %s714
        %s716 = sand.u32 %s447, 1
        %s717 = scalar_lea.vmem [#allocation16], %s716
        %p718 = pneg %p486
        %p719 = pneg %p483
        %s720 = sand.u32 %s41, 1
        %s721 = scalar_lea.sflag [#allocation17], %s720
        %s722 = sand.u32 %s473, 1
        %s723 = scalar_lea.vmem [#allocation18], %s722
        %p724 = scmp.lt.s32.totalorder %s41, 1
        %s725 = scalar_select %p724, %s41, 1
        %s726 = smul.addr %s725, 4
        %s727 = smul.addr %s726, 8
        %s728 = scalar_lea.vmem %s0, %s727
        %p729 = scmp.lt.s32.totalorder %s41, 1
        %s730 = scalar_select %p729, %s41, 1
        %s731 = smul.addr %s730, 9
        %s732 = smul.addr %s731, 8
        %s733 = scalar_lea.vmem %s15, %s732
        %p734 = scmp.lt.s32.totalorder %s41, 1
        %s735 = scalar_select %p734, %s41, 1
        %s736 = smul.addr %s735, 8
        %s737 = scalar_lea.vmem %s16, %s736
        %v738 = vld [vmem:[%s728] sm:$0xff]
        %v739 = vld [vmem:[%s728 + $0x8] sm:$0xff]
        %v740 = vld [vmem:[%s728 + $0x10] sm:$0xff]
        %v741 = vld [vmem:[#allocation4] sm:$0xff]
        %v742 = vld [vmem:[#allocation4 + $0x8] sm:$0xff]
        %v743 = vld [vmem:[#allocation4 + $0x10] sm:$0xff]
        %v744 = vld [vmem:[#allocation4 + $0x18] sm:$0xff]
        %v745 = vld [vmem:[#allocation4 + $0x20] sm:$0xff]
        %v746 = vld [vmem:[#allocation4 + $0x28] sm:$0xff]
        %v747 = vld [vmem:[#allocation4 + $0x30] sm:$0xff]
        %v748 = vld [vmem:[#allocation4 + $0x38] sm:$0xff]
        %v749 = vld [vmem:[#allocation4 + $0x40] sm:$0xff]
        %v750 = vld [vmem:[#allocation4 + $0x48] sm:$0xf]
        %v751 = vld [vmem:[#allocation4 + $0x50] sm:$0xf]
        %v752 = vld [vmem:[#allocation4 + $0x58] sm:$0xf]
        %v753 = vld [vmem:[%s728 + $0x1] sm:$0xff]
        %v754 = vld [vmem:[%s728 + $0x9] sm:$0xff]
        %v755 = vld [vmem:[%s728 + $0x11] sm:$0xff]
        %s756 = scalar_lea.vmem [#allocation4], 96
        %v757 = vld [vmem:[%s756] sm:$0xff]
        %v758 = vld [vmem:[%s756 + $0x8] sm:$0xff]
        %v759 = vld [vmem:[%s756 + $0x10] sm:$0xff]
        %v760 = vld [vmem:[%s756 + $0x18] sm:$0xff]
        %v761 = vld [vmem:[%s756 + $0x20] sm:$0xff]
        %v762 = vld [vmem:[%s756 + $0x28] sm:$0xff]
        %v763 = vld [vmem:[%s756 + $0x30] sm:$0xff]
        %v764 = vld [vmem:[%s756 + $0x38] sm:$0xff]
        %v765 = vld [vmem:[%s756 + $0x40] sm:$0xff]
        %v766 = vld [vmem:[%s756 + $0x48] sm:$0xf]
        %v767 = vld [vmem:[%s756 + $0x50] sm:$0xf]
        %v768 = vld [vmem:[%s756 + $0x58] sm:$0xf]
        %vm769 = vcmask 228352
        %v771 = vsel %vm769, %v753, 0
        %v774 = vsel %vm769, %v754, 0
        %v777 = vsel %vm769, %v755, 0
        %vm779 = vcmask 1043456
        %v781 = vsel %vm779, %v766, 0
        %v784 = vsel %vm779, %v767, 0
        %v787 = vsel %vm779, %v768, 0
        %789 = vmatpush.msra.mxu0 0.0
        %790 = vmatpush.msra.mxu0 0.0
        %791 = vmatpush.msra.mxu0 0.0
        %792 = vmatpush.msra.mxu0 0.0
        %793 = vmatpush.msra.mxu0 0.0
        %794 = vmatpush.msra.mxu0 0.0
        %795 = vmatpush.msra.mxu0 0.0
        %796 = vmatpush.msra.mxu0 0.0
        %797 = vmatpush.msra.mxu0 0.0
        %798 = vmatpush.msra.mxu0 0.0
        %799 = vmatpush.msra.mxu0 0.0
        %800 = vmatpush.msra.mxu0 0.0
        %801 = vmatpush.msra.mxu0 %v781
        %802 = vmatpush.msra.mxu0 %v763
        %803 = vmatpush.msra.mxu0 %v760
        %804 = vmatpush.msra.mxu0 %v757
        %805 = vmatmul.f32.gmra.mxu0 %v771
        %v806 = vpop.f32.mrf.mxu0
        %v807 = vadd.f32 0.0, %v806
        %808 = vmatmul.f32.gmra.mxu0 %v774
        %v809 = vpop.f32.mrf.mxu0
        %v810 = vadd.f32 0.0, %v809
        %811 = vmatmul.f32.gmra.mxu0 %v777
        %v812 = vpop.f32.mrf.mxu0
        %v813 = vadd.f32 0.0, %v812
        %814 = vdwg.mxu0
        %815 = vmatpush.msra.mxu0 0.0
        %816 = vmatpush.msra.mxu0 0.0
        %817 = vmatpush.msra.mxu0 0.0
        %818 = vmatpush.msra.mxu0 0.0
        %819 = vmatpush.msra.mxu0 0.0
        %820 = vmatpush.msra.mxu0 0.0
        %821 = vmatpush.msra.mxu0 0.0
        %822 = vmatpush.msra.mxu0 0.0
        %823 = vmatpush.msra.mxu0 0.0
        %824 = vmatpush.msra.mxu0 0.0
        %825 = vmatpush.msra.mxu0 0.0
        %826 = vmatpush.msra.mxu0 0.0
        %827 = vmatpush.msra.mxu0 %v784
        %828 = vmatpush.msra.mxu0 %v764
        %829 = vmatpush.msra.mxu0 %v761
        %830 = vmatpush.msra.mxu0 %v758
        %831 = vmatmul.f32.gmra.mxu0 %v771
        %v832 = vpop.f32.mrf.mxu0
        %v833 = vadd.f32 0.0, %v832
        %834 = vmatmul.f32.gmra.mxu0 %v774
        %v835 = vpop.f32.mrf.mxu0
        %v836 = vadd.f32 0.0, %v835
        %837 = vmatmul.f32.gmra.mxu0 %v777
        %v838 = vpop.f32.mrf.mxu0
        %v839 = vadd.f32 0.0, %v838
        %840 = vdwg.mxu0
        %841 = vmatpush.msra.mxu0 0.0
        %842 = vmatpush.msra.mxu0 0.0
        %843 = vmatpush.msra.mxu0 0.0
        %844 = vmatpush.msra.mxu0 0.0
        %845 = vmatpush.msra.mxu0 0.0
        %846 = vmatpush.msra.mxu0 0.0
        %847 = vmatpush.msra.mxu0 0.0
        %848 = vmatpush.msra.mxu0 0.0
        %849 = vmatpush.msra.mxu0 0.0
        %850 = vmatpush.msra.mxu0 0.0
        %851 = vmatpush.msra.mxu0 0.0
        %852 = vmatpush.msra.mxu0 0.0
        %853 = vmatpush.msra.mxu0 %v787
        %854 = vmatpush.msra.mxu0 %v765
        %855 = vmatpush.msra.mxu0 %v762
        %856 = vmatpush.msra.mxu0 %v759
        %857 = vmatmul.f32.gmra.mxu0 %v771
        %v858 = vpop.f32.mrf.mxu0
        %v859 = vadd.f32 0.0, %v858
        %860 = vmatmul.f32.gmra.mxu0 %v774
        %v861 = vpop.f32.mrf.mxu0
        %v862 = vadd.f32 0.0, %v861
        %863 = vmatmul.f32.gmra.mxu0 %v777
        %v864 = vpop.f32.mrf.mxu0
        %v865 = vadd.f32 0.0, %v864
        %866 = vdwg.mxu0
        %v868 = vsel %vm769, %v738, 0
        %v871 = vsel %vm769, %v739, 0
        %v874 = vsel %vm769, %v740, 0
        %v877 = vsel %vm779, %v750, 0
        %v880 = vsel %vm779, %v751, 0
        %v883 = vsel %vm779, %v752, 0
        %885 = vmatpush.msra.mxu0 0.0
        %886 = vmatpush.msra.mxu0 0.0
        %887 = vmatpush.msra.mxu0 0.0
        %888 = vmatpush.msra.mxu0 0.0
        %889 = vmatpush.msra.mxu0 0.0
        %890 = vmatpush.msra.mxu0 0.0
        %891 = vmatpush.msra.mxu0 0.0
        %892 = vmatpush.msra.mxu0 0.0
        %893 = vmatpush.msra.mxu0 0.0
        %894 = vmatpush.msra.mxu0 0.0
        %895 = vmatpush.msra.mxu0 0.0
        %896 = vmatpush.msra.mxu0 0.0
        %897 = vmatpush.msra.mxu0 %v877
        %898 = vmatpush.msra.mxu0 %v747
        %899 = vmatpush.msra.mxu0 %v744
        %900 = vmatpush.msra.mxu0 %v741
        %901 = vmatmul.f32.gmra.mxu0 %v868
        %v902 = vpop.f32.mrf.mxu0
        %v903 = vadd.f32 %v807, %v902
        %904 = vmatmul.f32.gmra.mxu0 %v871
        %v905 = vpop.f32.mrf.mxu0
        %v906 = vadd.f32 %v810, %v905
        %907 = vmatmul.f32.gmra.mxu0 %v874
        %v908 = vpop.f32.mrf.mxu0
        %v909 = vadd.f32 %v813, %v908
        %910 = vdwg.mxu0
        %911 = vmatpush.msra.mxu0 0.0
        %912 = vmatpush.msra.mxu0 0.0
        %913 = vmatpush.msra.mxu0 0.0
        %914 = vmatpush.msra.mxu0 0.0
        %915 = vmatpush.msra.mxu0 0.0
        %916 = vmatpush.msra.mxu0 0.0
        %917 = vmatpush.msra.mxu0 0.0
        %918 = vmatpush.msra.mxu0 0.0
        %919 = vmatpush.msra.mxu0 0.0
        %920 = vmatpush.msra.mxu0 0.0
        %921 = vmatpush.msra.mxu0 0.0
        %922 = vmatpush.msra.mxu0 0.0
        %923 = vmatpush.msra.mxu0 %v880
        %924 = vmatpush.msra.mxu0 %v748
        %925 = vmatpush.msra.mxu0 %v745
        %926 = vmatpush.msra.mxu0 %v742
        %927 = vmatmul.f32.gmra.mxu0 %v868
        %v928 = vpop.f32.mrf.mxu0
        %v929 = vadd.f32 %v833, %v928
        %930 = vmatmul.f32.gmra.mxu0 %v871
        %v931 = vpop.f32.mrf.mxu0
        %v932 = vadd.f32 %v836, %v931
        %933 = vmatmul.f32.gmra.mxu0 %v874
        %v934 = vpop.f32.mrf.mxu0
        %v935 = vadd.f32 %v839, %v934
        %936 = vdwg.mxu0
        %937 = vmatpush.msra.mxu0 0.0
        %938 = vmatpush.msra.mxu0 0.0
        %939 = vmatpush.msra.mxu0 0.0
        %940 = vmatpush.msra.mxu0 0.0
        %941 = vmatpush.msra.mxu0 0.0
        %942 = vmatpush.msra.mxu0 0.0
        %943 = vmatpush.msra.mxu0 0.0
        %944 = vmatpush.msra.mxu0 0.0
        %945 = vmatpush.msra.mxu0 0.0
        %946 = vmatpush.msra.mxu0 0.0
        %947 = vmatpush.msra.mxu0 0.0
        %948 = vmatpush.msra.mxu0 0.0
        %949 = vmatpush.msra.mxu0 %v883
        %950 = vmatpush.msra.mxu0 %v749
        %951 = vmatpush.msra.mxu0 %v746
        %952 = vmatpush.msra.mxu0 %v743
        %953 = vmatmul.f32.gmra.mxu0 %v868
        %v954 = vpop.f32.mrf.mxu0
        %v955 = vadd.f32 %v859, %v954
        %956 = vmatmul.f32.gmra.mxu0 %v871
        %v957 = vpop.f32.mrf.mxu0
        %v958 = vadd.f32 %v862, %v957
        %959 = vmatmul.f32.gmra.mxu0 %v874
        %v960 = vpop.f32.mrf.mxu0
        %v961 = vadd.f32 %v865, %v960
        %962 = vdwg.mxu0
        %v963 = vld [vmem:[%s728 + $0x2] sm:$0xff]
        %v964 = vld [vmem:[%s728 + $0xa] sm:$0xff]
        %v965 = vld [vmem:[%s728 + $0x12] sm:$0xff]
        %s966 = scalar_lea.vmem [#allocation4], 192
        %v967 = vld [vmem:[%s966] sm:$0xff]
        %v968 = vld [vmem:[%s966 + $0x8] sm:$0xff]
        %v969 = vld [vmem:[%s966 + $0x10] sm:$0xff]
        %v970 = vld [vmem:[%s966 + $0x18] sm:$0xff]
        %v971 = vld [vmem:[%s966 + $0x20] sm:$0xff]
        %v972 = vld [vmem:[%s966 + $0x28] sm:$0xff]
        %v973 = vld [vmem:[%s966 + $0x30] sm:$0xff]
        %v974 = vld [vmem:[%s966 + $0x38] sm:$0xff]
        %v975 = vld [vmem:[%s966 + $0x40] sm:$0xff]
        %v976 = vld [vmem:[%s966 + $0x48] sm:$0xf]
        %v977 = vld [vmem:[%s966 + $0x50] sm:$0xf]
        %v978 = vld [vmem:[%s966 + $0x58] sm:$0xf]
        %v980 = vsel %vm769, %v963, 0
        %v983 = vsel %vm769, %v964, 0
        %v986 = vsel %vm769, %v965, 0
        %v989 = vsel %vm779, %v976, 0
        %v992 = vsel %vm779, %v977, 0
        %v995 = vsel %vm779, %v978, 0
        %997 = vmatpush.msra.mxu0 0.0
        %998 = vmatpush.msra.mxu0 0.0
        %999 = vmatpush.msra.mxu0 0.0
        %1000 = vmatpush.msra.mxu0 0.0
        %1001 = vmatpush.msra.mxu0 0.0
        %1002 = vmatpush.msra.mxu0 0.0
        %1003 = vmatpush.msra.mxu0 0.0
        %1004 = vmatpush.msra.mxu0 0.0
        %1005 = vmatpush.msra.mxu0 0.0
        %1006 = vmatpush.msra.mxu0 0.0
        %1007 = vmatpush.msra.mxu0 0.0
        %1008 = vmatpush.msra.mxu0 0.0
        %1009 = vmatpush.msra.mxu0 %v989
        %1010 = vmatpush.msra.mxu0 %v973
        %1011 = vmatpush.msra.mxu0 %v970
        %1012 = vmatpush.msra.mxu0 %v967
        %1013 = vmatmul.f32.gmra.mxu0 %v980
        %v1014 = vpop.f32.mrf.mxu0
        %v1015 = vadd.f32 0.0, %v1014
        %1016 = vmatmul.f32.gmra.mxu0 %v983
        %v1017 = vpop.f32.mrf.mxu0
        %v1018 = vadd.f32 0.0, %v1017
        %1019 = vmatmul.f32.gmra.mxu0 %v986
        %v1020 = vpop.f32.mrf.mxu0
        %v1021 = vadd.f32 0.0, %v1020
        %1022 = vdwg.mxu0
        %1023 = vmatpush.msra.mxu0 0.0
        %1024 = vmatpush.msra.mxu0 0.0
        %1025 = vmatpush.msra.mxu0 0.0
        %1026 = vmatpush.msra.mxu0 0.0
        %1027 = vmatpush.msra.mxu0 0.0
        %1028 = vmatpush.msra.mxu0 0.0
        %1029 = vmatpush.msra.mxu0 0.0
        %1030 = vmatpush.msra.mxu0 0.0
        %1031 = vmatpush.msra.mxu0 0.0
        %1032 = vmatpush.msra.mxu0 0.0
        %1033 = vmatpush.msra.mxu0 0.0
        %1034 = vmatpush.msra.mxu0 0.0
        %1035 = vmatpush.msra.mxu0 %v992
        %1036 = vmatpush.msra.mxu0 %v974
        %1037 = vmatpush.msra.mxu0 %v971
        %1038 = vmatpush.msra.mxu0 %v968
        %1039 = vmatmul.f32.gmra.mxu0 %v980
        %v1040 = vpop.f32.mrf.mxu0
        %v1041 = vadd.f32 0.0, %v1040
        %1042 = vmatmul.f32.gmra.mxu0 %v983
        %v1043 = vpop.f32.mrf.mxu0
        %v1044 = vadd.f32 0.0, %v1043
        %1045 = vmatmul.f32.gmra.mxu0 %v986
        %v1046 = vpop.f32.mrf.mxu0
        %v1047 = vadd.f32 0.0, %v1046
        %1048 = vdwg.mxu0
        %1049 = vmatpush.msra.mxu0 0.0
        %1050 = vmatpush.msra.mxu0 0.0
        %1051 = vmatpush.msra.mxu0 0.0
        %1052 = vmatpush.msra.mxu0 0.0
        %1053 = vmatpush.msra.mxu0 0.0
        %1054 = vmatpush.msra.mxu0 0.0
        %1055 = vmatpush.msra.mxu0 0.0
        %1056 = vmatpush.msra.mxu0 0.0
        %1057 = vmatpush.msra.mxu0 0.0
        %1058 = vmatpush.msra.mxu0 0.0
        %1059 = vmatpush.msra.mxu0 0.0
        %1060 = vmatpush.msra.mxu0 0.0
        %1061 = vmatpush.msra.mxu0 %v995
        %1062 = vmatpush.msra.mxu0 %v975
        %1063 = vmatpush.msra.mxu0 %v972
        %1064 = vmatpush.msra.mxu0 %v969
        %1065 = vmatmul.f32.gmra.mxu0 %v980
        %v1066 = vpop.f32.mrf.mxu0
        %v1067 = vadd.f32 0.0, %v1066
        %1068 = vmatmul.f32.gmra.mxu0 %v983
        %v1069 = vpop.f32.mrf.mxu0
        %v1070 = vadd.f32 0.0, %v1069
        %1071 = vmatmul.f32.gmra.mxu0 %v986
        %v1072 = vpop.f32.mrf.mxu0
        %v1073 = vadd.f32 0.0, %v1072
        %1074 = vdwg.mxu0
        %v1075 = vadd.f32 %v903, %v1015
        %v1076 = vadd.f32 %v929, %v1041
        %v1077 = vadd.f32 %v955, %v1067
        %v1078 = vadd.f32 %v906, %v1018
        %v1079 = vadd.f32 %v932, %v1044
        %v1080 = vadd.f32 %v958, %v1070
        %v1081 = vadd.f32 %v909, %v1021
        %v1082 = vadd.f32 %v935, %v1047
        %v1083 = vadd.f32 %v961, %v1073
        %v1084 = vld [vmem:[%s728 + $0x3] sm:$0xff]
        %v1085 = vld [vmem:[%s728 + $0xb] sm:$0xff]
        %v1086 = vld [vmem:[%s728 + $0x13] sm:$0xff]
        %s1087 = scalar_lea.vmem [#allocation4], 288
        %v1088 = vld [vmem:[%s1087] sm:$0xff]
        %v1089 = vld [vmem:[%s1087 + $0x8] sm:$0xff]
        %v1090 = vld [vmem:[%s1087 + $0x10] sm:$0xff]
        %v1091 = vld [vmem:[%s1087 + $0x18] sm:$0xff]
        %v1092 = vld [vmem:[%s1087 + $0x20] sm:$0xff]
        %v1093 = vld [vmem:[%s1087 + $0x28] sm:$0xff]
        %v1094 = vld [vmem:[%s1087 + $0x30] sm:$0xff]
        %v1095 = vld [vmem:[%s1087 + $0x38] sm:$0xff]
        %v1096 = vld [vmem:[%s1087 + $0x40] sm:$0xff]
        %v1097 = vld [vmem:[%s1087 + $0x48] sm:$0xf]
        %v1098 = vld [vmem:[%s1087 + $0x50] sm:$0xf]
        %v1099 = vld [vmem:[%s1087 + $0x58] sm:$0xf]
        %v1101 = vsel %vm769, %v1084, 0
        %v1104 = vsel %vm769, %v1085, 0
        %v1107 = vsel %vm769, %v1086, 0
        %v1110 = vsel %vm779, %v1097, 0
        %v1113 = vsel %vm779, %v1098, 0
        %v1116 = vsel %vm779, %v1099, 0
        %1118 = vmatpush.msra.mxu0 0.0
        %1119 = vmatpush.msra.mxu0 0.0
        %1120 = vmatpush.msra.mxu0 0.0
        %1121 = vmatpush.msra.mxu0 0.0
        %1122 = vmatpush.msra.mxu0 0.0
        %1123 = vmatpush.msra.mxu0 0.0
        %1124 = vmatpush.msra.mxu0 0.0
        %1125 = vmatpush.msra.mxu0 0.0
        %1126 = vmatpush.msra.mxu0 0.0
        %1127 = vmatpush.msra.mxu0 0.0
        %1128 = vmatpush.msra.mxu0 0.0
        %1129 = vmatpush.msra.mxu0 0.0
        %1130 = vmatpush.msra.mxu0 %v1110
        %1131 = vmatpush.msra.mxu0 %v1094
        %1132 = vmatpush.msra.mxu0 %v1091
        %1133 = vmatpush.msra.mxu0 %v1088
        %1134 = vmatmul.f32.gmra.mxu0 %v1101
        %v1135 = vpop.f32.mrf.mxu0
        %v1136 = vadd.f32 0.0, %v1135
        %1137 = vmatmul.f32.gmra.mxu0 %v1104
        %v1138 = vpop.f32.mrf.mxu0
        %v1139 = vadd.f32 0.0, %v1138
        %1140 = vmatmul.f32.gmra.mxu0 %v1107
        %v1141 = vpop.f32.mrf.mxu0
        %v1142 = vadd.f32 0.0, %v1141
        %1143 = vdwg.mxu0
        %1144 = vmatpush.msra.mxu0 0.0
        %1145 = vmatpush.msra.mxu0 0.0
        %1146 = vmatpush.msra.mxu0 0.0
        %1147 = vmatpush.msra.mxu0 0.0
        %1148 = vmatpush.msra.mxu0 0.0
        %1149 = vmatpush.msra.mxu0 0.0
        %1150 = vmatpush.msra.mxu0 0.0
        %1151 = vmatpush.msra.mxu0 0.0
        %1152 = vmatpush.msra.mxu0 0.0
        %1153 = vmatpush.msra.mxu0 0.0
        %1154 = vmatpush.msra.mxu0 0.0
        %1155 = vmatpush.msra.mxu0 0.0
        %1156 = vmatpush.msra.mxu0 %v1113
        %1157 = vmatpush.msra.mxu0 %v1095
        %1158 = vmatpush.msra.mxu0 %v1092
        %1159 = vmatpush.msra.mxu0 %v1089
        %1160 = vmatmul.f32.gmra.mxu0 %v1101
        %v1161 = vpop.f32.mrf.mxu0
        %v1162 = vadd.f32 0.0, %v1161
        %1163 = vmatmul.f32.gmra.mxu0 %v1104
        %v1164 = vpop.f32.mrf.mxu0
        %v1165 = vadd.f32 0.0, %v1164
        %1166 = vmatmul.f32.gmra.mxu0 %v1107
        %v1167 = vpop.f32.mrf.mxu0
        %v1168 = vadd.f32 0.0, %v1167
        %1169 = vdwg.mxu0
        %1170 = vmatpush.msra.mxu0 0.0
        %1171 = vmatpush.msra.mxu0 0.0
        %1172 = vmatpush.msra.mxu0 0.0
        %1173 = vmatpush.msra.mxu0 0.0
        %1174 = vmatpush.msra.mxu0 0.0
        %1175 = vmatpush.msra.mxu0 0.0
        %1176 = vmatpush.msra.mxu0 0.0
        %1177 = vmatpush.msra.mxu0 0.0
        %1178 = vmatpush.msra.mxu0 0.0
        %1179 = vmatpush.msra.mxu0 0.0
        %1180 = vmatpush.msra.mxu0 0.0
        %1181 = vmatpush.msra.mxu0 0.0
        %1182 = vmatpush.msra.mxu0 %v1116
        %1183 = vmatpush.msra.mxu0 %v1096
        %1184 = vmatpush.msra.mxu0 %v1093
        %1185 = vmatpush.msra.mxu0 %v1090
        %1186 = vmatmul.f32.gmra.mxu0 %v1101
        %v1187 = vpop.f32.mrf.mxu0
        %v1188 = vadd.f32 0.0, %v1187
        %1189 = vmatmul.f32.gmra.mxu0 %v1104
        %v1190 = vpop.f32.mrf.mxu0
        %v1191 = vadd.f32 0.0, %v1190
        %1192 = vmatmul.f32.gmra.mxu0 %v1107
        %v1193 = vpop.f32.mrf.mxu0
        %v1194 = vadd.f32 0.0, %v1193
        %1195 = vdwg.mxu0
        %v1196 = vadd.f32 %v1075, %v1136
        %v1197 = vadd.f32 %v1076, %v1162
        %v1198 = vadd.f32 %v1077, %v1188
        %v1199 = vadd.f32 %v1078, %v1139
        %v1200 = vadd.f32 %v1079, %v1165
        %v1201 = vadd.f32 %v1080, %v1191
        %v1202 = vadd.f32 %v1081, %v1142
        %v1203 = vadd.f32 %v1082, %v1168
        %v1204 = vadd.f32 %v1083, %v1194
        %v1205 = vld [vmem:[%s728 + $0x4] sm:$0xff]
        %v1206 = vld [vmem:[%s728 + $0xc] sm:$0xff]
        %v1207 = vld [vmem:[%s728 + $0x14] sm:$0xff]
        %s1208 = scalar_lea.vmem [#allocation4], 384
        %v1209 = vld [vmem:[%s1208] sm:$0xff]
        %v1210 = vld [vmem:[%s1208 + $0x8] sm:$0xff]
        %v1211 = vld [vmem:[%s1208 + $0x10] sm:$0xff]
        %v1212 = vld [vmem:[%s1208 + $0x18] sm:$0xff]
        %v1213 = vld [vmem:[%s1208 + $0x20] sm:$0xff]
        %v1214 = vld [vmem:[%s1208 + $0x28] sm:$0xff]
        %v1215 = vld [vmem:[%s1208 + $0x30] sm:$0xff]
        %v1216 = vld [vmem:[%s1208 + $0x38] sm:$0xff]
        %v1217 = vld [vmem:[%s1208 + $0x40] sm:$0xff]
        %v1218 = vld [vmem:[%s1208 + $0x48] sm:$0xf]
        %v1219 = vld [vmem:[%s1208 + $0x50] sm:$0xf]
        %v1220 = vld [vmem:[%s1208 + $0x58] sm:$0xf]
        %v1222 = vsel %vm769, %v1205, 0
        %v1225 = vsel %vm769, %v1206, 0
        %v1228 = vsel %vm769, %v1207, 0
        %v1231 = vsel %vm779, %v1218, 0
        %v1234 = vsel %vm779, %v1219, 0
        %v1237 = vsel %vm779, %v1220, 0
        %1239 = vmatpush.msra.mxu0 0.0
        %1240 = vmatpush.msra.mxu0 0.0
        %1241 = vmatpush.msra.mxu0 0.0
        %1242 = vmatpush.msra.mxu0 0.0
        %1243 = vmatpush.msra.mxu0 0.0
        %1244 = vmatpush.msra.mxu0 0.0
        %1245 = vmatpush.msra.mxu0 0.0
        %1246 = vmatpush.msra.mxu0 0.0
        %1247 = vmatpush.msra.mxu0 0.0
        %1248 = vmatpush.msra.mxu0 0.0
        %1249 = vmatpush.msra.mxu0 0.0
        %1250 = vmatpush.msra.mxu0 0.0
        %1251 = vmatpush.msra.mxu0 %v1231
        %1252 = vmatpush.msra.mxu0 %v1215
        %1253 = vmatpush.msra.mxu0 %v1212
        %1254 = vmatpush.msra.mxu0 %v1209
        %1255 = vmatmul.f32.gmra.mxu0 %v1222
        %v1256 = vpop.f32.mrf.mxu0
        %v1257 = vadd.f32 0.0, %v1256
        %1258 = vmatmul.f32.gmra.mxu0 %v1225
        %v1259 = vpop.f32.mrf.mxu0
        %v1260 = vadd.f32 0.0, %v1259
        %1261 = vmatmul.f32.gmra.mxu0 %v1228
        %v1262 = vpop.f32.mrf.mxu0
        %v1263 = vadd.f32 0.0, %v1262
        %1264 = vdwg.mxu0
        %1265 = vmatpush.msra.mxu0 0.0
        %1266 = vmatpush.msra.mxu0 0.0
        %1267 = vmatpush.msra.mxu0 0.0
        %1268 = vmatpush.msra.mxu0 0.0
        %1269 = vmatpush.msra.mxu0 0.0
        %1270 = vmatpush.msra.mxu0 0.0
        %1271 = vmatpush.msra.mxu0 0.0
        %1272 = vmatpush.msra.mxu0 0.0
        %1273 = vmatpush.msra.mxu0 0.0
        %1274 = vmatpush.msra.mxu0 0.0
        %1275 = vmatpush.msra.mxu0 0.0
        %1276 = vmatpush.msra.mxu0 0.0
        %1277 = vmatpush.msra.mxu0 %v1234
        %1278 = vmatpush.msra.mxu0 %v1216
        %1279 = vmatpush.msra.mxu0 %v1213
        %1280 = vmatpush.msra.mxu0 %v1210
        %1281 = vmatmul.f32.gmra.mxu0 %v1222
        %v1282 = vpop.f32.mrf.mxu0
        %v1283 = vadd.f32 0.0, %v1282
        %1284 = vmatmul.f32.gmra.mxu0 %v1225
        %v1285 = vpop.f32.mrf.mxu0
        %v1286 = vadd.f32 0.0, %v1285
        %1287 = vmatmul.f32.gmra.mxu0 %v1228
        %v1288 = vpop.f32.mrf.mxu0
        %v1289 = vadd.f32 0.0, %v1288
        %1290 = vdwg.mxu0
        %1291 = vmatpush.msra.mxu0 0.0
        %1292 = vmatpush.msra.mxu0 0.0
        %1293 = vmatpush.msra.mxu0 0.0
        %1294 = vmatpush.msra.mxu0 0.0
        %1295 = vmatpush.msra.mxu0 0.0
        %1296 = vmatpush.msra.mxu0 0.0
        %1297 = vmatpush.msra.mxu0 0.0
        %1298 = vmatpush.msra.mxu0 0.0
        %1299 = vmatpush.msra.mxu0 0.0
        %1300 = vmatpush.msra.mxu0 0.0
        %1301 = vmatpush.msra.mxu0 0.0
        %1302 = vmatpush.msra.mxu0 0.0
        %1303 = vmatpush.msra.mxu0 %v1237
        %1304 = vmatpush.msra.mxu0 %v1217
        %1305 = vmatpush.msra.mxu0 %v1214
        %1306 = vmatpush.msra.mxu0 %v1211
        %1307 = vmatmul.f32.gmra.mxu0 %v1222
        %v1308 = vpop.f32.mrf.mxu0
        %v1309 = vadd.f32 0.0, %v1308
        %1310 = vmatmul.f32.gmra.mxu0 %v1225
        %v1311 = vpop.f32.mrf.mxu0
        %v1312 = vadd.f32 0.0, %v1311
        %1313 = vmatmul.f32.gmra.mxu0 %v1228
        %v1314 = vpop.f32.mrf.mxu0
        %v1315 = vadd.f32 0.0, %v1314
        %1316 = vdwg.mxu0
        %v1317 = vadd.f32 %v1196, %v1257
        %v1318 = vadd.f32 %v1197, %v1283
        %v1319 = vadd.f32 %v1198, %v1309
        %v1320 = vadd.f32 %v1199, %v1260
        %v1321 = vadd.f32 %v1200, %v1286
        %v1322 = vadd.f32 %v1201, %v1312
        %v1323 = vadd.f32 %v1202, %v1263
        %v1324 = vadd.f32 %v1203, %v1289
        %v1325 = vadd.f32 %v1204, %v1315
        %v1326 = vld [vmem:[%s2] sm:$0x7]
        %v1328 = vperm.slane %v1326, 0
        %v1329 = vperm.slane %v1326, 1
        %v1330 = vperm.slane %v1326, 2
        %v1334 = vadd.f32 %v1317, %v1328
        %v1335 = vadd.f32 %v1318, %v1329
        %v1336 = vadd.f32 %v1319, %v1330
        %v1337 = vadd.f32 %v1320, %v1328
        %v1338 = vadd.f32 %v1321, %v1329
        %v1339 = vadd.f32 %v1322, %v1330
        %v1340 = vadd.f32 %v1323, %v1328
        %v1341 = vadd.f32 %v1324, %v1329
        %v1342 = vadd.f32 %v1325, %v1330
        %v1343 = vmax.f32 %v1334, 0.0
        %v1344 = vmax.f32 %v1335, 0.0
        %v1345 = vmax.f32 %v1336, 0.0
        %v1346 = vmax.f32 %v1337, 0.0
        %v1347 = vmax.f32 %v1338, 0.0
        %v1348 = vmax.f32 %v1339, 0.0
        %v1349 = vmax.f32 %v1340, 0.0
        %v1350 = vmax.f32 %v1341, 0.0
        %v1351 = vmax.f32 %v1342, 0.0
        %1352 = vst [vmem:[%s733] sm:$0xff] %v1343
        %1353 = vst [vmem:[%s733 + $0x8] sm:$0xff] %v1344
        %1354 = vst [vmem:[%s733 + $0x10] sm:$0xff] %v1345
        %1355 = vst [vmem:[%s733 + $0x18] sm:$0xff] %v1346
        %1356 = vst [vmem:[%s733 + $0x20] sm:$0xff] %v1347
        %1357 = vst [vmem:[%s733 + $0x28] sm:$0xff] %v1348
        %1358 = vst [vmem:[%s733 + $0x30] sm:$0xff] %v1349
        %1359 = vst [vmem:[%s733 + $0x38] sm:$0xff] %v1350
        %1360 = vst [vmem:[%s733 + $0x40] sm:$0xff] %v1351
        %v1361 = vld [vmem:[%s3] sm:$0xff]
        %v1362 = vld [vmem:[%s3 + $0x8] sm:$0xf]
        %vm1363 = vcmask 195584
        %v1365 = vsel %vm1363, %v1361, 0
        %v1368 = vsel %vm1363, %v1362, 0
        %1370 = vmatpush.msra.mxu0 0.0
        %1371 = vmatpush.msra.mxu0 0.0
        %1372 = vmatpush.msra.mxu0 0.0
        %1373 = vmatpush.msra.mxu0 0.0
        %1374 = vmatpush.msra.mxu0 0.0
        %1375 = vmatpush.msra.mxu0 0.0
        %1376 = vmatpush.msra.mxu0 0.0
        %1377 = vmatpush.msra.mxu0 0.0
        %1378 = vmatpush.msra.mxu0 0.0
        %1379 = vmatpush.msra.mxu0 0.0
        %1380 = vmatpush.msra.mxu0 0.0
        %1381 = vmatpush.msra.mxu0 0.0
        %1382 = vmatpush.msra.mxu0 0.0
        %1383 = vmatpush.msra.mxu0 %v1349
        %1384 = vmatpush.msra.mxu0 %v1346
        %1385 = vmatpush.msra.mxu0 %v1343
        %1386 = vmatmul.f32.gmra.mxu0 %v1365
        %v1387 = vpop.f32.mrf.mxu0
        %v1388 = vadd.f32 0.0, %v1387
        %1389 = vmatmul.f32.gmra.mxu0 %v1368
        %v1390 = vpop.f32.mrf.mxu0
        %v1391 = vadd.f32 0.0, %v1390
        %1392 = vdwg.mxu0
        %1393 = vmatpush.msra.mxu0 0.0
        %1394 = vmatpush.msra.mxu0 0.0
        %1395 = vmatpush.msra.mxu0 0.0
        %1396 = vmatpush.msra.mxu0 0.0
        %1397 = vmatpush.msra.mxu0 0.0
        %1398 = vmatpush.msra.mxu0 0.0
        %1399 = vmatpush.msra.mxu0 0.0
        %1400 = vmatpush.msra.mxu0 0.0
        %1401 = vmatpush.msra.mxu0 0.0
        %1402 = vmatpush.msra.mxu0 0.0
        %1403 = vmatpush.msra.mxu0 0.0
        %1404 = vmatpush.msra.mxu0 0.0
        %1405 = vmatpush.msra.mxu0 0.0
        %1406 = vmatpush.msra.mxu0 %v1350
        %1407 = vmatpush.msra.mxu0 %v1347
        %1408 = vmatpush.msra.mxu0 %v1344
        %1409 = vmatmul.f32.gmra.mxu0 %v1365
        %v1410 = vpop.f32.mrf.mxu0
        %v1411 = vadd.f32 0.0, %v1410
        %1412 = vmatmul.f32.gmra.mxu0 %v1368
        %v1413 = vpop.f32.mrf.mxu0
        %v1414 = vadd.f32 0.0, %v1413
        %1415 = vdwg.mxu0
        %1416 = vmatpush.msra.mxu0 0.0
        %1417 = vmatpush.msra.mxu0 0.0
        %1418 = vmatpush.msra.mxu0 0.0
        %1419 = vmatpush.msra.mxu0 0.0
        %1420 = vmatpush.msra.mxu0 0.0
        %1421 = vmatpush.msra.mxu0 0.0
        %1422 = vmatpush.msra.mxu0 0.0
        %1423 = vmatpush.msra.mxu0 0.0
        %1424 = vmatpush.msra.mxu0 0.0
        %1425 = vmatpush.msra.mxu0 0.0
        %1426 = vmatpush.msra.mxu0 0.0
        %1427 = vmatpush.msra.mxu0 0.0
        %1428 = vmatpush.msra.mxu0 0.0
        %1429 = vmatpush.msra.mxu0 %v1351
        %1430 = vmatpush.msra.mxu0 %v1348
        %1431 = vmatpush.msra.mxu0 %v1345
        %1432 = vmatmul.f32.gmra.mxu0 %v1365
        %v1433 = vpop.f32.mrf.mxu0
        %v1434 = vadd.f32 0.0, %v1433
        %1435 = vmatmul.f32.gmra.mxu0 %v1368
        %v1436 = vpop.f32.mrf.mxu0
        %v1437 = vadd.f32 0.0, %v1436
        %1438 = vdwg.mxu0
        %v1439 = vld [vmem:[#allocation7] sm:$0xff]
        %v1440 = vld [vmem:[#allocation7 + $0x8] sm:$0xff]
        %v1441 = vld [vmem:[#allocation7 + $0x10] sm:$0xff]
        %v1442 = vld [vmem:[#allocation7 + $0x18] sm:$0xff]
        %v1443 = vld [vmem:[#allocation7 + $0x20] sm:$0xff]
        %v1444 = vld [vmem:[#allocation7 + $0x28] sm:$0xff]
        %v1445 = vld [vmem:[#allocation7 + $0x30] sm:$0xff]
        %v1446 = vld [vmem:[#allocation7 + $0x38] sm:$0xff]
        %v1447 = vld [vmem:[#allocation7 + $0x40] sm:$0xff]
        %v1448 = vld [vmem:[#allocation7 + $0x48] sm:$0xff]
        %v1449 = vld [vmem:[#allocation7 + $0x50] sm:$0xff]
        %v1450 = vld [vmem:[#allocation7 + $0x58] sm:$0xff]
        %v1451 = vld [vmem:[#allocation7 + $0x60] sm:$0xff]
        %v1452 = vld [vmem:[#allocation7 + $0x68] sm:$0xff]
        %v1453 = vld [vmem:[#allocation7 + $0x70] sm:$0xff]
        %v1454 = vld [vmem:[#allocation7 + $0x78] sm:$0xff]
        %v1455 = vld [vmem:[#allocation7 + $0x80] sm:$0xff]
        %v1456 = vld [vmem:[#allocation7 + $0x88] sm:$0xff]
        %v1457 = vld [vmem:[#allocation7 + $0x90] sm:$0xff]
        %v1458 = vld [vmem:[#allocation7 + $0x98] sm:$0xff]
        %v1459 = vld [vmem:[#allocation7 + $0xa0] sm:$0xff]
        %v1460 = vld [vmem:[#allocation7 + $0xa8] sm:$0xff]
        %v1461 = vld [vmem:[#allocation7 + $0xb0] sm:$0xff]
        %v1462 = vld [vmem:[#allocation7 + $0xb8] sm:$0xff]
        %v1463 = vld [vmem:[#allocation7 + $0xc0] sm:$0xff]
        %v1464 = vld [vmem:[#allocation7 + $0xc8] sm:$0xff]
        %v1465 = vld [vmem:[#allocation7 + $0xd0] sm:$0xff]
        %v1466 = vld [vmem:[#allocation7 + $0xd8] sm:$0xff]
        %v1467 = vld [vmem:[#allocation7 + $0xe0] sm:$0xff]
        %v1468 = vld [vmem:[#allocation7 + $0xe8] sm:$0xff]
        %v1469 = vld [vmem:[#allocation7 + $0xf0] sm:$0xff]
        %v1470 = vld [vmem:[#allocation7 + $0xf8] sm:$0xff]
        %v1471 = vld [vmem:[#allocation7 + $0x100] sm:$0xff]
        %v1472 = vld [vmem:[#allocation7 + $0x108] sm:$0xff]
        %v1473 = vld [vmem:[#allocation7 + $0x110] sm:$0xff]
        %v1474 = vld [vmem:[#allocation7 + $0x118] sm:$0xff]
        %v1475 = vld [vmem:[#allocation7 + $0x120] sm:$0xff]
        %v1476 = vld [vmem:[#allocation7 + $0x128] sm:$0xff]
        %v1477 = vld [vmem:[#allocation7 + $0x130] sm:$0xff]
        %v1478 = vld [vmem:[#allocation7 + $0x138] sm:$0xff]
        %v1479 = vld [vmem:[#allocation7 + $0x140] sm:$0xff]
        %v1480 = vld [vmem:[#allocation7 + $0x148] sm:$0xff]
        %v1481 = vld [vmem:[#allocation7 + $0x150] sm:$0xff]
        %v1482 = vld [vmem:[#allocation7 + $0x158] sm:$0xff]
        %v1483 = vld [vmem:[#allocation7 + $0x160] sm:$0xff]
        %v1484 = vld [vmem:[#allocation7 + $0x168] sm:$0xff]
        %v1485 = vld [vmem:[#allocation7 + $0x170] sm:$0xff]
        %v1486 = vld [vmem:[#allocation7 + $0x178] sm:$0xff]
        %v1487 = vld [vmem:[#allocation7 + $0x180] sm:$0xff]
        %v1488 = vld [vmem:[#allocation7 + $0x188] sm:$0xff]
        %v1489 = vld [vmem:[#allocation7 + $0x190] sm:$0xff]
        %v1490 = vld [vmem:[#allocation7 + $0x198] sm:$0xff]
        %v1491 = vld [vmem:[#allocation7 + $0x1a0] sm:$0xff]
        %v1492 = vld [vmem:[#allocation7 + $0x1a8] sm:$0xff]
        %v1493 = vld [vmem:[#allocation7 + $0x1b0] sm:$0xff]
        %v1494 = vld [vmem:[#allocation7 + $0x1b8] sm:$0xff]
        %v1495 = vld [vmem:[#allocation7 + $0x1c0] sm:$0xff]
        %v1496 = vld [vmem:[#allocation7 + $0x1c8] sm:$0xff]
        %v1497 = vld [vmem:[#allocation7 + $0x1d0] sm:$0xff]
        %v1498 = vld [vmem:[#allocation7 + $0x1d8] sm:$0xff]
        %v1499 = vld [vmem:[#allocation7 + $0x1e0] sm:$0xff]
        %v1500 = vld [vmem:[#allocation7 + $0x1e8] sm:$0xff]
        %v1501 = vld [vmem:[#allocation7 + $0x1f0] sm:$0xff]
        %v1502 = vld [vmem:[#allocation7 + $0x1f8] sm:$0xff]
        %v1503 = vld [vmem:[#allocation7 + $0x200] sm:$0xff]
        %v1504 = vld [vmem:[#allocation7 + $0x208] sm:$0xff]
        %v1505 = vld [vmem:[#allocation7 + $0x210] sm:$0xff]
        %v1506 = vld [vmem:[#allocation7 + $0x218] sm:$0xff]
        %v1507 = vld [vmem:[#allocation7 + $0x220] sm:$0xff]
        %v1508 = vld [vmem:[#allocation7 + $0x228] sm:$0xff]
        %v1509 = vld [vmem:[#allocation7 + $0x230] sm:$0xff]
        %v1510 = vld [vmem:[#allocation7 + $0x238] sm:$0xff]
        %v1511 = vld [vmem:[#allocation7 + $0x240] sm:$0xff]
        %v1512 = vld [vmem:[#allocation7 + $0x248] sm:$0xff]
        %v1513 = vld [vmem:[#allocation7 + $0x250] sm:$0xff]
        %v1514 = vld [vmem:[#allocation7 + $0x258] sm:$0xff]
        %v1515 = vld [vmem:[#allocation7 + $0x260] sm:$0xff]
        %v1516 = vld [vmem:[#allocation7 + $0x268] sm:$0xff]
        %v1517 = vld [vmem:[#allocation7 + $0x270] sm:$0xff]
        %v1518 = vld [vmem:[#allocation7 + $0x278] sm:$0xff]
        %v1519 = vld [vmem:[#allocation7 + $0x280] sm:$0xff]
        %v1520 = vld [vmem:[#allocation7 + $0x288] sm:$0xff]
        %v1521 = vld [vmem:[#allocation7 + $0x290] sm:$0xff]
        %v1522 = vld [vmem:[#allocation7 + $0x298] sm:$0xff]
        %v1523 = vld [vmem:[#allocation7 + $0x2a0] sm:$0xff]
        %v1524 = vld [vmem:[#allocation7 + $0x2a8] sm:$0xff]
        %v1525 = vld [vmem:[#allocation7 + $0x2b0] sm:$0xff]
        %v1526 = vld [vmem:[#allocation7 + $0x2b8] sm:$0xff]
        %v1527 = vld [vmem:[#allocation7 + $0x2c0] sm:$0xff]
        %v1528 = vld [vmem:[#allocation7 + $0x2c8] sm:$0xff]
        %v1529 = vld [vmem:[#allocation7 + $0x2d0] sm:$0xff]
        %v1530 = vld [vmem:[#allocation7 + $0x2d8] sm:$0xff]
        %v1531 = vld [vmem:[#allocation7 + $0x2e0] sm:$0xff]
        %v1532 = vld [vmem:[#allocation7 + $0x2e8] sm:$0xff]
        %v1533 = vld [vmem:[#allocation7 + $0x2f0] sm:$0xff]
        %v1534 = vld [vmem:[#allocation7 + $0x2f8] sm:$0xff]
        %1535 = vmatpush.msra.mxu0 %v1469
        %1536 = vmatpush.msra.mxu0 %v1467
        %1537 = vmatpush.msra.mxu0 %v1465
        %1538 = vmatpush.msra.mxu0 %v1463
        %1539 = vmatpush.msra.mxu0 %v1461
        %1540 = vmatpush.msra.mxu0 %v1459
        %1541 = vmatpush.msra.mxu0 %v1457
        %1542 = vmatpush.msra.mxu0 %v1455
        %1543 = vmatpush.msra.mxu0 %v1453
        %1544 = vmatpush.msra.mxu0 %v1451
        %1545 = vmatpush.msra.mxu0 %v1449
        %1546 = vmatpush.msra.mxu0 %v1447
        %1547 = vmatpush.msra.mxu0 %v1445
        %1548 = vmatpush.msra.mxu0 %v1443
        %1549 = vmatpush.msra.mxu0 %v1441
        %1550 = vmatpush.msra.mxu0 %v1439
        %1551 = vmatmul.f32.gmra.mxu0 %v1388
        %v1552 = vpop.f32.mrf.mxu0
        %v1553 = vadd.f32 0.0, %v1552
        %1554 = vmatmul.f32.gmra.mxu0 %v1391
        %v1555 = vpop.f32.mrf.mxu0
        %v1556 = vadd.f32 0.0, %v1555
        %1557 = vdwg.mxu0
        %1558 = vmatpush.msra.mxu0 %v1501
        %1559 = vmatpush.msra.mxu0 %v1499
        %1560 = vmatpush.msra.mxu0 %v1497
        %1561 = vmatpush.msra.mxu0 %v1495
        %1562 = vmatpush.msra.mxu0 %v1493
        %1563 = vmatpush.msra.mxu0 %v1491
        %1564 = vmatpush.msra.mxu0 %v1489
        %1565 = vmatpush.msra.mxu0 %v1487
        %1566 = vmatpush.msra.mxu0 %v1485
        %1567 = vmatpush.msra.mxu0 %v1483
        %1568 = vmatpush.msra.mxu0 %v1481
        %1569 = vmatpush.msra.mxu0 %v1479
        %1570 = vmatpush.msra.mxu0 %v1477
        %1571 = vmatpush.msra.mxu0 %v1475
        %1572 = vmatpush.msra.mxu0 %v1473
        %1573 = vmatpush.msra.mxu0 %v1471
        %1574 = vmatmul.f32.gmra.mxu0 %v1411
        %v1575 = vpop.f32.mrf.mxu0
        %v1576 = vadd.f32 %v1553, %v1575
        %1577 = vmatmul.f32.gmra.mxu0 %v1414
        %v1578 = vpop.f32.mrf.mxu0
        %v1579 = vadd.f32 %v1556, %v1578
        %1580 = vdwg.mxu0
        %1581 = vmatpush.msra.mxu0 %v1533
        %1582 = vmatpush.msra.mxu0 %v1531
        %1583 = vmatpush.msra.mxu0 %v1529
        %1584 = vmatpush.msra.mxu0 %v1527
        %1585 = vmatpush.msra.mxu0 %v1525
        %1586 = vmatpush.msra.mxu0 %v1523
        %1587 = vmatpush.msra.mxu0 %v1521
        %1588 = vmatpush.msra.mxu0 %v1519
        %1589 = vmatpush.msra.mxu0 %v1517
        %1590 = vmatpush.msra.mxu0 %v1515
        %1591 = vmatpush.msra.mxu0 %v1513
        %1592 = vmatpush.msra.mxu0 %v1511
        %1593 = vmatpush.msra.mxu0 %v1509
        %1594 = vmatpush.msra.mxu0 %v1507
        %1595 = vmatpush.msra.mxu0 %v1505
        %1596 = vmatpush.msra.mxu0 %v1503
        %1597 = vmatmul.f32.gmra.mxu0 %v1434
        %v1598 = vpop.f32.mrf.mxu0
        %v1599 = vadd.f32 %v1576, %v1598
        %1600 = vmatmul.f32.gmra.mxu0 %v1437
        %v1601 = vpop.f32.mrf.mxu0
        %v1602 = vadd.f32 %v1579, %v1601
        %1603 = vdwg.mxu0
        %1604 = vmatpush.msra.mxu0 %v1470
        %1605 = vmatpush.msra.mxu0 %v1468
        %1606 = vmatpush.msra.mxu0 %v1466
        %1607 = vmatpush.msra.mxu0 %v1464
        %1608 = vmatpush.msra.mxu0 %v1462
        %1609 = vmatpush.msra.mxu0 %v1460
        %1610 = vmatpush.msra.mxu0 %v1458
        %1611 = vmatpush.msra.mxu0 %v1456
        %1612 = vmatpush.msra.mxu0 %v1454
        %1613 = vmatpush.msra.mxu0 %v1452
        %1614 = vmatpush.msra.mxu0 %v1450
        %1615 = vmatpush.msra.mxu0 %v1448
        %1616 = vmatpush.msra.mxu0 %v1446
        %1617 = vmatpush.msra.mxu0 %v1444
        %1618 = vmatpush.msra.mxu0 %v1442
        %1619 = vmatpush.msra.mxu0 %v1440
        %1620 = vmatmul.f32.gmra.mxu0 %v1388
        %v1621 = vpop.f32.mrf.mxu0
        %v1622 = vadd.f32 0.0, %v1621
        %1623 = vmatmul.f32.gmra.mxu0 %v1391
        %v1624 = vpop.f32.mrf.mxu0
        %v1625 = vadd.f32 0.0, %v1624
        %1626 = vdwg.mxu0
        %1627 = vmatpush.msra.mxu0 %v1502
        %1628 = vmatpush.msra.mxu0 %v1500
        %1629 = vmatpush.msra.mxu0 %v1498
        %1630 = vmatpush.msra.mxu0 %v1496
        %1631 = vmatpush.msra.mxu0 %v1494
        %1632 = vmatpush.msra.mxu0 %v1492
        %1633 = vmatpush.msra.mxu0 %v1490
        %1634 = vmatpush.msra.mxu0 %v1488
        %1635 = vmatpush.msra.mxu0 %v1486
        %1636 = vmatpush.msra.mxu0 %v1484
        %1637 = vmatpush.msra.mxu0 %v1482
        %1638 = vmatpush.msra.mxu0 %v1480
        %1639 = vmatpush.msra.mxu0 %v1478
        %1640 = vmatpush.msra.mxu0 %v1476
        %1641 = vmatpush.msra.mxu0 %v1474
        %1642 = vmatpush.msra.mxu0 %v1472
        %1643 = vmatmul.f32.gmra.mxu0 %v1411
        %v1644 = vpop.f32.mrf.mxu0
        %v1645 = vadd.f32 %v1622, %v1644
        %1646 = vmatmul.f32.gmra.mxu0 %v1414
        %v1647 = vpop.f32.mrf.mxu0
        %v1648 = vadd.f32 %v1625, %v1647
        %1649 = vdwg.mxu0
        %1650 = vmatpush.msra.mxu0 %v1534
        %1651 = vmatpush.msra.mxu0 %v1532
        %1652 = vmatpush.msra.mxu0 %v1530
        %1653 = vmatpush.msra.mxu0 %v1528
        %1654 = vmatpush.msra.mxu0 %v1526
        %1655 = vmatpush.msra.mxu0 %v1524
        %1656 = vmatpush.msra.mxu0 %v1522
        %1657 = vmatpush.msra.mxu0 %v1520
        %1658 = vmatpush.msra.mxu0 %v1518
        %1659 = vmatpush.msra.mxu0 %v1516
        %1660 = vmatpush.msra.mxu0 %v1514
        %1661 = vmatpush.msra.mxu0 %v1512
        %1662 = vmatpush.msra.mxu0 %v1510
        %1663 = vmatpush.msra.mxu0 %v1508
        %1664 = vmatpush.msra.mxu0 %v1506
        %1665 = vmatpush.msra.mxu0 %v1504
        %1666 = vmatmul.f32.gmra.mxu0 %v1434
        %v1667 = vpop.f32.mrf.mxu0
        %v1668 = vadd.f32 %v1645, %v1667
        %1669 = vmatmul.f32.gmra.mxu0 %v1437
        %v1670 = vpop.f32.mrf.mxu0
        %v1671 = vadd.f32 %v1648, %v1670
        %1672 = vdwg.mxu0
        %1673 = vst [vmem:[#allocation2] sm:$0xff] %v1599
        %vm1674 = vcmask 523264
        %1675 = vst.msk [vmem:[#allocation2 + $0x8] sm:$0xff] %vm1674, %v1668
        %1676 = vst [vmem:[#allocation2 + $0x10] sm:$0xf] %v1602
        %vm1677 = vcmask 519168
        %1678 = vst.msk [vmem:[#allocation2 + $0x18] sm:$0xf] %vm1677, %v1671
        %v1679 = vld [vmem:[#allocation2] sm:$0xff]
        %v1680 = vld [vmem:[#allocation2 + $0x8] sm:$0xff]
        %v1681 = vld [vmem:[#allocation9] sm:$0xff]
        %v1682 = vld [vmem:[#allocation9 + $0x8] sm:$0xff]
        %v1683 = vld [vmem:[#allocation9 + $0x10] sm:$0xff]
        %v1684 = vld [vmem:[#allocation9 + $0x18] sm:$0xff]
        %v1685 = vld [vmem:[#allocation9 + $0x20] sm:$0xff]
        %v1686 = vld [vmem:[#allocation9 + $0x28] sm:$0xff]
        %v1687 = vld [vmem:[#allocation9 + $0x30] sm:$0xff]
        %v1688 = vld [vmem:[#allocation9 + $0x38] sm:$0xff]
        %v1689 = vld [vmem:[#allocation9 + $0x40] sm:$0xff]
        %v1690 = vld [vmem:[#allocation9 + $0x48] sm:$0xff]
        %v1691 = vld [vmem:[#allocation9 + $0x50] sm:$0xff]
        %v1692 = vld [vmem:[#allocation9 + $0x58] sm:$0xff]
        %v1693 = vld [vmem:[#allocation9 + $0x60] sm:$0xff]
        %v1694 = vld [vmem:[#allocation9 + $0x68] sm:$0xff]
        %v1695 = vld [vmem:[#allocation9 + $0x70] sm:$0xff]
        %v1696 = vld [vmem:[#allocation9 + $0x78] sm:$0xff]
        %v1697 = vld [vmem:[#allocation9 + $0x80] sm:$0xff]
        %v1698 = vld [vmem:[#allocation9 + $0x88] sm:$0xff]
        %v1699 = vld [vmem:[#allocation9 + $0x90] sm:$0xff]
        %v1700 = vld [vmem:[#allocation9 + $0x98] sm:$0xff]
        %v1701 = vld [vmem:[#allocation9 + $0xa0] sm:$0xff]
        %v1702 = vld [vmem:[#allocation9 + $0xa8] sm:$0xff]
        %v1703 = vld [vmem:[#allocation9 + $0xb0] sm:$0xff]
        %v1704 = vld [vmem:[#allocation9 + $0xb8] sm:$0xff]
        %v1705 = vld [vmem:[#allocation2] sm:$0xfe]
        %v1706 = vld [vmem:[#allocation2 + $0x8] sm:$0xfe]
        %v1707 = vld [vmem:[#allocation2 + $0x10] sm:$0x1]
        %v1708 = vld [vmem:[#allocation2 + $0x18] sm:$0x1]
        %s1709 = scalar_lea.vmem [#allocation9], 192
        %v1710 = vld [vmem:[%s1709] sm:$0xff]
        %v1711 = vld [vmem:[%s1709 + $0x8] sm:$0xff]
        %v1712 = vld [vmem:[%s1709 + $0x10] sm:$0xff]
        %v1713 = vld [vmem:[%s1709 + $0x18] sm:$0xff]
        %v1714 = vld [vmem:[%s1709 + $0x20] sm:$0xff]
        %v1715 = vld [vmem:[%s1709 + $0x28] sm:$0xff]
        %v1716 = vld [vmem:[%s1709 + $0x30] sm:$0xff]
        %v1717 = vld [vmem:[%s1709 + $0x38] sm:$0xff]
        %v1718 = vld [vmem:[%s1709 + $0x40] sm:$0xff]
        %v1719 = vld [vmem:[%s1709 + $0x48] sm:$0xff]
        %v1720 = vld [vmem:[%s1709 + $0x50] sm:$0xff]
        %v1721 = vld [vmem:[%s1709 + $0x58] sm:$0xff]
        %v1722 = vld [vmem:[%s1709 + $0x60] sm:$0xff]
        %v1723 = vld [vmem:[%s1709 + $0x68] sm:$0xff]
        %v1724 = vld [vmem:[%s1709 + $0x70] sm:$0xff]
        %v1725 = vld [vmem:[%s1709 + $0x78] sm:$0xff]
        %v1726 = vld [vmem:[%s1709 + $0x80] sm:$0xff]
        %v1727 = vld [vmem:[%s1709 + $0x88] sm:$0xff]
        %v1728 = vld [vmem:[%s1709 + $0x90] sm:$0xff]
        %v1729 = vld [vmem:[%s1709 + $0x98] sm:$0xff]
        %v1730 = vld [vmem:[%s1709 + $0xa0] sm:$0xff]
        %v1731 = vld [vmem:[%s1709 + $0xa8] sm:$0xff]
        %v1732 = vld [vmem:[%s1709 + $0xb0] sm:$0xff]
        %v1733 = vld [vmem:[%s1709 + $0xb8] sm:$0xff]
        %vm1738 = vcmask 1046528
        %v1739 = vrot.slane %v1705, 1
        %v1740 = vrot.slane %v1707, 1
        %v1741 = vsel %vm1738, %v1739, %v1740
        %v1742 = vrot.slane %v1706, 1
        %v1743 = vrot.slane %v1708, 1
        %v1744 = vsel %vm1738, %v1742, %v1743
        %v1746 = vsel %vm1674, %v1744, 0
        %1748 = vmatpush.msra.mxu0 %v1725
        %1749 = vmatpush.msra.mxu0 %v1724
        %1750 = vmatpush.msra.mxu0 %v1723
        %1751 = vmatpush.msra.mxu0 %v1722
        %1752 = vmatpush.msra.mxu0 %v1721
        %1753 = vmatpush.msra.mxu0 %v1720
        %1754 = vmatpush.msra.mxu0 %v1719
        %1755 = vmatpush.msra.mxu0 %v1718
        %1756 = vmatpush.msra.mxu0 %v1717
        %1757 = vmatpush.msra.mxu0 %v1716
        %1758 = vmatpush.msra.mxu0 %v1715
        %1759 = vmatpush.msra.mxu0 %v1714
        %1760 = vmatpush.msra.mxu0 %v1713
        %1761 = vmatpush.msra.mxu0 %v1712
        %1762 = vmatpush.msra.mxu0 %v1711
        %1763 = vmatpush.msra.mxu0 %v1710
        %1764 = vmatmul.f32.gmra.mxu0 %v1741
        %v1765 = vpop.f32.mrf.mxu0
        %v1766 = vadd.f32 0.0, %v1765
        %1767 = vdwg.mxu0
        %1768 = vmatpush.msra.mxu0 0.0
        %1769 = vmatpush.msra.mxu0 0.0
        %1770 = vmatpush.msra.mxu0 0.0
        %1771 = vmatpush.msra.mxu0 0.0
        %1772 = vmatpush.msra.mxu0 0.0
        %1773 = vmatpush.msra.mxu0 0.0
        %1774 = vmatpush.msra.mxu0 0.0
        %1775 = vmatpush.msra.mxu0 0.0
        %1776 = vmatpush.msra.mxu0 %v1733
        %1777 = vmatpush.msra.mxu0 %v1732
        %1778 = vmatpush.msra.mxu0 %v1731
        %1779 = vmatpush.msra.mxu0 %v1730
        %1780 = vmatpush.msra.mxu0 %v1729
        %1781 = vmatpush.msra.mxu0 %v1728
        %1782 = vmatpush.msra.mxu0 %v1727
        %1783 = vmatpush.msra.mxu0 %v1726
        %1784 = vmatmul.f32.gmra.mxu0 %v1746
        %v1785 = vpop.f32.mrf.mxu0
        %v1786 = vadd.f32 %v1766, %v1785
        %1787 = vdwg.mxu0
        %v1789 = vsel %vm1674, %v1680, 0
        %1791 = vmatpush.msra.mxu0 %v1696
        %1792 = vmatpush.msra.mxu0 %v1695
        %1793 = vmatpush.msra.mxu0 %v1694
        %1794 = vmatpush.msra.mxu0 %v1693
        %1795 = vmatpush.msra.mxu0 %v1692
        %1796 = vmatpush.msra.mxu0 %v1691
        %1797 = vmatpush.msra.mxu0 %v1690
        %1798 = vmatpush.msra.mxu0 %v1689
        %1799 = vmatpush.msra.mxu0 %v1688
        %1800 = vmatpush.msra.mxu0 %v1687
        %1801 = vmatpush.msra.mxu0 %v1686
        %1802 = vmatpush.msra.mxu0 %v1685
        %1803 = vmatpush.msra.mxu0 %v1684
        %1804 = vmatpush.msra.mxu0 %v1683
        %1805 = vmatpush.msra.mxu0 %v1682
        %1806 = vmatpush.msra.mxu0 %v1681
        %1807 = vmatmul.f32.gmra.mxu0 %v1679
        %v1808 = vpop.f32.mrf.mxu0
        %v1809 = vadd.f32 %v1786, %v1808
        %1810 = vdwg.mxu0
        %1811 = vmatpush.msra.mxu0 0.0
        %1812 = vmatpush.msra.mxu0 0.0
        %1813 = vmatpush.msra.mxu0 0.0
        %1814 = vmatpush.msra.mxu0 0.0
        %1815 = vmatpush.msra.mxu0 0.0
        %1816 = vmatpush.msra.mxu0 0.0
        %1817 = vmatpush.msra.mxu0 0.0
        %1818 = vmatpush.msra.mxu0 0.0
        %1819 = vmatpush.msra.mxu0 %v1704
        %1820 = vmatpush.msra.mxu0 %v1703
        %1821 = vmatpush.msra.mxu0 %v1702
        %1822 = vmatpush.msra.mxu0 %v1701
        %1823 = vmatpush.msra.mxu0 %v1700
        %1824 = vmatpush.msra.mxu0 %v1699
        %1825 = vmatpush.msra.mxu0 %v1698
        %1826 = vmatpush.msra.mxu0 %v1697
        %1827 = vmatmul.f32.gmra.mxu0 %v1789
        %v1828 = vpop.f32.mrf.mxu0
        %v1829 = vadd.f32 %v1809, %v1828
        %1830 = vdwg.mxu0
        %v1831 = vld [vmem:[#allocation2] sm:$0xfc]
        %v1832 = vld [vmem:[#allocation2 + $0x8] sm:$0xfc]
        %v1833 = vld [vmem:[#allocation2 + $0x10] sm:$0x3]
        %v1834 = vld [vmem:[#allocation2 + $0x18] sm:$0x3]
        %s1835 = scalar_lea.vmem [#allocation9], 384
        %v1836 = vld [vmem:[%s1835] sm:$0xff]
        %v1837 = vld [vmem:[%s1835 + $0x8] sm:$0xff]
        %v1838 = vld [vmem:[%s1835 + $0x10] sm:$0xff]
        %v1839 = vld [vmem:[%s1835 + $0x18] sm:$0xff]
        %v1840 = vld [vmem:[%s1835 + $0x20] sm:$0xff]
        %v1841 = vld [vmem:[%s1835 + $0x28] sm:$0xff]
        %v1842 = vld [vmem:[%s1835 + $0x30] sm:$0xff]
        %v1843 = vld [vmem:[%s1835 + $0x38] sm:$0xff]
        %v1844 = vld [vmem:[%s1835 + $0x40] sm:$0xff]
        %v1845 = vld [vmem:[%s1835 + $0x48] sm:$0xff]
        %v1846 = vld [vmem:[%s1835 + $0x50] sm:$0xff]
        %v1847 = vld [vmem:[%s1835 + $0x58] sm:$0xff]
        %v1848 = vld [vmem:[%s1835 + $0x60] sm:$0xff]
        %v1849 = vld [vmem:[%s1835 + $0x68] sm:$0xff]
        %v1850 = vld [vmem:[%s1835 + $0x70] sm:$0xff]
        %v1851 = vld [vmem:[%s1835 + $0x78] sm:$0xff]
        %v1852 = vld [vmem:[%s1835 + $0x80] sm:$0xff]
        %v1853 = vld [vmem:[%s1835 + $0x88] sm:$0xff]
        %v1854 = vld [vmem:[%s1835 + $0x90] sm:$0xff]
        %v1855 = vld [vmem:[%s1835 + $0x98] sm:$0xff]
        %v1856 = vld [vmem:[%s1835 + $0xa0] sm:$0xff]
        %v1857 = vld [vmem:[%s1835 + $0xa8] sm:$0xff]
        %v1858 = vld [vmem:[%s1835 + $0xb0] sm:$0xff]
        %v1859 = vld [vmem:[%s1835 + $0xb8] sm:$0xff]
        %vm1864 = vcmask 1045504
        %v1865 = vrot.slane %v1831, 2
        %v1866 = vrot.slane %v1833, 2
        %v1867 = vsel %vm1864, %v1865, %v1866
        %v1868 = vrot.slane %v1832, 2
        %v1869 = vrot.slane %v1834, 2
        %v1870 = vsel %vm1864, %v1868, %v1869
        %v1872 = vsel %vm1674, %v1870, 0
        %1874 = vmatpush.msra.mxu0 %v1851
        %1875 = vmatpush.msra.mxu0 %v1850
        %1876 = vmatpush.msra.mxu0 %v1849
        %1877 = vmatpush.msra.mxu0 %v1848
        %1878 = vmatpush.msra.mxu0 %v1847
        %1879 = vmatpush.msra.mxu0 %v1846
        %1880 = vmatpush.msra.mxu0 %v1845
        %1881 = vmatpush.msra.mxu0 %v1844
        %1882 = vmatpush.msra.mxu0 %v1843
        %1883 = vmatpush.msra.mxu0 %v1842
        %1884 = vmatpush.msra.mxu0 %v1841
        %1885 = vmatpush.msra.mxu0 %v1840
        %1886 = vmatpush.msra.mxu0 %v1839
        %1887 = vmatpush.msra.mxu0 %v1838
        %1888 = vmatpush.msra.mxu0 %v1837
        %1889 = vmatpush.msra.mxu0 %v1836
        %1890 = vmatmul.f32.gmra.mxu0 %v1867
        %v1891 = vpop.f32.mrf.mxu0
        %v1892 = vadd.f32 0.0, %v1891
        %1893 = vdwg.mxu0
        %1894 = vmatpush.msra.mxu0 0.0
        %1895 = vmatpush.msra.mxu0 0.0
        %1896 = vmatpush.msra.mxu0 0.0
        %1897 = vmatpush.msra.mxu0 0.0
        %1898 = vmatpush.msra.mxu0 0.0
        %1899 = vmatpush.msra.mxu0 0.0
        %1900 = vmatpush.msra.mxu0 0.0
        %1901 = vmatpush.msra.mxu0 0.0
        %1902 = vmatpush.msra.mxu0 %v1859
        %1903 = vmatpush.msra.mxu0 %v1858
        %1904 = vmatpush.msra.mxu0 %v1857
        %1905 = vmatpush.msra.mxu0 %v1856
        %1906 = vmatpush.msra.mxu0 %v1855
        %1907 = vmatpush.msra.mxu0 %v1854
        %1908 = vmatpush.msra.mxu0 %v1853
        %1909 = vmatpush.msra.mxu0 %v1852
        %1910 = vmatmul.f32.gmra.mxu0 %v1872
        %v1911 = vpop.f32.mrf.mxu0
        %v1912 = vadd.f32 %v1892, %v1911
        %1913 = vdwg.mxu0
        %v1914 = vadd.f32 %v1829, %v1912
        %v1915 = vld [vmem:[#allocation2] sm:$0xf8]
        %v1916 = vld [vmem:[#allocation2 + $0x8] sm:$0xf8]
        %v1917 = vld [vmem:[#allocation2 + $0x10] sm:$0x7]
        %v1918 = vld [vmem:[#allocation2 + $0x18] sm:$0x7]
        %s1919 = scalar_lea.vmem [#allocation9], 576
        %v1920 = vld [vmem:[%s1919] sm:$0xff]
        %v1921 = vld [vmem:[%s1919 + $0x8] sm:$0xff]
        %v1922 = vld [vmem:[%s1919 + $0x10] sm:$0xff]
        %v1923 = vld [vmem:[%s1919 + $0x18] sm:$0xff]
        %v1924 = vld [vmem:[%s1919 + $0x20] sm:$0xff]
        %v1925 = vld [vmem:[%s1919 + $0x28] sm:$0xff]
        %v1926 = vld [vmem:[%s1919 + $0x30] sm:$0xff]
        %v1927 = vld [vmem:[%s1919 + $0x38] sm:$0xff]
        %v1928 = vld [vmem:[%s1919 + $0x40] sm:$0xff]
        %v1929 = vld [vmem:[%s1919 + $0x48] sm:$0xff]
        %v1930 = vld [vmem:[%s1919 + $0x50] sm:$0xff]
        %v1931 = vld [vmem:[%s1919 + $0x58] sm:$0xff]
        %v1932 = vld [vmem:[%s1919 + $0x60] sm:$0xff]
        %v1933 = vld [vmem:[%s1919 + $0x68] sm:$0xff]
        %v1934 = vld [vmem:[%s1919 + $0x70] sm:$0xff]
        %v1935 = vld [vmem:[%s1919 + $0x78] sm:$0xff]
        %v1936 = vld [vmem:[%s1919 + $0x80] sm:$0xff]
        %v1937 = vld [vmem:[%s1919 + $0x88] sm:$0xff]
        %v1938 = vld [vmem:[%s1919 + $0x90] sm:$0xff]
        %v1939 = vld [vmem:[%s1919 + $0x98] sm:$0xff]
        %v1940 = vld [vmem:[%s1919 + $0xa0] sm:$0xff]
        %v1941 = vld [vmem:[%s1919 + $0xa8] sm:$0xff]
        %v1942 = vld [vmem:[%s1919 + $0xb0] sm:$0xff]
        %v1943 = vld [vmem:[%s1919 + $0xb8] sm:$0xff]
        %vm1948 = vcmask 1044480
        %v1949 = vrot.slane %v1915, 3
        %v1950 = vrot.slane %v1917, 3
        %v1951 = vsel %vm1948, %v1949, %v1950
        %v1952 = vrot.slane %v1916, 3
        %v1953 = vrot.slane %v1918, 3
        %v1954 = vsel %vm1948, %v1952, %v1953
        %v1956 = vsel %vm1674, %v1954, 0
        %1958 = vmatpush.msra.mxu0 %v1935
        %1959 = vmatpush.msra.mxu0 %v1934
        %1960 = vmatpush.msra.mxu0 %v1933
        %1961 = vmatpush.msra.mxu0 %v1932
        %1962 = vmatpush.msra.mxu0 %v1931
        %1963 = vmatpush.msra.mxu0 %v1930
        %1964 = vmatpush.msra.mxu0 %v1929
        %1965 = vmatpush.msra.mxu0 %v1928
        %1966 = vmatpush.msra.mxu0 %v1927
        %1967 = vmatpush.msra.mxu0 %v1926
        %1968 = vmatpush.msra.mxu0 %v1925
        %1969 = vmatpush.msra.mxu0 %v1924
        %1970 = vmatpush.msra.mxu0 %v1923
        %1971 = vmatpush.msra.mxu0 %v1922
        %1972 = vmatpush.msra.mxu0 %v1921
        %1973 = vmatpush.msra.mxu0 %v1920
        %1974 = vmatmul.f32.gmra.mxu0 %v1951
        %v1975 = vpop.f32.mrf.mxu0
        %v1976 = vadd.f32 0.0, %v1975
        %1977 = vdwg.mxu0
        %1978 = vmatpush.msra.mxu0 0.0
        %1979 = vmatpush.msra.mxu0 0.0
        %1980 = vmatpush.msra.mxu0 0.0
        %1981 = vmatpush.msra.mxu0 0.0
        %1982 = vmatpush.msra.mxu0 0.0
        %1983 = vmatpush.msra.mxu0 0.0
        %1984 = vmatpush.msra.mxu0 0.0
        %1985 = vmatpush.msra.mxu0 0.0
        %1986 = vmatpush.msra.mxu0 %v1943
        %1987 = vmatpush.msra.mxu0 %v1942
        %1988 = vmatpush.msra.mxu0 %v1941
        %1989 = vmatpush.msra.mxu0 %v1940
        %1990 = vmatpush.msra.mxu0 %v1939
        %1991 = vmatpush.msra.mxu0 %v1938
        %1992 = vmatpush.msra.mxu0 %v1937
        %1993 = vmatpush.msra.mxu0 %v1936
        %1994 = vmatmul.f32.gmra.mxu0 %v1956
        %v1995 = vpop.f32.mrf.mxu0
        %v1996 = vadd.f32 %v1976, %v1995
        %1997 = vdwg.mxu0
        %v1998 = vadd.f32 %v1914, %v1996
        %v1999 = vld [vmem:[#allocation2] sm:$0xf0]
        %v2000 = vld [vmem:[#allocation2 + $0x8] sm:$0xf0]
        %v2001 = vld [vmem:[#allocation2 + $0x10] sm:$0xf]
        %v2002 = vld [vmem:[#allocation2 + $0x18] sm:$0xf]
        %s2003 = scalar_lea.vmem [#allocation9], 768
        %v2004 = vld [vmem:[%s2003] sm:$0xff]
        %v2005 = vld [vmem:[%s2003 + $0x8] sm:$0xff]
        %v2006 = vld [vmem:[%s2003 + $0x10] sm:$0xff]
        %v2007 = vld [vmem:[%s2003 + $0x18] sm:$0xff]
        %v2008 = vld [vmem:[%s2003 + $0x20] sm:$0xff]
        %v2009 = vld [vmem:[%s2003 + $0x28] sm:$0xff]
        %v2010 = vld [vmem:[%s2003 + $0x30] sm:$0xff]
        %v2011 = vld [vmem:[%s2003 + $0x38] sm:$0xff]
        %v2012 = vld [vmem:[%s2003 + $0x40] sm:$0xff]
        %v2013 = vld [vmem:[%s2003 + $0x48] sm:$0xff]
        %v2014 = vld [vmem:[%s2003 + $0x50] sm:$0xff]
        %v2015 = vld [vmem:[%s2003 + $0x58] sm:$0xff]
        %v2016 = vld [vmem:[%s2003 + $0x60] sm:$0xff]
        %v2017 = vld [vmem:[%s2003 + $0x68] sm:$0xff]
        %v2018 = vld [vmem:[%s2003 + $0x70] sm:$0xff]
        %v2019 = vld [vmem:[%s2003 + $0x78] sm:$0xff]
        %v2020 = vld [vmem:[%s2003 + $0x80] sm:$0xff]
        %v2021 = vld [vmem:[%s2003 + $0x88] sm:$0xff]
        %v2022 = vld [vmem:[%s2003 + $0x90] sm:$0xff]
        %v2023 = vld [vmem:[%s2003 + $0x98] sm:$0xff]
        %v2024 = vld [vmem:[%s2003 + $0xa0] sm:$0xff]
        %v2025 = vld [vmem:[%s2003 + $0xa8] sm:$0xff]
        %v2026 = vld [vmem:[%s2003 + $0xb0] sm:$0xff]
        %v2027 = vld [vmem:[%s2003 + $0xb8] sm:$0xff]
        %v2032 = vrot.slane %v1999, 4
        %v2033 = vrot.slane %v2001, 4
        %v2034 = vsel %vm779, %v2032, %v2033
        %v2035 = vrot.slane %v2000, 4
        %v2036 = vrot.slane %v2002, 4
        %v2037 = vsel %vm779, %v2035, %v2036
        %v2039 = vsel %vm1674, %v2037, 0
        %2041 = vmatpush.msra.mxu0 %v2019
        %2042 = vmatpush.msra.mxu0 %v2018
        %2043 = vmatpush.msra.mxu0 %v2017
        %2044 = vmatpush.msra.mxu0 %v2016
        %2045 = vmatpush.msra.mxu0 %v2015
        %2046 = vmatpush.msra.mxu0 %v2014
        %2047 = vmatpush.msra.mxu0 %v2013
        %2048 = vmatpush.msra.mxu0 %v2012
        %2049 = vmatpush.msra.mxu0 %v2011
        %2050 = vmatpush.msra.mxu0 %v2010
        %2051 = vmatpush.msra.mxu0 %v2009
        %2052 = vmatpush.msra.mxu0 %v2008
        %2053 = vmatpush.msra.mxu0 %v2007
        %2054 = vmatpush.msra.mxu0 %v2006
        %2055 = vmatpush.msra.mxu0 %v2005
        %2056 = vmatpush.msra.mxu0 %v2004
        %2057 = vmatmul.f32.gmra.mxu0 %v2034
        %v2058 = vpop.f32.mrf.mxu0
        %v2059 = vadd.f32 0.0, %v2058
        %2060 = vdwg.mxu0
        %2061 = vmatpush.msra.mxu0 0.0
        %2062 = vmatpush.msra.mxu0 0.0
        %2063 = vmatpush.msra.mxu0 0.0
        %2064 = vmatpush.msra.mxu0 0.0
        %2065 = vmatpush.msra.mxu0 0.0
        %2066 = vmatpush.msra.mxu0 0.0
        %2067 = vmatpush.msra.mxu0 0.0
        %2068 = vmatpush.msra.mxu0 0.0
        %2069 = vmatpush.msra.mxu0 %v2027
        %2070 = vmatpush.msra.mxu0 %v2026
        %2071 = vmatpush.msra.mxu0 %v2025
        %2072 = vmatpush.msra.mxu0 %v2024
        %2073 = vmatpush.msra.mxu0 %v2023
        %2074 = vmatpush.msra.mxu0 %v2022
        %2075 = vmatpush.msra.mxu0 %v2021
        %2076 = vmatpush.msra.mxu0 %v2020
        %2077 = vmatmul.f32.gmra.mxu0 %v2039
        %v2078 = vpop.f32.mrf.mxu0
        %v2079 = vadd.f32 %v2059, %v2078
        %2080 = vdwg.mxu0
        %v2081 = vadd.f32 %v1998, %v2079
        %v2082 = vld [vmem:[%s6] sm:$0x1]
        %v2084 = vperm.slane %v2082, 0
        %v2086 = vadd.f32 %v2081, %v2084
        %v2087 = vmax.f32 %v2086, 0.0
        %2088 = vst [vmem:[%s737] sm:$0xff] %v2087
        %v2089 = vld [vmem:[%s7] sm:$0xf]
        %vm2090 = vcmask 64512
        %v2092 = vsel %vm2090, %v2089, 0
        %2094 = vmatpush.msra.mxu0 0.0
        %2095 = vmatpush.msra.mxu0 0.0
        %2096 = vmatpush.msra.mxu0 0.0
        %2097 = vmatpush.msra.mxu0 0.0
        %2098 = vmatpush.msra.mxu0 0.0
        %2099 = vmatpush.msra.mxu0 0.0
        %2100 = vmatpush.msra.mxu0 0.0
        %2101 = vmatpush.msra.mxu0 0.0
        %2102 = vmatpush.msra.mxu0 0.0
        %2103 = vmatpush.msra.mxu0 0.0
        %2104 = vmatpush.msra.mxu0 0.0
        %2105 = vmatpush.msra.mxu0 0.0
        %2106 = vmatpush.msra.mxu0 0.0
        %2107 = vmatpush.msra.mxu0 0.0
        %2108 = vmatpush.msra.mxu0 0.0
        %2109 = vmatpush.msra.mxu0 %v2087
        %2110 = vmatmul.f32.gmra.mxu0 %v2092
        %v2111 = vpop.f32.mrf.mxu0
        %v2112 = vadd.f32 0.0, %v2111
        %2113 = vdwg.mxu0
        %v2114 = vld [vmem:[%s8] sm:$0xff]
        %v2115 = vld [vmem:[%s8 + $0x8] sm:$0xff]
        %v2116 = vld [vmem:[%s8 + $0x10] sm:$0xff]
        %v2117 = vld [vmem:[%s8 + $0x18] sm:$0xff]
        %v2118 = vld [vmem:[%s8 + $0x20] sm:$0xff]
        %v2119 = vld [vmem:[%s8 + $0x28] sm:$0xff]
        %v2120 = vld [vmem:[%s8 + $0x30] sm:$0xff]
        %v2121 = vld [vmem:[%s8 + $0x38] sm:$0xff]
        %v2122 = vld [vmem:[%s8 + $0x40] sm:$0xff]
        %v2123 = vld [vmem:[%s8 + $0x48] sm:$0xff]
        %v2124 = vld [vmem:[%s8 + $0x50] sm:$0xff]
        %v2125 = vld [vmem:[%s8 + $0x58] sm:$0xff]
        %v2126 = vld [vmem:[%s8 + $0x60] sm:$0xff]
        %v2127 = vld [vmem:[%s8 + $0x68] sm:$0xff]
        %v2128 = vld [vmem:[%s8 + $0x70] sm:$0xff]
        %v2129 = vld [vmem:[%s8 + $0x78] sm:$0xff]
        %2130 = vmatpush.msra.mxu0 %v2129
        %2131 = vmatpush.msra.mxu0 %v2128
        %2132 = vmatpush.msra.mxu0 %v2127
        %2133 = vmatpush.msra.mxu0 %v2126
        %2134 = vmatpush.msra.mxu0 %v2125
        %2135 = vmatpush.msra.mxu0 %v2124
        %2136 = vmatpush.msra.mxu0 %v2123
        %2137 = vmatpush.msra.mxu0 %v2122
        %2138 = vmatpush.msra.mxu0 %v2121
        %2139 = vmatpush.msra.mxu0 %v2120
        %2140 = vmatpush.msra.mxu0 %v2119
        %2141 = vmatpush.msra.mxu0 %v2118
        %2142 = vmatpush.msra.mxu0 %v2117
        %2143 = vmatpush.msra.mxu0 %v2116
        %2144 = vmatpush.msra.mxu0 %v2115
        %2145 = vmatpush.msra.mxu0 %v2114
        %2146 = vmatmul.f32.gmra.mxu0 %v2112
        %v2147 = vpop.f32.mrf.mxu0
        %v2148 = vadd.f32 0.0, %v2147
        %2149 = vdwg.mxu0
        %2150 = vst.msk [vmem:[#allocation3] sm:$0xf] %vm1677, %v2148
        %v2151 = vld [vmem:[#allocation3] sm:$0x1]
        %v2152 = vld [vmem:[#allocation10] sm:$0xff]
        %v2153 = vld [vmem:[#allocation10 + $0x8] sm:$0xff]
        %v2154 = vld [vmem:[#allocation10 + $0x10] sm:$0xff]
        %v2155 = vld [vmem:[#allocation10 + $0x18] sm:$0xff]
        %v2156 = vld [vmem:[#allocation10 + $0x20] sm:$0xff]
        %v2157 = vld [vmem:[#allocation10 + $0x28] sm:$0xff]
        %v2158 = vld [vmem:[#allocation10 + $0x30] sm:$0xff]
        %v2159 = vld [vmem:[#allocation10 + $0x38] sm:$0xff]
        %v2160 = vld [vmem:[#allocation3 + $0x1] sm:$0x1]
        %s2161 = scalar_lea.vmem [#allocation10], 64
        %v2162 = vld [vmem:[%s2161] sm:$0xff]
        %v2163 = vld [vmem:[%s2161 + $0x8] sm:$0xff]
        %v2164 = vld [vmem:[%s2161 + $0x10] sm:$0xff]
        %v2165 = vld [vmem:[%s2161 + $0x18] sm:$0xff]
        %v2166 = vld [vmem:[%s2161 + $0x20] sm:$0xff]
        %v2167 = vld [vmem:[%s2161 + $0x28] sm:$0xff]
        %v2168 = vld [vmem:[%s2161 + $0x30] sm:$0xff]
        %v2169 = vld [vmem:[%s2161 + $0x38] sm:$0xff]
        %v2171 = vsel %vm1674, %v2160, 0
        %2173 = vmatpush.msra.mxu0 0.0
        %2174 = vmatpush.msra.mxu0 0.0
        %2175 = vmatpush.msra.mxu0 0.0
        %2176 = vmatpush.msra.mxu0 0.0
        %2177 = vmatpush.msra.mxu0 0.0
        %2178 = vmatpush.msra.mxu0 0.0
        %2179 = vmatpush.msra.mxu0 0.0
        %2180 = vmatpush.msra.mxu0 0.0
        %2181 = vmatpush.msra.mxu0 %v2169
        %2182 = vmatpush.msra.mxu0 %v2168
        %2183 = vmatpush.msra.mxu0 %v2167
        %2184 = vmatpush.msra.mxu0 %v2166
        %2185 = vmatpush.msra.mxu0 %v2165
        %2186 = vmatpush.msra.mxu0 %v2164
        %2187 = vmatpush.msra.mxu0 %v2163
        %2188 = vmatpush.msra.mxu0 %v2162
        %2189 = vmatmul.f32.gmra.mxu0 %v2171
        %v2190 = vpop.f32.mrf.mxu0
        %v2191 = vadd.f32 0.0, %v2190
        %2192 = vdwg.mxu0
        %v2194 = vsel %vm1674, %v2151, 0
        %2196 = vmatpush.msra.mxu0 0.0
        %2197 = vmatpush.msra.mxu0 0.0
        %2198 = vmatpush.msra.mxu0 0.0
        %2199 = vmatpush.msra.mxu0 0.0
        %2200 = vmatpush.msra.mxu0 0.0
        %2201 = vmatpush.msra.mxu0 0.0
        %2202 = vmatpush.msra.mxu0 0.0
        %2203 = vmatpush.msra.mxu0 0.0
        %2204 = vmatpush.msra.mxu0 %v2159
        %2205 = vmatpush.msra.mxu0 %v2158
        %2206 = vmatpush.msra.mxu0 %v2157
        %2207 = vmatpush.msra.mxu0 %v2156
        %2208 = vmatpush.msra.mxu0 %v2155
        %2209 = vmatpush.msra.mxu0 %v2154
        %2210 = vmatpush.msra.mxu0 %v2153
        %2211 = vmatpush.msra.mxu0 %v2152
        %2212 = vmatmul.f32.gmra.mxu0 %v2194
        %v2213 = vpop.f32.mrf.mxu0
        %v2214 = vadd.f32 %v2191, %v2213
        %2215 = vdwg.mxu0
        %v2216 = vld [vmem:[#allocation3 + $0x2] sm:$0x1]
        %s2217 = scalar_lea.vmem [#allocation10], 128
        %v2218 = vld [vmem:[%s2217] sm:$0xff]
        %v2219 = vld [vmem:[%s2217 + $0x8] sm:$0xff]
        %v2220 = vld [vmem:[%s2217 + $0x10] sm:$0xff]
        %v2221 = vld [vmem:[%s2217 + $0x18] sm:$0xff]
        %v2222 = vld [vmem:[%s2217 + $0x20] sm:$0xff]
        %v2223 = vld [vmem:[%s2217 + $0x28] sm:$0xff]
        %v2224 = vld [vmem:[%s2217 + $0x30] sm:$0xff]
        %v2225 = vld [vmem:[%s2217 + $0x38] sm:$0xff]
        %v2227 = vsel %vm1674, %v2216, 0
        %2229 = vmatpush.msra.mxu0 0.0
        %2230 = vmatpush.msra.mxu0 0.0
        %2231 = vmatpush.msra.mxu0 0.0
        %2232 = vmatpush.msra.mxu0 0.0
        %2233 = vmatpush.msra.mxu0 0.0
        %2234 = vmatpush.msra.mxu0 0.0
        %2235 = vmatpush.msra.mxu0 0.0
        %2236 = vmatpush.msra.mxu0 0.0
        %2237 = vmatpush.msra.mxu0 %v2225
        %2238 = vmatpush.msra.mxu0 %v2224
        %2239 = vmatpush.msra.mxu0 %v2223
        %2240 = vmatpush.msra.mxu0 %v2222
        %2241 = vmatpush.msra.mxu0 %v2221
        %2242 = vmatpush.msra.mxu0 %v2220
        %2243 = vmatpush.msra.mxu0 %v2219
        %2244 = vmatpush.msra.mxu0 %v2218
        %2245 = vmatmul.f32.gmra.mxu0 %v2227
        %v2246 = vpop.f32.mrf.mxu0
        %v2247 = vadd.f32 0.0, %v2246
        %2248 = vdwg.mxu0
        %v2249 = vadd.f32 %v2214, %v2247
        %v2250 = vld [vmem:[#allocation3 + $0x3] sm:$0x1]
        %s2251 = scalar_lea.vmem [#allocation10], 192
        %v2252 = vld [vmem:[%s2251] sm:$0xff]
        %v2253 = vld [vmem:[%s2251 + $0x8] sm:$0xff]
        %v2254 = vld [vmem:[%s2251 + $0x10] sm:$0xff]
        %v2255 = vld [vmem:[%s2251 + $0x18] sm:$0xff]
        %v2256 = vld [vmem:[%s2251 + $0x20] sm:$0xff]
        %v2257 = vld [vmem:[%s2251 + $0x28] sm:$0xff]
        %v2258 = vld [vmem:[%s2251 + $0x30] sm:$0xff]
        %v2259 = vld [vmem:[%s2251 + $0x38] sm:$0xff]
        %v2261 = vsel %vm1674, %v2250, 0
        %2263 = vmatpush.msra.mxu0 0.0
        %2264 = vmatpush.msra.mxu0 0.0
        %2265 = vmatpush.msra.mxu0 0.0
        %2266 = vmatpush.msra.mxu0 0.0
        %2267 = vmatpush.msra.mxu0 0.0
        %2268 = vmatpush.msra.mxu0 0.0
        %2269 = vmatpush.msra.mxu0 0.0
        %2270 = vmatpush.msra.mxu0 0.0
        %2271 = vmatpush.msra.mxu0 %v2259
        %2272 = vmatpush.msra.mxu0 %v2258
        %2273 = vmatpush.msra.mxu0 %v2257
        %2274 = vmatpush.msra.mxu0 %v2256
        %2275 = vmatpush.msra.mxu0 %v2255
        %2276 = vmatpush.msra.mxu0 %v2254
        %2277 = vmatpush.msra.mxu0 %v2253
        %2278 = vmatpush.msra.mxu0 %v2252
        %2279 = vmatmul.f32.gmra.mxu0 %v2261
        %v2280 = vpop.f32.mrf.mxu0
        %v2281 = vadd.f32 0.0, %v2280
        %2282 = vdwg.mxu0
        %v2283 = vadd.f32 %v2249, %v2281
        %v2284 = vld [vmem:[%s10] sm:$0x1]
        %v2285 = vadd.f32 %v2283, %v2284
        %v2286 = vmax.f32 %v2285, 0.0
        %2287 = vst [vmem:[%s711] sm:$0x1] %v2286
        %v2288 = vld [vmem:[#allocation12] sm:$0xff]
        %v2289 = vld [vmem:[#allocation12 + $0x8] sm:$0xff]
        %v2290 = vld [vmem:[#allocation12 + $0x10] sm:$0xff]
        %v2291 = vld [vmem:[#allocation12 + $0x18] sm:$0xff]
        %v2292 = vld [vmem:[#allocation12 + $0x20] sm:$0xff]
        %v2293 = vld [vmem:[#allocation12 + $0x28] sm:$0xff]
        %v2294 = vld [vmem:[#allocation12 + $0x30] sm:$0xff]
        %v2295 = vld [vmem:[#allocation12 + $0x38] sm:$0xff]
        %v2296 = vld [vmem:[#allocation12 + $0x40] sm:$0xff]
        %v2297 = vld [vmem:[#allocation12 + $0x48] sm:$0xff]
        %v2298 = vld [vmem:[#allocation12 + $0x50] sm:$0xff]
        %v2299 = vld [vmem:[#allocation12 + $0x58] sm:$0xff]
        %v2300 = vld [vmem:[#allocation12 + $0x60] sm:$0xff]
        %v2301 = vld [vmem:[#allocation12 + $0x68] sm:$0xff]
        %v2302 = vld [vmem:[#allocation12 + $0x70] sm:$0xff]
        %v2303 = vld [vmem:[#allocation12 + $0x78] sm:$0xff]
        %v2304 = vld [vmem:[%s12] sm:$0x1]
        %2305 = vmatpush.msra.mxu0 %v2303
        %2306 = vmatpush.msra.mxu0 %v2302
        %2307 = vmatpush.msra.mxu0 %v2301
        %2308 = vmatpush.msra.mxu0 %v2300
        %2309 = vmatpush.msra.mxu0 %v2299
        %2310 = vmatpush.msra.mxu0 %v2298
        %2311 = vmatpush.msra.mxu0 %v2297
        %2312 = vmatpush.msra.mxu0 %v2296
        %2313 = vmatpush.msra.mxu0 %v2295
        %2314 = vmatpush.msra.mxu0 %v2294
        %2315 = vmatpush.msra.mxu0 %v2293
        %2316 = vmatpush.msra.mxu0 %v2292
        %2317 = vmatpush.msra.mxu0 %v2291
        %2318 = vmatpush.msra.mxu0 %v2290
        %2319 = vmatpush.msra.mxu0 %v2289
        %2320 = vmatpush.msra.mxu0 %v2288
        %2321 = vmatmul.f32.gmra.mxu0 %v2286
        %v2322 = vpop.f32.mrf.mxu0
        %v2323 = vadd.f32 %v2304, %v2322
        %2324 = vdwg.mxu0
        %v2325 = vmax.f32 %v2323, 0.0
        %2326 = vst [vmem:[%s717] sm:$0x1] %v2325
        %v2327 = vld [vmem:[#allocation13] sm:$0xff]
        %v2328 = vld [vmem:[#allocation13 + $0x8] sm:$0xff]
        %v2329 = vld [vmem:[#allocation13 + $0x10] sm:$0xff]
        %v2330 = vld [vmem:[#allocation13 + $0x18] sm:$0xff]
        %v2331 = vld [vmem:[#allocation13 + $0x20] sm:$0xff]
        %v2332 = vld [vmem:[#allocation13 + $0x28] sm:$0xff]
        %v2333 = vld [vmem:[#allocation13 + $0x30] sm:$0xff]
        %v2334 = vld [vmem:[#allocation13 + $0x38] sm:$0xff]
        %v2335 = vld [vmem:[#allocation13 + $0x40] sm:$0xff]
        %v2336 = vld [vmem:[#allocation13 + $0x48] sm:$0xff]
        %v2337 = vld [vmem:[#allocation13 + $0x50] sm:$0xff]
        %v2338 = vld [vmem:[#allocation13 + $0x58] sm:$0xff]
        %v2339 = vld [vmem:[#allocation13 + $0x60] sm:$0xff]
        %v2340 = vld [vmem:[#allocation13 + $0x68] sm:$0xff]
        %v2341 = vld [vmem:[#allocation13 + $0x70] sm:$0xff]
        %v2342 = vld [vmem:[#allocation13 + $0x78] sm:$0xff]
        %v2343 = vld [vmem:[%s14] sm:$0x1]
        %2344 = vmatpush.msra.mxu0 %v2342
        %2345 = vmatpush.msra.mxu0 %v2341
        %2346 = vmatpush.msra.mxu0 %v2340
        %2347 = vmatpush.msra.mxu0 %v2339
        %2348 = vmatpush.msra.mxu0 %v2338
        %2349 = vmatpush.msra.mxu0 %v2337
        %2350 = vmatpush.msra.mxu0 %v2336
        %2351 = vmatpush.msra.mxu0 %v2335
        %2352 = vmatpush.msra.mxu0 %v2334
        %2353 = vmatpush.msra.mxu0 %v2333
        %2354 = vmatpush.msra.mxu0 %v2332
        %2355 = vmatpush.msra.mxu0 %v2331
        %2356 = vmatpush.msra.mxu0 %v2330
        %2357 = vmatpush.msra.mxu0 %v2329
        %2358 = vmatpush.msra.mxu0 %v2328
        %2359 = vmatpush.msra.mxu0 %v2327
        %2360 = vmatmul.f32.gmra.mxu0 %v2325
        %v2361 = vpop.f32.mrf.mxu0
        %v2362 = vadd.f32 %v2343, %v2361
        %2363 = vdwg.mxu0
        %2364 = vst [vmem:[%s723] sm:$0x1] %v2362
        %p2365 = scmp.lt.s32.totalorder %s41, 1
        %s2366 = scalar_select %p2365, %s41, 1
        %s2367 = smul.addr %s2366, 9
        %s2368 = smul.addr %s2367, 8
        %s2369 = scalar_lea.vmem %s15, %s2368
        %p2370 = scmp.lt.s32.totalorder %s41, 1
        %s2371 = scalar_select %p2370, %s41, 1
        %s2372 = smul.addr %s2371, 8
        %s2373 = scalar_lea.vmem %s16, %s2372
        %s2374 = sand.u32 %s421, 1
        %s2375 = scalar_lea.sflag [#allocation6], %s2374
        %s2376 = sand.u32 %s421, 1
        %s2377 = scalar_lea.vmem [#allocation15], %s2376
        %s2378 = sand.u32 %s41, 1
        %s2379 = scalar_lea.sflag [#allocation17], %s2378
        %s2380 = sand.u32 %s447, 1
        %s2381 = scalar_lea.vmem [#allocation16], %s2380
        %s2382 = sand.u32 %s41, 1
        %s2383 = scalar_lea.sflag [#allocation17], %s2382
        %s2384 = sand.u32 %s473, 1
        %s2385 = scalar_lea.vmem [#allocation18], %s2384
        // Predicated region
        $region105: #{lenet_forward.1} parent=79 // pred_check
          %p2386 = pneg %p379
        $region106: #{lenet_forward.1} parent=79 // pred_check_branch
          %2388 = sbr.rel (%p2386) target = $region108
        $region107: #{lenet_forward.1} parent=79 // pred_region
          _
        $region108: #{lenet_forward.1} parent=79 // pred_fallthru
          _
        // Predicated region
        $region109: #{lenet_forward.1} parent=79 // pred_check
          %p2389 = pneg %p405
        $region110: #{lenet_forward.1} parent=79 // pred_check_branch
          %2391 = sbr.rel (%p2389) target = $region112
        $region111: #{lenet_forward.1} parent=79 // pred_region
          _
        $region112: #{lenet_forward.1} parent=79 // pred_fallthru
          _
        // Predicated region
        $region113: #{lenet_forward.1} parent=79 // pred_check
          %p2392 = pneg %p431
        $region114: #{lenet_forward.1} parent=79 // pred_check_branch
          %2394 = sbr.rel (%p2392) target = $region116
        $region115: #{lenet_forward.1} parent=79 // pred_region
          %2396 = vsyncadd %s2375, 0
          %s2397 = scalar_lea.hbm %s17, %s41
          %s2399 = sshll.u32 %s2377, 4
          %s2400 = int_to_ptr.vmem [resolvable:$true] %s2399
          %s2401 = sshll.u32 %s2397, 4
          %s2402 = int_to_ptr.hbm [resolvable:$true] %s2401
          %2404 = dma.vmem_to_hbm [thread:$0]  %s2400, 16, %s2402, %s2375
        $region116: #{lenet_forward.1} parent=79 // pred_fallthru
          _
        // Predicated region
        $region117: #{lenet_forward.1} parent=79 // pred_check
          %p2405 = pneg %p457
        $region118: #{lenet_forward.1} parent=79 // pred_check_branch
          %2407 = sbr.rel (%p2405) target = $region120
        $region119: #{lenet_forward.1} parent=79 // pred_region
          %2409 = vsyncadd %s2379, 0
          %s2410 = scalar_lea.hbm %s18, %s41
          %s2412 = sshll.u32 %s2381, 4
          %s2413 = int_to_ptr.vmem [resolvable:$true] %s2412
          %s2414 = sshll.u32 %s2410, 4
          %s2415 = int_to_ptr.hbm [resolvable:$true] %s2414
          %2417 = dma.vmem_to_hbm [thread:$0]  %s2413, 16, %s2415, %s2379
        $region120: #{lenet_forward.1} parent=79 // pred_fallthru
          _
        // Predicated region
        $region121: #{lenet_forward.1} parent=79 // pred_check
          %p2418 = pneg %p483
        $region122: #{lenet_forward.1} parent=79 // pred_check_branch
          %2420 = sbr.rel (%p2418) target = $region124
        $region123: #{lenet_forward.1} parent=79 // pred_region
          %2422 = vsyncadd %s2383, 0
          %s2423 = scalar_lea.hbm %s19, %s41
          %s2425 = sshll.u32 %s2385, 4
          %s2426 = int_to_ptr.vmem [resolvable:$true] %s2425
          %s2427 = sshll.u32 %s2423, 4
          %s2428 = int_to_ptr.hbm [resolvable:$true] %s2427
          %2430 = dma.vmem_to_hbm [thread:$0]  %s2426, 16, %s2428, %s2383
        $region124: #{lenet_forward.1} parent=79 // pred_fallthru
          _
      $region80: #{lenet_forward.1} parent=5 // pred_fallthru
        _
      %p2431 = scmp.le.s32.totalorder 2, %s36
      // Predicated region
      $region125: #{lenet_forward.1} parent=5 // pred_check
        %p2432 = pneg %p2431
      $region126: #{lenet_forward.1} parent=5 // pred_check_branch
        %2434 = sbr.rel (%p2432) target = $region128
      $region127: #{lenet_forward.1} parent=5 // pred_region
        %s2435 = ssub.s32 %s36, 2
        // Predicated region
        $region129: #{lenet_forward.1} parent=127 // pred_check
          %p2436 = pneg %p385
        $region130: #{lenet_forward.1} parent=127 // pred_check_branch
          %2438 = sbr.rel (%p2436) target = $region132
        $region131: #{lenet_forward.1} parent=127 // pred_region
          %p2439 = scmp.lt.s32.totalorder %s42, 1
          %s2440 = scalar_select %p2439, %s42, 1
          %s2441 = smul.addr %s2440, 9
          %s2442 = smul.addr %s2441, 8
          %s2443 = scalar_lea.vmem %s15, %s2442
        $region132: #{lenet_forward.1} parent=127 // pred_fallthru
          _
        // Predicated region
        $region133: #{lenet_forward.1} parent=127 // pred_check
          %p2444 = pneg %p411
        $region134: #{lenet_forward.1} parent=127 // pred_check_branch
          %2446 = sbr.rel (%p2444) target = $region136
        $region135: #{lenet_forward.1} parent=127 // pred_region
          %p2447 = scmp.lt.s32.totalorder %s42, 1
          %s2448 = scalar_select %p2447, %s42, 1
          %s2449 = smul.addr %s2448, 8
          %s2450 = scalar_lea.vmem %s16, %s2449
        $region136: #{lenet_forward.1} parent=127 // pred_fallthru
          _
        // Predicated region
        $region137: #{lenet_forward.1} parent=127 // pred_check
          %p2451 = pneg %p437
        $region138: #{lenet_forward.1} parent=127 // pred_check_branch
          %2453 = sbr.rel (%p2451) target = $region140
        $region139: #{lenet_forward.1} parent=127 // pred_region
          %s2454 = sand.u32 %s422, 1
          %s2455 = scalar_lea.sflag [#allocation6], %s2454
          %s2456 = sand.u32 %s422, 1
          %s2457 = scalar_lea.vmem [#allocation15], %s2456
          %2459 = dma.done %s2455, 16
        $region140: #{lenet_forward.1} parent=127 // pred_fallthru
          _
        // Predicated region
        $region141: #{lenet_forward.1} parent=127 // pred_check
          %p2460 = pneg %p463
        $region142: #{lenet_forward.1} parent=127 // pred_check_branch
          %2462 = sbr.rel (%p2460) target = $region144
        $region143: #{lenet_forward.1} parent=127 // pred_region
          %s2463 = sand.u32 %s42, 1
          %s2464 = scalar_lea.sflag [#allocation17], %s2463
          %s2465 = sand.u32 %s448, 1
          %s2466 = scalar_lea.vmem [#allocation16], %s2465
          %2468 = dma.done %s2464, 16
        $region144: #{lenet_forward.1} parent=127 // pred_fallthru
          _
        // Predicated region
        $region145: #{lenet_forward.1} parent=127 // pred_check
          %p2469 = pneg %p489
        $region146: #{lenet_forward.1} parent=127 // pred_check_branch
          %2471 = sbr.rel (%p2469) target = $region148
        $region147: #{lenet_forward.1} parent=127 // pred_region
          %s2472 = sand.u32 %s42, 1
          %s2473 = scalar_lea.sflag [#allocation17], %s2472
          %s2474 = sand.u32 %s474, 1
          %s2475 = scalar_lea.vmem [#allocation18], %s2474
          %2477 = dma.done %s2473, 16
        $region148: #{lenet_forward.1} parent=127 // pred_fallthru
          _
      $region128: #{lenet_forward.1} parent=5 // pred_fallthru
        _
    $region6: #{lenet_forward.1} parent=1 // loop_footer
      %s40 = sadd.s32 1, %s36
    $region7: #{lenet_forward.1} parent=1 // loop_footer_branch
      %35 = sbr.rel target = $region3
    $region8: #{lenet_forward.1} parent=1 // loop_exit
      _
    %2478 = vsyncpa [#allocation5], 1
    %s2479 = scalar_lea.sflag [#allocation5], 1
    %2480 = vsyncpa %s2479, 1
    %2481 = vsyncpa [#allocation8], 1
    %2482 = vsyncpa [#allocation11], 1
    %2483 = vsyncpa [#allocation14], 1
    %2484 = vsyncpa [#allocation6], 1
    %s2485 = scalar_lea.sflag [#allocation6], 1
    %2486 = vsyncpa %s2485, 1
    %2487 = vsyncpa [#allocation17], 1
    %s2488 = scalar_lea.sflag [#allocation17], 1
    %2489 = vsyncpa %s2488, 1

</llo_original>
